<compile_context>
chip_gen: v7x
topology: tpu7x:2x2x1
jax: 0.10.0
libtpu: 0.0.40
codegen_flags: <defaults>
</compile_context>

<pallas_src>
import jax
import jax.numpy as jnp
from jax.experimental import pallas as pl
from jax.experimental.pallas import tpu as pltpu

EXPANSION = 4
BN_EPS = 1e-5


# ----------------------------------------------------------------------------
# Pallas kernels
# ----------------------------------------------------------------------------
def _conv1x1_bn_relu_kernel(x_ref, w_ref, b_ref, o_ref):
    # out = relu(x @ w_folded + bias), bf16 in / f32 acc / bf16 out
    acc = jnp.dot(x_ref[...], w_ref[...], preferred_element_type=jnp.float32)
    o_ref[...] = jnp.maximum(acc + b_ref[...], 0.0).astype(o_ref.dtype)


def _make_tail_kernel(sc_is_conv):
    """Fused: conv2(im2col matmul)+bn2+relu -> conv3+bn3 -> (+shortcut) -> relu."""
    if sc_is_conv:
        def kernel(p_ref, xs_ref, w2_ref, b2_ref, w3_ref, b3_ref, ws_ref, bs_ref, o_ref):
            h = jnp.dot(p_ref[...], w2_ref[...], preferred_element_type=jnp.float32)
            h = jnp.maximum(h + b2_ref[...], 0.0).astype(jnp.bfloat16)
            y = jnp.dot(h, w3_ref[...], preferred_element_type=jnp.float32) + b3_ref[...]
            sc = jnp.dot(xs_ref[...], ws_ref[...], preferred_element_type=jnp.float32)
            sc = sc + bs_ref[...]
            o_ref[...] = jnp.maximum(y + sc, 0.0).astype(o_ref.dtype)
    else:
        def kernel(p_ref, res_ref, w2_ref, b2_ref, w3_ref, b3_ref, o_ref):
            h = jnp.dot(p_ref[...], w2_ref[...], preferred_element_type=jnp.float32)
            h = jnp.maximum(h + b2_ref[...], 0.0).astype(jnp.bfloat16)
            y = jnp.dot(h, w3_ref[...], preferred_element_type=jnp.float32) + b3_ref[...]
            o_ref[...] = jnp.maximum(y + res_ref[...].astype(jnp.float32), 0.0).astype(o_ref.dtype)
    return kernel


# ----------------------------------------------------------------------------
# Pallas wrappers
# ----------------------------------------------------------------------------
def _pick_tile(dim, candidates):
    for c in candidates:
        if dim % c == 0:
            return c
    return dim


def conv1x1_bn_relu(x2d, w, b):
    """x2d:(M,Cin) bf16, w:(Cin,P) bf16 (BN-folded), b:(1,P) f32 -> (M,P) bf16."""
    M, K = x2d.shape
    _, P = w.shape
    tm = _pick_tile(M, (512, 256, 128, 64, 32, 16, 8))
    return pl.pallas_call(
        _conv1x1_bn_relu_kernel,
        out_shape=jax.ShapeDtypeStruct((M, P), jnp.bfloat16),
        grid=(M // tm,),
        in_specs=[
            pl.BlockSpec((tm, K), lambda i: (i, 0)),
            pl.BlockSpec((K, P), lambda i: (0, 0)),
            pl.BlockSpec((1, P), lambda i: (0, 0)),
        ],
        out_specs=pl.BlockSpec((tm, P), lambda i: (i, 0)),
        compiler_params=pltpu.CompilerParams(dimension_semantics=("parallel",)),
    )(x2d, w, b)


def bottleneck_tail(patches, sc_in, prep):
    """Fused conv2+bn2+relu -> conv3+bn3 -> shortcut add -> relu.

    patches: (M, 9*P) bf16 im2col of conv1 output.
    sc_in:   (M, Cin) bf16 strided input (conv shortcut) OR (M, 4P) bf16 identity.
    """
    M, K2 = patches.shape
    P = prep["planes"]
    N4 = EXPANSION * P
    sc_is_conv = prep["has_sc_conv"]

    tm = _pick_tile(M, (512, 256, 128, 64, 32, 16, 8))
    tn = _pick_tile(N4, (512, 256, 128))
    grid = (M // tm, N4 // tn)

    in_specs = [pl.BlockSpec((tm, K2), lambda i, j: (i, 0))]
    args = [patches]
    if sc_is_conv:
        Cin = sc_in.shape[1]
        in_specs.append(pl.BlockSpec((tm, Cin), lambda i, j: (i, 0)))
    else:
        in_specs.append(pl.BlockSpec((tm, tn), lambda i, j: (i, j)))
    args.append(sc_in)

    in_specs += [
        pl.BlockSpec((K2, P), lambda i, j: (0, 0)),   # w2 (full, resident)
        pl.BlockSpec((1, P), lambda i, j: (0, 0)),    # b2
        pl.BlockSpec((P, tn), lambda i, j: (0, j)),   # w3 column tile
        pl.BlockSpec((1, tn), lambda i, j: (0, j)),   # b3
    ]
    args += [prep["w2"], prep["b2"], prep["w3"], prep["b3"]]
    if sc_is_conv:
        in_specs += [
            pl.BlockSpec((sc_in.shape[1], tn), lambda i, j: (0, j)),  # ws
            pl.BlockSpec((1, tn), lambda i, j: (0, j)),               # bs
        ]
        args += [prep["ws"], prep["bs"]]

    return pl.pallas_call(
        _make_tail_kernel(sc_is_conv),
        out_shape=jax.ShapeDtypeStruct((M, N4), jnp.float32),
        grid=grid,
        in_specs=in_specs,
        out_specs=pl.BlockSpec((tm, tn), lambda i, j: (i, j)),
        compiler_params=pltpu.CompilerParams(
            dimension_semantics=("parallel", "parallel")),
    )(*args)


# ----------------------------------------------------------------------------
# Plain-JAX glue: im2col (bf16) for the 3x3 conv
# ----------------------------------------------------------------------------
def im2col_3x3(x, stride):
    """x:(N,H,W,C) -> ((N*Ho*Wo, 9*C), Ho, Wo); pad=1; K order (dy, dx, c)."""
    N, H, W, C = x.shape
    xp = jnp.pad(x, ((0, 0), (1, 1), (1, 1), (0, 0)))
    Ho = (H + 2 - 3) // stride + 1
    Wo = (W + 2 - 3) // stride + 1
    cols = []
    for dy in range(3):
        for dx in range(3):
            cols.append(xp[:, dy:dy + stride * (Ho - 1) + 1:stride,
                           dx:dx + stride * (Wo - 1) + 1:stride, :])
    patches = jnp.concatenate(cols, axis=-1)
    return patches.reshape(N * Ho * Wo, 9 * C), Ho, Wo


# ----------------------------------------------------------------------------
# Parameter init (PyTorch-layout raw weights + BN stats) and layout prep
# ----------------------------------------------------------------------------
def _bn_stats(key, c):
    k1, k2, k3, k4 = jax.random.split(key, 4)
    gamma = 1.0 + 0.1 * jax.random.normal(k1, (c,), jnp.float32)
    beta = 0.1 * jax.random.normal(k2, (c,), jnp.float32)
    mean = 0.1 * jax.random.normal(k3, (c,), jnp.float32)
    var = jax.random.uniform(k4, (c,), jnp.float32, minval=0.5, maxval=1.5)
    return gamma, beta, mean, var


def init_bottleneck(key, in_planes, planes, stride):
    keys = jax.random.split(key, 8)
    raw = {
        "in_planes": in_planes, "planes": planes, "stride": stride,
        "conv1_w": 0.05 * jax.random.normal(keys[0], (planes, in_planes, 1, 1), jnp.float32),
        "bn1": _bn_stats(keys[1], planes),
        "conv2_w": 0.05 * jax.random.normal(keys[2], (planes, planes, 3, 3), jnp.float32),
        "bn2": _bn_stats(keys[3], planes),
        "conv3_w": 0.05 * jax.random.normal(keys[4], (EXPANSION * planes, planes, 1, 1), jnp.float32),
        "bn3": _bn_stats(keys[5], EXPANSION * planes),
    }
    if stride != 1 or in_planes != EXPANSION * planes:
        raw["sc_w"] = 0.05 * jax.random.normal(keys[6], (EXPANSION * planes, in_planes, 1, 1), jnp.float32)
        raw["sc_bn"] = _bn_stats(keys[7], EXPANSION * planes)
    return raw


def prepare_params(raw):
    """Fold BN into weights, lay out for the kernels, cast to bf16 (hoisted once)."""
    def fold(w, bn):
        gamma, beta, mean, var = bn
        scale = gamma / jnp.sqrt(var + BN_EPS)          # per out-channel
        return w * scale[:, None, None, None], (beta - mean * scale)

    P = raw["planes"]
    prep = {"stride": raw["stride"], "planes": P, "has_sc_conv": "sc_w" in raw}

    w1f, b1 = fold(raw["conv1_w"], raw["bn1"])
    prep["w1"] = jnp.transpose(w1f[:, :, 0, 0], (1, 0)).astype(jnp.bfloat16)       # (Cin, P)
    prep["b1"] = b1.reshape(1, -1).astype(jnp.float32)

    w2f, b2 = fold(raw["conv2_w"], raw["bn2"])
    prep["w2"] = jnp.transpose(w2f, (2, 3, 1, 0)).reshape(9 * P, P).astype(jnp.bfloat16)
    prep["b2"] = b2.reshape(1, -1).astype(jnp.float32)

    w3f, b3 = fold(raw["conv3_w"], raw["bn3"])
    prep["w3"] = jnp.transpose(w3f[:, :, 0, 0], (1, 0)).astype(jnp.bfloat16)       # (P, 4P)
    prep["b3"] = b3.reshape(1, -1).astype(jnp.float32)

    if prep["has_sc_conv"]:
        wsf, bs = fold(raw["sc_w"], raw["sc_bn"])
        prep["ws"] = jnp.transpose(wsf[:, :, 0, 0], (1, 0)).astype(jnp.bfloat16)   # (Cin, 4P)
        prep["bs"] = bs.reshape(1, -1).astype(jnp.float32)
    return prep


# ----------------------------------------------------------------------------
# Forward pass (matches the PyTorch BottleneckBlock.forward, inference BN)
# ----------------------------------------------------------------------------
def bottleneck_forward(prep, x_nchw):
    x = jnp.transpose(x_nchw, (0, 2, 3, 1)).astype(jnp.bfloat16)   # NHWC bf16
    N, H, W, Cin = x.shape
    stride = prep["stride"]
    P = prep["planes"]
    N4 = EXPANSION * P

    # conv1 (1x1) + bn1 + relu — fused Pallas matmul, bf16 output
    out1 = conv1x1_bn_relu(x.reshape(N * H * W, Cin), prep["w1"], prep["b1"])
    out1 = out1.reshape(N, H, W, P)

    # conv2/bn2/relu + conv3/bn3 + shortcut + add + relu — single fused Pallas kernel
    patches, Ho, Wo = im2col_3x3(out1, stride)        # bf16 im2col
    if prep["has_sc_conv"]:
        xs = x[:, ::stride, ::stride, :].reshape(N * Ho * Wo, Cin)
        out = bottleneck_tail(patches, xs, prep)
    else:
        res = x.reshape(N * Ho * Wo, N4)              # identity shortcut
        out = bottleneck_tail(patches, res, prep)

    out = out.reshape(N, Ho, Wo, N4)
    return jnp.transpose(out, (0, 3, 1, 2))           # back to NCHW, f32


# ----------------------------------------------------------------------------
# Pure-JAX reference (f32, un-folded BN) for correctness check
# ----------------------------------------------------------------------------
def bottleneck_ref(raw, x_nchw):
    x = jnp.transpose(x_nchw, (0, 2, 3, 1)).astype(jnp.float32)

    def conv(a, w, stride, pad):
        w_hwio = jnp.transpose(w, (2, 3, 1, 0))
        return jax.lax.conv_general_dilated(
            a, w_hwio, window_strides=(stride, stride),
            padding=[(pad, pad), (pad, pad)],
            dimension_numbers=("NHWC", "HWIO", "NHWC"))

    def bn(a, stats):
        gamma, beta, mean, var = stats
        return (a - mean) * (gamma / jnp.sqrt(var + BN_EPS)) + beta

    out = jax.nn.relu(bn(conv(x, raw["conv1_w"], 1, 0), raw["bn1"]))
    out = jax.nn.relu(bn(conv(out, raw["conv2_w"], raw["stride"], 1), raw["bn2"]))
    out = bn(conv(out, raw["conv3_w"], 1, 0), raw["bn3"])
    if "sc_w" in raw:
        sc = bn(conv(x, raw["sc_w"], raw["stride"], 0), raw["sc_bn"])
    else:
        sc = x
    out = jax.nn.relu(out + sc)
    return jnp.transpose(out, (0, 3, 1, 2))


# ----------------------------------------------------------------------------
if __name__ == "__main__":
    key = jax.random.PRNGKey(0)
    configs = [
        # (batch, in_planes, planes, stride, H=W) — 4*planes = 128 keeps output lane-dense
        dict(batch=2, in_planes=16, planes=32, stride=1, hw=16),    # conv shortcut
        dict(batch=2, in_planes=64, planes=32, stride=2, hw=16),    # strided downsample block
        dict(batch=2, in_planes=128, planes=32, stride=1, hw=16),   # identity shortcut
    ]
    for cfg in configs:
        kp, kx, key = jax.random.split(key, 3)
        raw = init_bottleneck(kp, cfg["in_planes"], cfg["planes"], cfg["stride"])
        prep = prepare_params(raw)
        x = jax.random.normal(
            kx, (cfg["batch"], cfg["in_planes"], cfg["hw"], cfg["hw"]), jnp.float32)

        fwd = jax.jit(lambda xx, p=prep: bottleneck_forward(p, xx))
        out = jax.block_until_ready(fwd(x))

        ref = bottleneck_ref(raw, x)
        assert out.shape == ref.shape, (out.shape, ref.shape)
        err = float(jnp.max(jnp.abs(out.astype(jnp.float32) - ref)))
        scale = float(jnp.max(jnp.abs(ref)))
        assert err <= 5e-2 * max(1.0, scale), ("mismatch", err, scale, cfg)

    print("KERNEL_OK")
</pallas_src>

<mosaic_0001>
module attributes {stable_mosaic.version = 11 : i64} {
  func.func @_conv1x1_bn_relu_kernel(%arg0: i32, %arg1: memref<512x16xbf16, #tpu.memory_space<vmem>>, %arg2: memref<16x32xbf16, #tpu.memory_space<vmem>>, %arg3: memref<1x32xf32, #tpu.memory_space<vmem>>, %arg4: memref<512x32xbf16, #tpu.memory_space<vmem>>) attributes {dimension_semantics = [#tpu.dimension_semantics<parallel>], iteration_bounds = array<i64: 1>, scalar_prefetch = 0 : i64, scratch_operands = 0 : i64, tpu.core_type = #tpu.core_type<tc>, window_params = [{transform_indices = @transform_0, window_bounds = array<i64: 512, 16>}, {pipeline_mode = #tpu.pipeline_mode<synchronous>, transform_indices = @transform_1, window_bounds = array<i64: 16, 32>}, {pipeline_mode = #tpu.pipeline_mode<synchronous>, transform_indices = @transform_2, window_bounds = array<i64: 1, 32>}, {transform_indices = @transform_3, window_bounds = array<i64: 512, 32>}]} {
    %c0 = arith.constant 0 : index
    %c0_0 = arith.constant 0 : index
    %0 = vector.load %arg1[%c0, %c0_0] : memref<512x16xbf16, #tpu.memory_space<vmem>>, vector<512x16xbf16>
    %c0_1 = arith.constant 0 : index
    %c0_2 = arith.constant 0 : index
    %1 = vector.load %arg2[%c0_1, %c0_2] : memref<16x32xbf16, #tpu.memory_space<vmem>>, vector<16x32xbf16>
    %cst = arith.constant dense<0.000000e+00> : vector<512x32xf32>
    %2 = tpu.matmul %0, %1, %cst {dimension_numbers = #tpu.dot_dimension_numbers<[1], [0], [0], [1], [0, 0, 1, 1], [], []>} : vector<512x16xbf16>, vector<16x32xbf16>, vector<512x32xf32> -> vector<512x32xf32>
    %c0_3 = arith.constant 0 : index
    %c0_4 = arith.constant 0 : index
    %3 = vector.load %arg3[%c0_3, %c0_4] : memref<1x32xf32, #tpu.memory_space<vmem>>, vector<1x32xf32>
    %4 = vector.broadcast %3 : vector<1x32xf32> to vector<512x32xf32>
    %5 = arith.addf %2, %4 : vector<512x32xf32>
    %cst_5 = arith.constant 0.000000e+00 : f32
    %6 = vector.broadcast %cst_5 : f32 to vector<512x32xf32>
    %7 = arith.maximumf %5, %6 : vector<512x32xf32>
    %8 = arith.truncf %7 : vector<512x32xf32> to vector<512x32xbf16>
    %c0_6 = arith.constant 0 : index
    %c0_7 = arith.constant 0 : index
    %9 = vector.load %arg4[%c0_6, %c0_7] : memref<512x32xbf16, #tpu.memory_space<vmem>>, vector<512x32xbf16>
    tpu.vector_store %arg4[%c0_6, %c0_7], %8 {strides = array<i32>} : memref<512x32xbf16, #tpu.memory_space<vmem>>, vector<512x32xbf16>,
    return
  }
  func.func @transform_0(%arg0: i32) -> (i32, i32) {
    %c0_i32 = arith.constant 0 : i32
    %c0_i32_0 = arith.constant 0 : i32
    return %arg0, %c0_i32 : i32, i32
  }
  func.func @transform_1(%arg0: i32) -> (i32, i32) {
    %c0_i32 = arith.constant 0 : i32
    %c0_i32_0 = arith.constant 0 : i32
    %c0_i32_1 = arith.constant 0 : i32
    return %c0_i32, %c0_i32_0 : i32, i32
  }
  func.func @transform_2(%arg0: i32) -> (i32, i32) {
    %c0_i32 = arith.constant 0 : i32
    %c0_i32_0 = arith.constant 0 : i32
    %c0_i32_1 = arith.constant 0 : i32
    return %c0_i32, %c0_i32_0 : i32, i32
  }
  func.func @transform_3(%arg0: i32) -> (i32, i32) {
    %c0_i32 = arith.constant 0 : i32
    %c0_i32_0 = arith.constant 0 : i32
    return %arg0, %c0_i32 : i32, i32
  }
}

module attributes {stable_mosaic.version = 11 : i64} {
  func.func @kernel(%arg0: i32, %arg1: i32, %arg2: memref<512x288xbf16, #tpu.memory_space<vmem>>, %arg3: memref<512x16xbf16, #tpu.memory_space<vmem>>, %arg4: memref<288x32xbf16, #tpu.memory_space<vmem>>, %arg5: memref<1x32xf32, #tpu.memory_space<vmem>>, %arg6: memref<32x128xbf16, #tpu.memory_space<vmem>>, %arg7: memref<1x128xf32, #tpu.memory_space<vmem>>, %arg8: memref<16x128xbf16, #tpu.memory_space<vmem>>, %arg9: memref<1x128xf32, #tpu.memory_space<vmem>>, %arg10: memref<512x128xf32, #tpu.memory_space<vmem>>) attributes {dimension_semantics = [#tpu.dimension_semantics<parallel>, #tpu.dimension_semantics<parallel>], iteration_bounds = array<i64: 1, 1>, scalar_prefetch = 0 : i64, scratch_operands = 0 : i64, tpu.core_type = #tpu.core_type<tc>, window_params = [{transform_indices = @transform_0, window_bounds = array<i64: 512, 288>}, {transform_indices = @transform_1, window_bounds = array<i64: 512, 16>}, {pipeline_mode = #tpu.pipeline_mode<synchronous>, transform_indices = @transform_2, window_bounds = array<i64: 288, 32>}, {pipeline_mode = #tpu.pipeline_mode<synchronous>, transform_indices = @transform_3, window_bounds = array<i64: 1, 32>}, {transform_indices = @transform_4, window_bounds = array<i64: 32, 128>}, {transform_indices = @transform_5, window_bounds = array<i64: 1, 128>}, {transform_indices = @transform_6, window_bounds = array<i64: 16, 128>}, {transform_indices = @transform_7, window_bounds = array<i64: 1, 128>}, {transform_indices = @transform_8, window_bounds = array<i64: 512, 128>}]} {
    %c0 = arith.constant 0 : index
    %c0_0 = arith.constant 0 : index
    %0 = vector.load %arg2[%c0, %c0_0] : memref<512x288xbf16, #tpu.memory_space<vmem>>, vector<512x288xbf16>
    %c0_1 = arith.constant 0 : index
    %c0_2 = arith.constant 0 : index
    %1 = vector.load %arg4[%c0_1, %c0_2] : memref<288x32xbf16, #tpu.memory_space<vmem>>, vector<288x32xbf16>
    %cst = arith.constant dense<0.000000e+00> : vector<512x32xf32>
    %2 = tpu.matmul %0, %1, %cst {dimension_numbers = #tpu.dot_dimension_numbers<[1], [0], [0], [1], [0, 0, 1, 1], [], []>} : vector<512x288xbf16>, vector<288x32xbf16>, vector<512x32xf32> -> vector<512x32xf32>
    %c0_3 = arith.constant 0 : index
    %c0_4 = arith.constant 0 : index
    %3 = vector.load %arg5[%c0_3, %c0_4] : memref<1x32xf32, #tpu.memory_space<vmem>>, vector<1x32xf32>
    %4 = vector.broadcast %3 : vector<1x32xf32> to vector<512x32xf32>
    %5 = arith.addf %2, %4 : vector<512x32xf32>
    %cst_5 = arith.constant 0.000000e+00 : f32
    %6 = vector.broadcast %cst_5 : f32 to vector<512x32xf32>
    %7 = arith.maximumf %5, %6 : vector<512x32xf32>
    %8 = arith.truncf %7 : vector<512x32xf32> to vector<512x32xbf16>
    %c0_6 = arith.constant 0 : index
    %c0_7 = arith.constant 0 : index
    %9 = vector.load %arg6[%c0_6, %c0_7] : memref<32x128xbf16, #tpu.memory_space<vmem>>, vector<32x128xbf16>
    %cst_8 = arith.constant dense<0.000000e+00> : vector<512x128xf32>
    %10 = tpu.matmul %8, %9, %cst_8 {dimension_numbers = #tpu.dot_dimension_numbers<[1], [0], [0], [1], [0, 0, 1, 1], [], []>} : vector<512x32xbf16>, vector<32x128xbf16>, vector<512x128xf32> -> vector<512x128xf32>
    %c0_9 = arith.constant 0 : index
    %c0_10 = arith.constant 0 : index
    %11 = vector.load %arg7[%c0_9, %c0_10] : memref<1x128xf32, #tpu.memory_space<vmem>>, vector<1x128xf32>
    %12 = vector.broadcast %11 : vector<1x128xf32> to vector<512x128xf32>
    %13 = arith.addf %10, %12 : vector<512x128xf32>
    %c0_11 = arith.constant 0 : index
    %c0_12 = arith.constant 0 : index
    %14 = vector.load %arg3[%c0_11, %c0_12] : memref<512x16xbf16, #tpu.memory_space<vmem>>, vector<512x16xbf16>
    %c0_13 = arith.constant 0 : index
    %c0_14 = arith.constant 0 : index
    %15 = vector.load %arg8[%c0_13, %c0_14] : memref<16x128xbf16, #tpu.memory_space<vmem>>, vector<16x128xbf16>
    %cst_15 = arith.constant dense<0.000000e+00> : vector<512x128xf32>
    %16 = tpu.matmul %14, %15, %cst_15 {dimension_numbers = #tpu.dot_dimension_numbers<[1], [0], [0], [1], [0, 0, 1, 1], [], []>} : vector<512x16xbf16>, vector<16x128xbf16>, vector<512x128xf32> -> vector<512x128xf32>
    %c0_16 = arith.constant 0 : index
    %c0_17 = arith.constant 0 : index
    %17 = vector.load %arg9[%c0_16, %c0_17] : memref<1x128xf32, #tpu.memory_space<vmem>>, vector<1x128xf32>
    %18 = vector.broadcast %17 : vector<1x128xf32> to vector<512x128xf32>
    %19 = arith.addf %16, %18 : vector<512x128xf32>
    %20 = arith.addf %13, %19 : vector<512x128xf32>
    %cst_18 = arith.constant 0.000000e+00 : f32
    %21 = vector.broadcast %cst_18 : f32 to vector<512x128xf32>
    %22 = arith.maximumf %20, %21 : vector<512x128xf32>
    %c0_19 = arith.constant 0 : index
    %c0_20 = arith.constant 0 : index
    %23 = vector.load %arg10[%c0_19, %c0_20] : memref<512x128xf32, #tpu.memory_space<vmem>>, vector<512x128xf32>
    tpu.vector_store %arg10[%c0_19, %c0_20], %22 {strides = array<i32>} : memref<512x128xf32, #tpu.memory_space<vmem>>, vector<512x128xf32>,
    return
  }
  func.func @transform_0(%arg0: i32, %arg1: i32) -> (i32, i32) {
    %c0_i32 = arith.constant 0 : i32
    %c0_i32_0 = arith.constant 0 : i32
    return %arg0, %c0_i32 : i32, i32
  }
  func.func @transform_1(%arg0: i32, %arg1: i32) -> (i32, i32) {
    %c0_i32 = arith.constant 0 : i32
    %c0_i32_0 = arith.constant 0 : i32
    return %arg0, %c0_i32 : i32, i32
  }
  func.func @transform_2(%arg0: i32, %arg1: i32) -> (i32, i32) {
    %c0_i32 = arith.constant 0 : i32
    %c0_i32_0 = arith.constant 0 : i32
    %c0_i32_1 = arith.constant 0 : i32
    return %c0_i32, %c0_i32_0 : i32, i32
  }
  func.func @transform_3(%arg0: i32, %arg1: i32) -> (i32, i32) {
    %c0_i32 = arith.constant 0 : i32
    %c0_i32_0 = arith.constant 0 : i32
    %c0_i32_1 = arith.constant 0 : i32
    return %c0_i32, %c0_i32_0 : i32, i32
  }
  func.func @transform_4(%arg0: i32, %arg1: i32) -> (i32, i32) {
    %c0_i32 = arith.constant 0 : i32
    %c0_i32_0 = arith.constant 0 : i32
    return %c0_i32, %arg1 : i32, i32
  }
  func.func @transform_5(%arg0: i32, %arg1: i32) -> (i32, i32) {
    %c0_i32 = arith.constant 0 : i32
    %c0_i32_0 = arith.constant 0 : i32
    return %c0_i32, %arg1 : i32, i32
  }
  func.func @transform_6(%arg0: i32, %arg1: i32) -> (i32, i32) {
    %c0_i32 = arith.constant 0 : i32
    %c0_i32_0 = arith.constant 0 : i32
    return %c0_i32, %arg1 : i32, i32
  }
  func.func @transform_7(%arg0: i32, %arg1: i32) -> (i32, i32) {
    %c0_i32 = arith.constant 0 : i32
    %c0_i32_0 = arith.constant 0 : i32
    return %c0_i32, %arg1 : i32, i32
  }
  func.func @transform_8(%arg0: i32, %arg1: i32) -> (i32, i32) {
    %c0_i32 = arith.constant 0 : i32
    return %arg0, %arg1 : i32, i32
  }
}

</mosaic_0001>

<llo_original>
// kernel: _lambda_.2
$region0: #{_lambda_.2}
  #allocation0 [shape = 'u32[]', space=smem, size = 0x4, offset = 0x4, fixed_abs, tag = 'smem constant byte address 0x4 - core index']
  #allocation1 [shape = 'u32[144,128]{1,0:T(1,128)}', space=vmem, size = 0x12000, scoped, tag = 'internal scratch']
  %s0 = inlined_call_operand.vmem [shape: bf16[512,16], index: 0, kind: input, shape index: {}]
  %s1 = inlined_call_operand.vmem [shape: bf16[16,32], index: 1, kind: input, shape index: {}]
  %s2 = inlined_call_operand.vmem [shape: f32[1,32], index: 2, kind: input, shape index: {}]
  %s3 = inlined_call_operand.vmem [shape: bf16[512,32], index: 3, kind: output, shape index: {}]
  %s4 = sld [smem:[#allocation0]]
  $region22: #{_lambda_.2} parent=0
    _
  %s6 = ssub.s32 1, %s4
  %s7 = scalar_select 0, %s6, %s4
  // Predicated region
  $region2: #{_lambda_.2} parent=0 // pred_check
    _
  $region3: #{_lambda_.2} parent=0 // pred_check_branch
    %9 = sbr.rel (0) target = $region5
  $region4: #{_lambda_.2} parent=0 // pred_region
    _
  $region5: #{_lambda_.2} parent=0 // pred_fallthru
    _
  // Predicated region
  $region6: #{_lambda_.2} parent=0 // pred_check
    _
  $region7: #{_lambda_.2} parent=0 // pred_check_branch
    %11 = sbr.rel (0) target = $region9
  $region8: #{_lambda_.2} parent=0 // pred_region
    _
  $region9: #{_lambda_.2} parent=0 // pred_fallthru
    _
  // Predicated region
  $region10: #{_lambda_.2} parent=0 // pred_check
    _
  $region11: #{_lambda_.2} parent=0 // pred_check_branch
    %13 = sbr.rel (0) target = $region13
  $region12: #{_lambda_.2} parent=0 // pred_region
    _
  $region13: #{_lambda_.2} parent=0 // pred_fallthru
    _
  %v15 = vld [vmem:[%s0] sm:$0xf]
  %v16 = vld [vmem:[%s0 + $0x4] sm:$0xf]
  %v17 = vld [vmem:[%s0 + $0x8] sm:$0xf]
  %v18 = vld [vmem:[%s0 + $0xc] sm:$0xf]
  %v19 = vld [vmem:[%s0 + $0x10] sm:$0xf]
  %v20 = vld [vmem:[%s0 + $0x14] sm:$0xf]
  %v21 = vld [vmem:[%s0 + $0x18] sm:$0xf]
  %v22 = vld [vmem:[%s0 + $0x1c] sm:$0xf]
  %v23 = vld [vmem:[%s0 + $0x20] sm:$0xf]
  %v24 = vld [vmem:[%s0 + $0x24] sm:$0xf]
  %v25 = vld [vmem:[%s0 + $0x28] sm:$0xf]
  %v26 = vld [vmem:[%s0 + $0x2c] sm:$0xf]
  %v27 = vld [vmem:[%s0 + $0x30] sm:$0xf]
  %v28 = vld [vmem:[%s0 + $0x34] sm:$0xf]
  %v29 = vld [vmem:[%s0 + $0x38] sm:$0xf]
  %v30 = vld [vmem:[%s0 + $0x3c] sm:$0xf]
  %v31 = vld [vmem:[%s0 + $0x40] sm:$0xf]
  %v32 = vld [vmem:[%s0 + $0x44] sm:$0xf]
  %v33 = vld [vmem:[%s0 + $0x48] sm:$0xf]
  %v34 = vld [vmem:[%s0 + $0x4c] sm:$0xf]
  %v35 = vld [vmem:[%s0 + $0x50] sm:$0xf]
  %v36 = vld [vmem:[%s0 + $0x54] sm:$0xf]
  %v37 = vld [vmem:[%s0 + $0x58] sm:$0xf]
  %v38 = vld [vmem:[%s0 + $0x5c] sm:$0xf]
  %v39 = vld [vmem:[%s0 + $0x60] sm:$0xf]
  %v40 = vld [vmem:[%s0 + $0x64] sm:$0xf]
  %v41 = vld [vmem:[%s0 + $0x68] sm:$0xf]
  %v42 = vld [vmem:[%s0 + $0x6c] sm:$0xf]
  %v43 = vld [vmem:[%s0 + $0x70] sm:$0xf]
  %v44 = vld [vmem:[%s0 + $0x74] sm:$0xf]
  %v45 = vld [vmem:[%s0 + $0x78] sm:$0xf]
  %v46 = vld [vmem:[%s0 + $0x7c] sm:$0xf]
  %v47 = vld [vmem:[%s0 + $0x80] sm:$0xf]
  %v48 = vld [vmem:[%s0 + $0x84] sm:$0xf]
  %v49 = vld [vmem:[%s0 + $0x88] sm:$0xf]
  %v50 = vld [vmem:[%s0 + $0x8c] sm:$0xf]
  %v51 = vld [vmem:[%s0 + $0x90] sm:$0xf]
  %v52 = vld [vmem:[%s0 + $0x94] sm:$0xf]
  %v53 = vld [vmem:[%s0 + $0x98] sm:$0xf]
  %v54 = vld [vmem:[%s0 + $0x9c] sm:$0xf]
  %v55 = vld [vmem:[%s0 + $0xa0] sm:$0xf]
  %v56 = vld [vmem:[%s0 + $0xa4] sm:$0xf]
  %v57 = vld [vmem:[%s0 + $0xa8] sm:$0xf]
  %v58 = vld [vmem:[%s0 + $0xac] sm:$0xf]
  %v59 = vld [vmem:[%s0 + $0xb0] sm:$0xf]
  %v60 = vld [vmem:[%s0 + $0xb4] sm:$0xf]
  %v61 = vld [vmem:[%s0 + $0xb8] sm:$0xf]
  %v62 = vld [vmem:[%s0 + $0xbc] sm:$0xf]
  %v63 = vld [vmem:[%s0 + $0xc0] sm:$0xf]
  %v64 = vld [vmem:[%s0 + $0xc4] sm:$0xf]
  %v65 = vld [vmem:[%s0 + $0xc8] sm:$0xf]
  %v66 = vld [vmem:[%s0 + $0xcc] sm:$0xf]
  %v67 = vld [vmem:[%s0 + $0xd0] sm:$0xf]
  %v68 = vld [vmem:[%s0 + $0xd4] sm:$0xf]
  %v69 = vld [vmem:[%s0 + $0xd8] sm:$0xf]
  %v70 = vld [vmem:[%s0 + $0xdc] sm:$0xf]
  %v71 = vld [vmem:[%s0 + $0xe0] sm:$0xf]
  %v72 = vld [vmem:[%s0 + $0xe4] sm:$0xf]
  %v73 = vld [vmem:[%s0 + $0xe8] sm:$0xf]
  %v74 = vld [vmem:[%s0 + $0xec] sm:$0xf]
  %v75 = vld [vmem:[%s0 + $0xf0] sm:$0xf]
  %v76 = vld [vmem:[%s0 + $0xf4] sm:$0xf]
  %v77 = vld [vmem:[%s0 + $0xf8] sm:$0xf]
  %v78 = vld [vmem:[%s0 + $0xfc] sm:$0xf]
  %v79 = vld [vmem:[%s1] sm:$0xf]
  %v80 = vld [vmem:[%s1 + $0x4] sm:$0xf]
  %v81 = vld [vmem:[%s2] sm:$0x1]
  %v83 = vlaneseq
  %v84 = vshrl.u32 %v83, 7
  %v85 = vsub.s32 0, %v84
  %v86 = vrot.slane %v81, %v85
  %v152 = vunpack.c.l.b16 %v15
  %v153 = vunpack.c.l.b16 %v16
  %v154 = vunpack.c.l.b16 %v17
  %v155 = vunpack.c.l.b16 %v18
  %v156 = vunpack.c.l.b16 %v19
  %v157 = vunpack.c.l.b16 %v20
  %v158 = vunpack.c.l.b16 %v21
  %v159 = vunpack.c.l.b16 %v22
  %v160 = vunpack.c.l.b16 %v23
  %v161 = vunpack.c.l.b16 %v24
  %v162 = vunpack.c.l.b16 %v25
  %v163 = vunpack.c.l.b16 %v26
  %v164 = vunpack.c.l.b16 %v27
  %v165 = vunpack.c.l.b16 %v28
  %v166 = vunpack.c.l.b16 %v29
  %v167 = vunpack.c.l.b16 %v30
  %v168 = vunpack.c.l.b16 %v31
  %v169 = vunpack.c.l.b16 %v32
  %v170 = vunpack.c.l.b16 %v33
  %v171 = vunpack.c.l.b16 %v34
  %v172 = vunpack.c.l.b16 %v35
  %v173 = vunpack.c.l.b16 %v36
  %v174 = vunpack.c.l.b16 %v37
  %v175 = vunpack.c.l.b16 %v38
  %v176 = vunpack.c.l.b16 %v39
  %v177 = vunpack.c.l.b16 %v40
  %v178 = vunpack.c.l.b16 %v41
  %v179 = vunpack.c.l.b16 %v42
  %v180 = vunpack.c.l.b16 %v43
  %v181 = vunpack.c.l.b16 %v44
  %v182 = vunpack.c.l.b16 %v45
  %v183 = vunpack.c.l.b16 %v46
  %v184 = vunpack.c.l.b16 %v47
  %v185 = vunpack.c.l.b16 %v48
  %v186 = vunpack.c.l.b16 %v49
  %v187 = vunpack.c.l.b16 %v50
  %v188 = vunpack.c.l.b16 %v51
  %v189 = vunpack.c.l.b16 %v52
  %v190 = vunpack.c.l.b16 %v53
  %v191 = vunpack.c.l.b16 %v54
  %v192 = vunpack.c.l.b16 %v55
  %v193 = vunpack.c.l.b16 %v56
  %v194 = vunpack.c.l.b16 %v57
  %v195 = vunpack.c.l.b16 %v58
  %v196 = vunpack.c.l.b16 %v59
  %v197 = vunpack.c.l.b16 %v60
  %v198 = vunpack.c.l.b16 %v61
  %v199 = vunpack.c.l.b16 %v62
  %v200 = vunpack.c.l.b16 %v63
  %v201 = vunpack.c.l.b16 %v64
  %v202 = vunpack.c.l.b16 %v65
  %v203 = vunpack.c.l.b16 %v66
  %v204 = vunpack.c.l.b16 %v67
  %v205 = vunpack.c.l.b16 %v68
  %v206 = vunpack.c.l.b16 %v69
  %v207 = vunpack.c.l.b16 %v70
  %v208 = vunpack.c.l.b16 %v71
  %v209 = vunpack.c.l.b16 %v72
  %v210 = vunpack.c.l.b16 %v73
  %v211 = vunpack.c.l.b16 %v74
  %v212 = vunpack.c.l.b16 %v75
  %v213 = vunpack.c.l.b16 %v76
  %v214 = vunpack.c.l.b16 %v77
  %v215 = vunpack.c.l.b16 %v78
  %v216 = vpack.c.b16 %v153, %v152
  %v217 = vpack.c.b16 %v155, %v154
  %v218 = vpack.c.b16 %v157, %v156
  %v219 = vpack.c.b16 %v159, %v158
  %v220 = vpack.c.b16 %v161, %v160
  %v221 = vpack.c.b16 %v163, %v162
  %v222 = vpack.c.b16 %v165, %v164
  %v223 = vpack.c.b16 %v167, %v166
  %v224 = vpack.c.b16 %v169, %v168
  %v225 = vpack.c.b16 %v171, %v170
  %v226 = vpack.c.b16 %v173, %v172
  %v227 = vpack.c.b16 %v175, %v174
  %v228 = vpack.c.b16 %v177, %v176
  %v229 = vpack.c.b16 %v179, %v178
  %v230 = vpack.c.b16 %v181, %v180
  %v231 = vpack.c.b16 %v183, %v182
  %v232 = vpack.c.b16 %v185, %v184
  %v233 = vpack.c.b16 %v187, %v186
  %v234 = vpack.c.b16 %v189, %v188
  %v235 = vpack.c.b16 %v191, %v190
  %v236 = vpack.c.b16 %v193, %v192
  %v237 = vpack.c.b16 %v195, %v194
  %v238 = vpack.c.b16 %v197, %v196
  %v239 = vpack.c.b16 %v199, %v198
  %v240 = vpack.c.b16 %v201, %v200
  %v241 = vpack.c.b16 %v203, %v202
  %v242 = vpack.c.b16 %v205, %v204
  %v243 = vpack.c.b16 %v207, %v206
  %v244 = vpack.c.b16 %v209, %v208
  %v245 = vpack.c.b16 %v211, %v210
  %v246 = vpack.c.b16 %v213, %v212
  %v247 = vpack.c.b16 %v215, %v214
  %v250 = vunpack.c.l.b16 %v79
  %v251 = vunpack.c.l.b16 %v80
  %v252 = vpack.c.b16 %v251, %v250
  %vm254 = vcmask 130048
  %v256 = vsel %vm254, %v216, 0
  %v259 = vsel %vm254, %v217, 0
  %v262 = vsel %vm254, %v218, 0
  %v265 = vsel %vm254, %v219, 0
  %v268 = vsel %vm254, %v220, 0
  %v271 = vsel %vm254, %v221, 0
  %v274 = vsel %vm254, %v222, 0
  %v277 = vsel %vm254, %v223, 0
  %v280 = vsel %vm254, %v224, 0
  %v283 = vsel %vm254, %v225, 0
  %v286 = vsel %vm254, %v226, 0
  %v289 = vsel %vm254, %v227, 0
  %v292 = vsel %vm254, %v228, 0
  %v295 = vsel %vm254, %v229, 0
  %v298 = vsel %vm254, %v230, 0
  %v301 = vsel %vm254, %v231, 0
  %v304 = vsel %vm254, %v232, 0
  %v307 = vsel %vm254, %v233, 0
  %v310 = vsel %vm254, %v234, 0
  %v313 = vsel %vm254, %v235, 0
  %v316 = vsel %vm254, %v236, 0
  %v319 = vsel %vm254, %v237, 0
  %v322 = vsel %vm254, %v238, 0
  %v325 = vsel %vm254, %v239, 0
  %v328 = vsel %vm254, %v240, 0
  %v331 = vsel %vm254, %v241, 0
  %v334 = vsel %vm254, %v242, 0
  %v337 = vsel %vm254, %v243, 0
  %v340 = vsel %vm254, %v244, 0
  %v343 = vsel %vm254, %v245, 0
  %v346 = vsel %vm254, %v246, 0
  %v349 = vsel %vm254, %v247, 0
  %351 = vmatprep.subr.bf16.mxu0 0
  %352 = vmatpush1.bf16.msra.mxu0 %v252
  %353 = vmatprep.subr.bf16.mxu0 0
  %354 = vmatpush1.bf16.msra.mxu0 0
  %355 = vmatprep.subr.bf16.mxu0 0
  %356 = vmatpush1.bf16.msra.mxu0 0
  %357 = vmatprep.subr.bf16.mxu0 0
  %358 = vmatpush1.bf16.msra.mxu0 0
  %359 = vmatprep.subr.bf16.mxu0 0
  %360 = vmatpush1.bf16.msra.mxu0 0
  %361 = vmatprep.subr.bf16.mxu0 0
  %362 = vmatpush1.bf16.msra.mxu0 0
  %363 = vmatprep.subr.bf16.mxu0 0
  %364 = vmatpush1.bf16.msra.mxu0 0
  %365 = vmatprep.subr.bf16.mxu0 0
  %366 = vmatpush1.bf16.msra.mxu0 0
  %367 = vmatprep.subr.bf16.mxu0 0
  %368 = vmatpush1.bf16.msra.mxu0 0
  %369 = vmatprep.subr.bf16.mxu0 0
  %370 = vmatpush1.bf16.msra.mxu0 0
  %371 = vmatprep.subr.bf16.mxu0 0
  %372 = vmatpush1.bf16.msra.mxu0 0
  %373 = vmatprep.subr.bf16.mxu0 0
  %374 = vmatpush1.bf16.msra.mxu0 0
  %375 = vmatprep.subr.bf16.mxu0 0
  %376 = vmatpush1.bf16.msra.mxu0 0
  %377 = vmatprep.subr.bf16.mxu0 0
  %378 = vmatpush1.bf16.msra.mxu0 0
  %379 = vmatprep.subr.bf16.mxu0 0
  %380 = vmatpush1.bf16.msra.mxu0 0
  %381 = vmatprep.subr.bf16.mxu0 0
  %382 = vmatpush1.bf16.msra.mxu0 0
  %383 = vmatprep.mubr.bf16.mxu0 0
  %384 = vmatmul.mubr.bf16.gmra.mrb[0].mxu0 %v256
  %v385 = vpop.f32.mrb[0].mxu0
  %v386 = vadd.f32 %v86, %v385
  %v387 = vpop.f32.mrb[0].mxu0
  %v388 = vpop.f32.mrb[0].mxu0
  %v389 = vadd.f32 %v86, %v388
  %v390 = vpop.f32.mrb[0].mxu0
  %391 = vmatprep.mubr.bf16.mxu0 0
  %392 = vmatmul.mubr.bf16.gmra.mrb[0].mxu0 %v259
  %v393 = vpop.f32.mrb[0].mxu0
  %v394 = vadd.f32 %v86, %v393
  %v395 = vpop.f32.mrb[0].mxu0
  %v396 = vpop.f32.mrb[0].mxu0
  %v397 = vadd.f32 %v86, %v396
  %v398 = vpop.f32.mrb[0].mxu0
  %399 = vmatprep.mubr.bf16.mxu0 0
  %400 = vmatmul.mubr.bf16.gmra.mrb[0].mxu0 %v262
  %v401 = vpop.f32.mrb[0].mxu0
  %v402 = vadd.f32 %v86, %v401
  %v403 = vpop.f32.mrb[0].mxu0
  %v404 = vpop.f32.mrb[0].mxu0
  %v405 = vadd.f32 %v86, %v404
  %v406 = vpop.f32.mrb[0].mxu0
  %407 = vmatprep.mubr.bf16.mxu0 0
  %408 = vmatmul.mubr.bf16.gmra.mrb[0].mxu0 %v265
  %v409 = vpop.f32.mrb[0].mxu0
  %v410 = vadd.f32 %v86, %v409
  %v411 = vpop.f32.mrb[0].mxu0
  %v412 = vpop.f32.mrb[0].mxu0
  %v413 = vadd.f32 %v86, %v412
  %v414 = vpop.f32.mrb[0].mxu0
  %415 = vmatprep.mubr.bf16.mxu0 0
  %416 = vmatmul.mubr.bf16.gmra.mrb[0].mxu0 %v268
  %v417 = vpop.f32.mrb[0].mxu0
  %v418 = vadd.f32 %v86, %v417
  %v419 = vpop.f32.mrb[0].mxu0
  %v420 = vpop.f32.mrb[0].mxu0
  %v421 = vadd.f32 %v86, %v420
  %v422 = vpop.f32.mrb[0].mxu0
  %423 = vmatprep.mubr.bf16.mxu0 0
  %424 = vmatmul.mubr.bf16.gmra.mrb[0].mxu0 %v271
  %v425 = vpop.f32.mrb[0].mxu0
  %v426 = vadd.f32 %v86, %v425
  %v427 = vpop.f32.mrb[0].mxu0
  %v428 = vpop.f32.mrb[0].mxu0
  %v429 = vadd.f32 %v86, %v428
  %v430 = vpop.f32.mrb[0].mxu0
  %431 = vmatprep.mubr.bf16.mxu0 0
  %432 = vmatmul.mubr.bf16.gmra.mrb[0].mxu0 %v274
  %v433 = vpop.f32.mrb[0].mxu0
  %v434 = vadd.f32 %v86, %v433
  %v435 = vpop.f32.mrb[0].mxu0
  %v436 = vpop.f32.mrb[0].mxu0
  %v437 = vadd.f32 %v86, %v436
  %v438 = vpop.f32.mrb[0].mxu0
  %439 = vmatprep.mubr.bf16.mxu0 0
  %440 = vmatmul.mubr.bf16.gmra.mrb[0].mxu0 %v277
  %v441 = vpop.f32.mrb[0].mxu0
  %v442 = vadd.f32 %v86, %v441
  %v443 = vpop.f32.mrb[0].mxu0
  %v444 = vpop.f32.mrb[0].mxu0
  %v445 = vadd.f32 %v86, %v444
  %v446 = vpop.f32.mrb[0].mxu0
  %447 = vmatprep.mubr.bf16.mxu0 0
  %448 = vmatmul.mubr.bf16.gmra.mrb[0].mxu0 %v280
  %v449 = vpop.f32.mrb[0].mxu0
  %v450 = vadd.f32 %v86, %v449
  %v451 = vpop.f32.mrb[0].mxu0
  %v452 = vpop.f32.mrb[0].mxu0
  %v453 = vadd.f32 %v86, %v452
  %v454 = vpop.f32.mrb[0].mxu0
  %455 = vmatprep.mubr.bf16.mxu0 0
  %456 = vmatmul.mubr.bf16.gmra.mrb[0].mxu0 %v283
  %v457 = vpop.f32.mrb[0].mxu0
  %v458 = vadd.f32 %v86, %v457
  %v459 = vpop.f32.mrb[0].mxu0
  %v460 = vpop.f32.mrb[0].mxu0
  %v461 = vadd.f32 %v86, %v460
  %v462 = vpop.f32.mrb[0].mxu0
  %463 = vmatprep.mubr.bf16.mxu0 0
  %464 = vmatmul.mubr.bf16.gmra.mrb[0].mxu0 %v286
  %v465 = vpop.f32.mrb[0].mxu0
  %v466 = vadd.f32 %v86, %v465
  %v467 = vpop.f32.mrb[0].mxu0
  %v468 = vpop.f32.mrb[0].mxu0
  %v469 = vadd.f32 %v86, %v468
  %v470 = vpop.f32.mrb[0].mxu0
  %471 = vmatprep.mubr.bf16.mxu0 0
  %472 = vmatmul.mubr.bf16.gmra.mrb[0].mxu0 %v289
  %v473 = vpop.f32.mrb[0].mxu0
  %v474 = vadd.f32 %v86, %v473
  %v475 = vpop.f32.mrb[0].mxu0
  %v476 = vpop.f32.mrb[0].mxu0
  %v477 = vadd.f32 %v86, %v476
  %v478 = vpop.f32.mrb[0].mxu0
  %479 = vmatprep.mubr.bf16.mxu0 0
  %480 = vmatmul.mubr.bf16.gmra.mrb[0].mxu0 %v292
  %v481 = vpop.f32.mrb[0].mxu0
  %v482 = vadd.f32 %v86, %v481
  %v483 = vpop.f32.mrb[0].mxu0
  %v484 = vpop.f32.mrb[0].mxu0
  %v485 = vadd.f32 %v86, %v484
  %v486 = vpop.f32.mrb[0].mxu0
  %487 = vmatprep.mubr.bf16.mxu0 0
  %488 = vmatmul.mubr.bf16.gmra.mrb[0].mxu0 %v295
  %v489 = vpop.f32.mrb[0].mxu0
  %v490 = vadd.f32 %v86, %v489
  %v491 = vpop.f32.mrb[0].mxu0
  %v492 = vpop.f32.mrb[0].mxu0
  %v493 = vadd.f32 %v86, %v492
  %v494 = vpop.f32.mrb[0].mxu0
  %495 = vmatprep.mubr.bf16.mxu0 0
  %496 = vmatmul.mubr.bf16.gmra.mrb[0].mxu0 %v298
  %v497 = vpop.f32.mrb[0].mxu0
  %v498 = vadd.f32 %v86, %v497
  %v499 = vpop.f32.mrb[0].mxu0
  %v500 = vpop.f32.mrb[0].mxu0
  %v501 = vadd.f32 %v86, %v500
  %v502 = vpop.f32.mrb[0].mxu0
  %503 = vmatprep.mubr.bf16.mxu0 0
  %504 = vmatmul.mubr.bf16.gmra.mrb[0].mxu0 %v301
  %v505 = vpop.f32.mrb[0].mxu0
  %v506 = vadd.f32 %v86, %v505
  %v507 = vpop.f32.mrb[0].mxu0
  %v508 = vpop.f32.mrb[0].mxu0
  %v509 = vadd.f32 %v86, %v508
  %v510 = vpop.f32.mrb[0].mxu0
  %511 = vmatprep.mubr.bf16.mxu0 0
  %512 = vmatmul.mubr.bf16.gmra.mrb[0].mxu0 %v304
  %v513 = vpop.f32.mrb[0].mxu0
  %v514 = vadd.f32 %v86, %v513
  %v515 = vpop.f32.mrb[0].mxu0
  %v516 = vpop.f32.mrb[0].mxu0
  %v517 = vadd.f32 %v86, %v516
  %v518 = vpop.f32.mrb[0].mxu0
  %519 = vmatprep.mubr.bf16.mxu0 0
  %520 = vmatmul.mubr.bf16.gmra.mrb[0].mxu0 %v307
  %v521 = vpop.f32.mrb[0].mxu0
  %v522 = vadd.f32 %v86, %v521
  %v523 = vpop.f32.mrb[0].mxu0
  %v524 = vpop.f32.mrb[0].mxu0
  %v525 = vadd.f32 %v86, %v524
  %v526 = vpop.f32.mrb[0].mxu0
  %527 = vmatprep.mubr.bf16.mxu0 0
  %528 = vmatmul.mubr.bf16.gmra.mrb[0].mxu0 %v310
  %v529 = vpop.f32.mrb[0].mxu0
  %v530 = vadd.f32 %v86, %v529
  %v531 = vpop.f32.mrb[0].mxu0
  %v532 = vpop.f32.mrb[0].mxu0
  %v533 = vadd.f32 %v86, %v532
  %v534 = vpop.f32.mrb[0].mxu0
  %535 = vmatprep.mubr.bf16.mxu0 0
  %536 = vmatmul.mubr.bf16.gmra.mrb[0].mxu0 %v313
  %v537 = vpop.f32.mrb[0].mxu0
  %v538 = vadd.f32 %v86, %v537
  %v539 = vpop.f32.mrb[0].mxu0
  %v540 = vpop.f32.mrb[0].mxu0
  %v541 = vadd.f32 %v86, %v540
  %v542 = vpop.f32.mrb[0].mxu0
  %543 = vmatprep.mubr.bf16.mxu0 0
  %544 = vmatmul.mubr.bf16.gmra.mrb[0].mxu0 %v316
  %v545 = vpop.f32.mrb[0].mxu0
  %v546 = vadd.f32 %v86, %v545
  %v547 = vpop.f32.mrb[0].mxu0
  %v548 = vpop.f32.mrb[0].mxu0
  %v549 = vadd.f32 %v86, %v548
  %v550 = vpop.f32.mrb[0].mxu0
  %551 = vmatprep.mubr.bf16.mxu0 0
  %552 = vmatmul.mubr.bf16.gmra.mrb[0].mxu0 %v319
  %v553 = vpop.f32.mrb[0].mxu0
  %v554 = vadd.f32 %v86, %v553
  %v555 = vpop.f32.mrb[0].mxu0
  %v556 = vpop.f32.mrb[0].mxu0
  %v557 = vadd.f32 %v86, %v556
  %v558 = vpop.f32.mrb[0].mxu0
  %559 = vmatprep.mubr.bf16.mxu0 0
  %560 = vmatmul.mubr.bf16.gmra.mrb[0].mxu0 %v322
  %v561 = vpop.f32.mrb[0].mxu0
  %v562 = vadd.f32 %v86, %v561
  %v563 = vpop.f32.mrb[0].mxu0
  %v564 = vpop.f32.mrb[0].mxu0
  %v565 = vadd.f32 %v86, %v564
  %v566 = vpop.f32.mrb[0].mxu0
  %567 = vmatprep.mubr.bf16.mxu0 0
  %568 = vmatmul.mubr.bf16.gmra.mrb[0].mxu0 %v325
  %v569 = vpop.f32.mrb[0].mxu0
  %v570 = vadd.f32 %v86, %v569
  %v571 = vpop.f32.mrb[0].mxu0
  %v572 = vpop.f32.mrb[0].mxu0
  %v573 = vadd.f32 %v86, %v572
  %v574 = vpop.f32.mrb[0].mxu0
  %575 = vmatprep.mubr.bf16.mxu0 0
  %576 = vmatmul.mubr.bf16.gmra.mrb[0].mxu0 %v328
  %v577 = vpop.f32.mrb[0].mxu0
  %v578 = vadd.f32 %v86, %v577
  %v579 = vpop.f32.mrb[0].mxu0
  %v580 = vpop.f32.mrb[0].mxu0
  %v581 = vadd.f32 %v86, %v580
  %v582 = vpop.f32.mrb[0].mxu0
  %583 = vmatprep.mubr.bf16.mxu0 0
  %584 = vmatmul.mubr.bf16.gmra.mrb[0].mxu0 %v331
  %v585 = vpop.f32.mrb[0].mxu0
  %v586 = vadd.f32 %v86, %v585
  %v587 = vpop.f32.mrb[0].mxu0
  %v588 = vpop.f32.mrb[0].mxu0
  %v589 = vadd.f32 %v86, %v588
  %v590 = vpop.f32.mrb[0].mxu0
  %591 = vmatprep.mubr.bf16.mxu0 0
  %592 = vmatmul.mubr.bf16.gmra.mrb[0].mxu0 %v334
  %v593 = vpop.f32.mrb[0].mxu0
  %v594 = vadd.f32 %v86, %v593
  %v595 = vpop.f32.mrb[0].mxu0
  %v596 = vpop.f32.mrb[0].mxu0
  %v597 = vadd.f32 %v86, %v596
  %v598 = vpop.f32.mrb[0].mxu0
  %599 = vmatprep.mubr.bf16.mxu0 0
  %600 = vmatmul.mubr.bf16.gmra.mrb[0].mxu0 %v337
  %v601 = vpop.f32.mrb[0].mxu0
  %v602 = vadd.f32 %v86, %v601
  %v603 = vpop.f32.mrb[0].mxu0
  %v604 = vpop.f32.mrb[0].mxu0
  %v605 = vadd.f32 %v86, %v604
  %v606 = vpop.f32.mrb[0].mxu0
  %607 = vmatprep.mubr.bf16.mxu0 0
  %608 = vmatmul.mubr.bf16.gmra.mrb[0].mxu0 %v340
  %v609 = vpop.f32.mrb[0].mxu0
  %v610 = vadd.f32 %v86, %v609
  %v611 = vpop.f32.mrb[0].mxu0
  %v612 = vpop.f32.mrb[0].mxu0
  %v613 = vadd.f32 %v86, %v612
  %v614 = vpop.f32.mrb[0].mxu0
  %615 = vmatprep.mubr.bf16.mxu0 0
  %616 = vmatmul.mubr.bf16.gmra.mrb[0].mxu0 %v343
  %v617 = vpop.f32.mrb[0].mxu0
  %v618 = vadd.f32 %v86, %v617
  %v619 = vpop.f32.mrb[0].mxu0
  %v620 = vpop.f32.mrb[0].mxu0
  %v621 = vadd.f32 %v86, %v620
  %v622 = vpop.f32.mrb[0].mxu0
  %623 = vmatprep.mubr.bf16.mxu0 0
  %624 = vmatmul.mubr.bf16.gmra.mrb[0].mxu0 %v346
  %v625 = vpop.f32.mrb[0].mxu0
  %v626 = vadd.f32 %v86, %v625
  %v627 = vpop.f32.mrb[0].mxu0
  %v628 = vpop.f32.mrb[0].mxu0
  %v629 = vadd.f32 %v86, %v628
  %v630 = vpop.f32.mrb[0].mxu0
  %631 = vmatprep.mubr.bf16.mxu0 0
  %632 = vmatmul.mubr.bf16.gmra.mrb[0].mxu0 %v349
  %v633 = vpop.f32.mrb[0].mxu0
  %v634 = vadd.f32 %v86, %v633
  %v635 = vpop.f32.mrb[0].mxu0
  %v636 = vpop.f32.mrb[0].mxu0
  %v637 = vadd.f32 %v86, %v636
  %v638 = vpop.f32.mrb[0].mxu0
  %639 = vdwg.mxu0
  %v640 = vmax.f32 %v386, 0.0
  %v641 = vmax.f32 %v389, 0.0
  %v642 = vmax.f32 %v394, 0.0
  %v643 = vmax.f32 %v397, 0.0
  %v644 = vmax.f32 %v402, 0.0
  %v645 = vmax.f32 %v405, 0.0
  %v646 = vmax.f32 %v410, 0.0
  %v647 = vmax.f32 %v413, 0.0
  %v648 = vmax.f32 %v418, 0.0
  %v649 = vmax.f32 %v421, 0.0
  %v650 = vmax.f32 %v426, 0.0
  %v651 = vmax.f32 %v429, 0.0
  %v652 = vmax.f32 %v434, 0.0
  %v653 = vmax.f32 %v437, 0.0
  %v654 = vmax.f32 %v442, 0.0
  %v655 = vmax.f32 %v445, 0.0
  %v656 = vmax.f32 %v450, 0.0
  %v657 = vmax.f32 %v453, 0.0
  %v658 = vmax.f32 %v458, 0.0
  %v659 = vmax.f32 %v461, 0.0
  %v660 = vmax.f32 %v466, 0.0
  %v661 = vmax.f32 %v469, 0.0
  %v662 = vmax.f32 %v474, 0.0
  %v663 = vmax.f32 %v477, 0.0
  %v664 = vmax.f32 %v482, 0.0
  %v665 = vmax.f32 %v485, 0.0
  %v666 = vmax.f32 %v490, 0.0
  %v667 = vmax.f32 %v493, 0.0
  %v668 = vmax.f32 %v498, 0.0
  %v669 = vmax.f32 %v501, 0.0
  %v670 = vmax.f32 %v506, 0.0
  %v671 = vmax.f32 %v509, 0.0
  %v672 = vmax.f32 %v514, 0.0
  %v673 = vmax.f32 %v517, 0.0
  %v674 = vmax.f32 %v522, 0.0
  %v675 = vmax.f32 %v525, 0.0
  %v676 = vmax.f32 %v530, 0.0
  %v677 = vmax.f32 %v533, 0.0
  %v678 = vmax.f32 %v538, 0.0
  %v679 = vmax.f32 %v541, 0.0
  %v680 = vmax.f32 %v546, 0.0
  %v681 = vmax.f32 %v549, 0.0
  %v682 = vmax.f32 %v554, 0.0
  %v683 = vmax.f32 %v557, 0.0
  %v684 = vmax.f32 %v562, 0.0
  %v685 = vmax.f32 %v565, 0.0
  %v686 = vmax.f32 %v570, 0.0
  %v687 = vmax.f32 %v573, 0.0
  %v688 = vmax.f32 %v578, 0.0
  %v689 = vmax.f32 %v581, 0.0
  %v690 = vmax.f32 %v586, 0.0
  %v691 = vmax.f32 %v589, 0.0
  %v692 = vmax.f32 %v594, 0.0
  %v693 = vmax.f32 %v597, 0.0
  %v694 = vmax.f32 %v602, 0.0
  %v695 = vmax.f32 %v605, 0.0
  %v696 = vmax.f32 %v610, 0.0
  %v697 = vmax.f32 %v613, 0.0
  %v698 = vmax.f32 %v618, 0.0
  %v699 = vmax.f32 %v621, 0.0
  %v700 = vmax.f32 %v626, 0.0
  %v701 = vmax.f32 %v629, 0.0
  %v702 = vmax.f32 %v634, 0.0
  %v703 = vmax.f32 %v637, 0.0
  %v704 = vpack.c.bf16 %v641, %v640
  %v705 = vpack.c.bf16 %v643, %v642
  %v706 = vpack.c.bf16 %v645, %v644
  %v707 = vpack.c.bf16 %v647, %v646
  %v708 = vpack.c.bf16 %v649, %v648
  %v709 = vpack.c.bf16 %v651, %v650
  %v710 = vpack.c.bf16 %v653, %v652
  %v711 = vpack.c.bf16 %v655, %v654
  %v712 = vpack.c.bf16 %v657, %v656
  %v713 = vpack.c.bf16 %v659, %v658
  %v714 = vpack.c.bf16 %v661, %v660
  %v715 = vpack.c.bf16 %v663, %v662
  %v716 = vpack.c.bf16 %v665, %v664
  %v717 = vpack.c.bf16 %v667, %v666
  %v718 = vpack.c.bf16 %v669, %v668
  %v719 = vpack.c.bf16 %v671, %v670
  %v720 = vpack.c.bf16 %v673, %v672
  %v721 = vpack.c.bf16 %v675, %v674
  %v722 = vpack.c.bf16 %v677, %v676
  %v723 = vpack.c.bf16 %v679, %v678
  %v724 = vpack.c.bf16 %v681, %v680
  %v725 = vpack.c.bf16 %v683, %v682
  %v726 = vpack.c.bf16 %v685, %v684
  %v727 = vpack.c.bf16 %v687, %v686
  %v728 = vpack.c.bf16 %v689, %v688
  %v729 = vpack.c.bf16 %v691, %v690
  %v730 = vpack.c.bf16 %v693, %v692
  %v731 = vpack.c.bf16 %v695, %v694
  %v732 = vpack.c.bf16 %v697, %v696
  %v733 = vpack.c.bf16 %v699, %v698
  %v734 = vpack.c.bf16 %v701, %v700
  %v735 = vpack.c.bf16 %v703, %v702
  %v768 = vunpack.c.l.b16 %v704
  %v769 = vunpack.c.h.b16 %v704
  %v770 = vunpack.c.l.b16 %v705
  %v771 = vunpack.c.h.b16 %v705
  %v772 = vunpack.c.l.b16 %v706
  %v773 = vunpack.c.h.b16 %v706
  %v774 = vunpack.c.l.b16 %v707
  %v775 = vunpack.c.h.b16 %v707
  %v776 = vunpack.c.l.b16 %v708
  %v777 = vunpack.c.h.b16 %v708
  %v778 = vunpack.c.l.b16 %v709
  %v779 = vunpack.c.h.b16 %v709
  %v780 = vunpack.c.l.b16 %v710
  %v781 = vunpack.c.h.b16 %v710
  %v782 = vunpack.c.l.b16 %v711
  %v783 = vunpack.c.h.b16 %v711
  %v784 = vunpack.c.l.b16 %v712
  %v785 = vunpack.c.h.b16 %v712
  %v786 = vunpack.c.l.b16 %v713
  %v787 = vunpack.c.h.b16 %v713
  %v788 = vunpack.c.l.b16 %v714
  %v789 = vunpack.c.h.b16 %v714
  %v790 = vunpack.c.l.b16 %v715
  %v791 = vunpack.c.h.b16 %v715
  %v792 = vunpack.c.l.b16 %v716
  %v793 = vunpack.c.h.b16 %v716
  %v794 = vunpack.c.l.b16 %v717
  %v795 = vunpack.c.h.b16 %v717
  %v796 = vunpack.c.l.b16 %v718
  %v797 = vunpack.c.h.b16 %v718
  %v798 = vunpack.c.l.b16 %v719
  %v799 = vunpack.c.h.b16 %v719
  %v800 = vunpack.c.l.b16 %v720
  %v801 = vunpack.c.h.b16 %v720
  %v802 = vunpack.c.l.b16 %v721
  %v803 = vunpack.c.h.b16 %v721
  %v804 = vunpack.c.l.b16 %v722
  %v805 = vunpack.c.h.b16 %v722
  %v806 = vunpack.c.l.b16 %v723
  %v807 = vunpack.c.h.b16 %v723
  %v808 = vunpack.c.l.b16 %v724
  %v809 = vunpack.c.h.b16 %v724
  %v810 = vunpack.c.l.b16 %v725
  %v811 = vunpack.c.h.b16 %v725
  %v812 = vunpack.c.l.b16 %v726
  %v813 = vunpack.c.h.b16 %v726
  %v814 = vunpack.c.l.b16 %v727
  %v815 = vunpack.c.h.b16 %v727
  %v816 = vunpack.c.l.b16 %v728
  %v817 = vunpack.c.h.b16 %v728
  %v818 = vunpack.c.l.b16 %v729
  %v819 = vunpack.c.h.b16 %v729
  %v820 = vunpack.c.l.b16 %v730
  %v821 = vunpack.c.h.b16 %v730
  %v822 = vunpack.c.l.b16 %v731
  %v823 = vunpack.c.h.b16 %v731
  %v824 = vunpack.c.l.b16 %v732
  %v825 = vunpack.c.h.b16 %v732
  %v826 = vunpack.c.l.b16 %v733
  %v827 = vunpack.c.h.b16 %v733
  %v828 = vunpack.c.l.b16 %v734
  %v829 = vunpack.c.h.b16 %v734
  %v830 = vunpack.c.l.b16 %v735
  %v831 = vunpack.c.h.b16 %v735
  %v832 = vpack.c.b16 %v768, %v768
  %v833 = vpack.c.b16 %v769, %v769
  %v834 = vpack.c.b16 %v770, %v770
  %v835 = vpack.c.b16 %v771, %v771
  %v836 = vpack.c.b16 %v772, %v772
  %v837 = vpack.c.b16 %v773, %v773
  %v838 = vpack.c.b16 %v774, %v774
  %v839 = vpack.c.b16 %v775, %v775
  %v840 = vpack.c.b16 %v776, %v776
  %v841 = vpack.c.b16 %v777, %v777
  %v842 = vpack.c.b16 %v778, %v778
  %v843 = vpack.c.b16 %v779, %v779
  %v844 = vpack.c.b16 %v780, %v780
  %v845 = vpack.c.b16 %v781, %v781
  %v846 = vpack.c.b16 %v782, %v782
  %v847 = vpack.c.b16 %v783, %v783
  %v848 = vpack.c.b16 %v784, %v784
  %v849 = vpack.c.b16 %v785, %v785
  %v850 = vpack.c.b16 %v786, %v786
  %v851 = vpack.c.b16 %v787, %v787
  %v852 = vpack.c.b16 %v788, %v788
  %v853 = vpack.c.b16 %v789, %v789
  %v854 = vpack.c.b16 %v790, %v790
  %v855 = vpack.c.b16 %v791, %v791
  %v856 = vpack.c.b16 %v792, %v792
  %v857 = vpack.c.b16 %v793, %v793
  %v858 = vpack.c.b16 %v794, %v794
  %v859 = vpack.c.b16 %v795, %v795
  %v860 = vpack.c.b16 %v796, %v796
  %v861 = vpack.c.b16 %v797, %v797
  %v862 = vpack.c.b16 %v798, %v798
  %v863 = vpack.c.b16 %v799, %v799
  %v864 = vpack.c.b16 %v800, %v800
  %v865 = vpack.c.b16 %v801, %v801
  %v866 = vpack.c.b16 %v802, %v802
  %v867 = vpack.c.b16 %v803, %v803
  %v868 = vpack.c.b16 %v804, %v804
  %v869 = vpack.c.b16 %v805, %v805
  %v870 = vpack.c.b16 %v806, %v806
  %v871 = vpack.c.b16 %v807, %v807
  %v872 = vpack.c.b16 %v808, %v808
  %v873 = vpack.c.b16 %v809, %v809
  %v874 = vpack.c.b16 %v810, %v810
  %v875 = vpack.c.b16 %v811, %v811
  %v876 = vpack.c.b16 %v812, %v812
  %v877 = vpack.c.b16 %v813, %v813
  %v878 = vpack.c.b16 %v814, %v814
  %v879 = vpack.c.b16 %v815, %v815
  %v880 = vpack.c.b16 %v816, %v816
  %v881 = vpack.c.b16 %v817, %v817
  %v882 = vpack.c.b16 %v818, %v818
  %v883 = vpack.c.b16 %v819, %v819
  %v884 = vpack.c.b16 %v820, %v820
  %v885 = vpack.c.b16 %v821, %v821
  %v886 = vpack.c.b16 %v822, %v822
  %v887 = vpack.c.b16 %v823, %v823
  %v888 = vpack.c.b16 %v824, %v824
  %v889 = vpack.c.b16 %v825, %v825
  %v890 = vpack.c.b16 %v826, %v826
  %v891 = vpack.c.b16 %v827, %v827
  %v892 = vpack.c.b16 %v828, %v828
  %v893 = vpack.c.b16 %v829, %v829
  %v894 = vpack.c.b16 %v830, %v830
  %v895 = vpack.c.b16 %v831, %v831
  %vm960 = vcmask 257024
  %961 = vst.msk [vmem:[%s3] sm:$0xf] %vm960, %v832
  %962 = vst.msk [vmem:[%s3 + $0x4] sm:$0xf] %vm960, %v833
  %963 = vst.msk [vmem:[%s3 + $0x8] sm:$0xf] %vm960, %v834
  %964 = vst.msk [vmem:[%s3 + $0xc] sm:$0xf] %vm960, %v835
  %965 = vst.msk [vmem:[%s3 + $0x10] sm:$0xf] %vm960, %v836
  %966 = vst.msk [vmem:[%s3 + $0x14] sm:$0xf] %vm960, %v837
  %967 = vst.msk [vmem:[%s3 + $0x18] sm:$0xf] %vm960, %v838
  %968 = vst.msk [vmem:[%s3 + $0x1c] sm:$0xf] %vm960, %v839
  %969 = vst.msk [vmem:[%s3 + $0x20] sm:$0xf] %vm960, %v840
  %970 = vst.msk [vmem:[%s3 + $0x24] sm:$0xf] %vm960, %v841
  %971 = vst.msk [vmem:[%s3 + $0x28] sm:$0xf] %vm960, %v842
  %972 = vst.msk [vmem:[%s3 + $0x2c] sm:$0xf] %vm960, %v843
  %973 = vst.msk [vmem:[%s3 + $0x30] sm:$0xf] %vm960, %v844
  %974 = vst.msk [vmem:[%s3 + $0x34] sm:$0xf] %vm960, %v845
  %975 = vst.msk [vmem:[%s3 + $0x38] sm:$0xf] %vm960, %v846
  %976 = vst.msk [vmem:[%s3 + $0x3c] sm:$0xf] %vm960, %v847
  %977 = vst.msk [vmem:[%s3 + $0x40] sm:$0xf] %vm960, %v848
  %978 = vst.msk [vmem:[%s3 + $0x44] sm:$0xf] %vm960, %v849
  %979 = vst.msk [vmem:[%s3 + $0x48] sm:$0xf] %vm960, %v850
  %980 = vst.msk [vmem:[%s3 + $0x4c] sm:$0xf] %vm960, %v851
  %981 = vst.msk [vmem:[%s3 + $0x50] sm:$0xf] %vm960, %v852
  %982 = vst.msk [vmem:[%s3 + $0x54] sm:$0xf] %vm960, %v853
  %983 = vst.msk [vmem:[%s3 + $0x58] sm:$0xf] %vm960, %v854
  %984 = vst.msk [vmem:[%s3 + $0x5c] sm:$0xf] %vm960, %v855
  %985 = vst.msk [vmem:[%s3 + $0x60] sm:$0xf] %vm960, %v856
  %986 = vst.msk [vmem:[%s3 + $0x64] sm:$0xf] %vm960, %v857
  %987 = vst.msk [vmem:[%s3 + $0x68] sm:$0xf] %vm960, %v858
  %988 = vst.msk [vmem:[%s3 + $0x6c] sm:$0xf] %vm960, %v859
  %989 = vst.msk [vmem:[%s3 + $0x70] sm:$0xf] %vm960, %v860
  %990 = vst.msk [vmem:[%s3 + $0x74] sm:$0xf] %vm960, %v861
  %991 = vst.msk [vmem:[%s3 + $0x78] sm:$0xf] %vm960, %v862
  %992 = vst.msk [vmem:[%s3 + $0x7c] sm:$0xf] %vm960, %v863
  %993 = vst.msk [vmem:[%s3 + $0x80] sm:$0xf] %vm960, %v864
  %994 = vst.msk [vmem:[%s3 + $0x84] sm:$0xf] %vm960, %v865
  %995 = vst.msk [vmem:[%s3 + $0x88] sm:$0xf] %vm960, %v866
  %996 = vst.msk [vmem:[%s3 + $0x8c] sm:$0xf] %vm960, %v867
  %997 = vst.msk [vmem:[%s3 + $0x90] sm:$0xf] %vm960, %v868
  %998 = vst.msk [vmem:[%s3 + $0x94] sm:$0xf] %vm960, %v869
  %999 = vst.msk [vmem:[%s3 + $0x98] sm:$0xf] %vm960, %v870
  %1000 = vst.msk [vmem:[%s3 + $0x9c] sm:$0xf] %vm960, %v871
  %1001 = vst.msk [vmem:[%s3 + $0xa0] sm:$0xf] %vm960, %v872
  %1002 = vst.msk [vmem:[%s3 + $0xa4] sm:$0xf] %vm960, %v873
  %1003 = vst.msk [vmem:[%s3 + $0xa8] sm:$0xf] %vm960, %v874
  %1004 = vst.msk [vmem:[%s3 + $0xac] sm:$0xf] %vm960, %v875
  %1005 = vst.msk [vmem:[%s3 + $0xb0] sm:$0xf] %vm960, %v876
  %1006 = vst.msk [vmem:[%s3 + $0xb4] sm:$0xf] %vm960, %v877
  %1007 = vst.msk [vmem:[%s3 + $0xb8] sm:$0xf] %vm960, %v878
  %1008 = vst.msk [vmem:[%s3 + $0xbc] sm:$0xf] %vm960, %v879
  %1009 = vst.msk [vmem:[%s3 + $0xc0] sm:$0xf] %vm960, %v880
  %1010 = vst.msk [vmem:[%s3 + $0xc4] sm:$0xf] %vm960, %v881
  %1011 = vst.msk [vmem:[%s3 + $0xc8] sm:$0xf] %vm960, %v882
  %1012 = vst.msk [vmem:[%s3 + $0xcc] sm:$0xf] %vm960, %v883
  %1013 = vst.msk [vmem:[%s3 + $0xd0] sm:$0xf] %vm960, %v884
  %1014 = vst.msk [vmem:[%s3 + $0xd4] sm:$0xf] %vm960, %v885
  %1015 = vst.msk [vmem:[%s3 + $0xd8] sm:$0xf] %vm960, %v886
  %1016 = vst.msk [vmem:[%s3 + $0xdc] sm:$0xf] %vm960, %v887
  %1017 = vst.msk [vmem:[%s3 + $0xe0] sm:$0xf] %vm960, %v888
  %1018 = vst.msk [vmem:[%s3 + $0xe4] sm:$0xf] %vm960, %v889
  %1019 = vst.msk [vmem:[%s3 + $0xe8] sm:$0xf] %vm960, %v890
  %1020 = vst.msk [vmem:[%s3 + $0xec] sm:$0xf] %vm960, %v891
  %1021 = vst.msk [vmem:[%s3 + $0xf0] sm:$0xf] %vm960, %v892
  %1022 = vst.msk [vmem:[%s3 + $0xf4] sm:$0xf] %vm960, %v893
  %1023 = vst.msk [vmem:[%s3 + $0xf8] sm:$0xf] %vm960, %v894
  %1024 = vst.msk [vmem:[%s3 + $0xfc] sm:$0xf] %vm960, %v895
  // Predicated region
  $region14: #{_lambda_.2} parent=0 // pred_check
    _
  $region15: #{_lambda_.2} parent=0 // pred_check_branch
    %1026 = sbr.rel (0) target = $region17
  $region16: #{_lambda_.2} parent=0 // pred_region
    _
  $region17: #{_lambda_.2} parent=0 // pred_fallthru
    _
  // Predicated region
  $region18: #{_lambda_.2} parent=0 // pred_check
    _
  $region19: #{_lambda_.2} parent=0 // pred_check_branch
    %1028 = sbr.rel (0) target = $region21
  $region20: #{_lambda_.2} parent=0 // pred_region
    _
  $region21: #{_lambda_.2} parent=0 // pred_fallthru
    _

// kernel: _lambda_.3
$region0: #{_lambda_.3}
  #allocation0 [shape = 'u32[]', space=smem, size = 0x4, offset = 0x4, fixed_abs, tag = 'smem constant byte address 0x4 - core index']
  #allocation1 [shape = 'u32[144,128]{1,0:T(1,128)}', space=vmem, size = 0x12000, scoped, tag = 'internal scratch']
  %s0 = inlined_call_operand.vmem [shape: bf16[512,288], index: 0, kind: input, shape index: {}]
  %s1 = inlined_call_operand.vmem [shape: bf16[512,16], index: 1, kind: input, shape index: {}]
  %s2 = inlined_call_operand.vmem [shape: bf16[288,32], index: 2, kind: input, shape index: {}]
  %s3 = inlined_call_operand.vmem [shape: f32[1,32], index: 3, kind: input, shape index: {}]
  %s4 = inlined_call_operand.vmem [shape: bf16[32,128], index: 4, kind: input, shape index: {}]
  %s5 = inlined_call_operand.vmem [shape: f32[1,128], index: 5, kind: input, shape index: {}]
  %s6 = inlined_call_operand.vmem [shape: bf16[16,128], index: 6, kind: input, shape index: {}]
  %s7 = inlined_call_operand.vmem [shape: f32[1,128], index: 7, kind: input, shape index: {}]
  %s8 = inlined_call_operand.hbm [shape: f32[512,128], index: 8, kind: output, shape index: {}]
  %s9 = sld [smem:[#allocation0]]
  $region42: #{_lambda_.3} parent=0
    _
  %s11 = ssub.s32 1, %s9
  %s12 = scalar_select 0, %s11, %s9
  $region1: #{_lambda_.3} parent=0
    #allocation2 [shape = 'u8[262144]{0}', space=vmem, size = 0x40000, scoped, tag = 'output window, operand 0, single buffered']
    #allocation3 [shape = 's32[1]{0}', space=sflag, size = 0x4, scoped, tag = 'scoped memory for _lambda_.3']
    %13 = vsyncpa [#allocation3], 0
    // Predicated region
    $region2: #{_lambda_.3} parent=1 // pred_check
      _
    $region3: #{_lambda_.3} parent=1 // pred_check_branch
      %15 = sbr.rel (0) target = $region5
    $region4: #{_lambda_.3} parent=1 // pred_region
      _
    $region5: #{_lambda_.3} parent=1 // pred_fallthru
      _
    // Predicated region
    $region6: #{_lambda_.3} parent=1 // pred_check
      _
    $region7: #{_lambda_.3} parent=1 // pred_check_branch
      %17 = sbr.rel (0) target = $region9
    $region8: #{_lambda_.3} parent=1 // pred_region
      _
    $region9: #{_lambda_.3} parent=1 // pred_fallthru
      _
    // Predicated region
    $region10: #{_lambda_.3} parent=1 // pred_check
      _
    $region11: #{_lambda_.3} parent=1 // pred_check_branch
      %19 = sbr.rel (0) target = $region13
    $region12: #{_lambda_.3} parent=1 // pred_region
      _
    $region13: #{_lambda_.3} parent=1 // pred_fallthru
      _
    // Predicated region
    $region14: #{_lambda_.3} parent=1 // pred_check
      _
    $region15: #{_lambda_.3} parent=1 // pred_check_branch
      %21 = sbr.rel (0) target = $region17
    $region16: #{_lambda_.3} parent=1 // pred_region
      _
    $region17: #{_lambda_.3} parent=1 // pred_fallthru
      _
    // Predicated region
    $region18: #{_lambda_.3} parent=1 // pred_check
      _
    $region19: #{_lambda_.3} parent=1 // pred_check_branch
      %23 = sbr.rel (0) target = $region21
    $region20: #{_lambda_.3} parent=1 // pred_region
      _
    $region21: #{_lambda_.3} parent=1 // pred_fallthru
      _
    // Predicated region
    $region22: #{_lambda_.3} parent=1 // pred_check
      _
    $region23: #{_lambda_.3} parent=1 // pred_check_branch
      %25 = sbr.rel (0) target = $region25
    $region24: #{_lambda_.3} parent=1 // pred_region
      _
    $region25: #{_lambda_.3} parent=1 // pred_fallthru
      _
    // Predicated region
    $region26: #{_lambda_.3} parent=1 // pred_check
      _
    $region27: #{_lambda_.3} parent=1 // pred_check_branch
      %27 = sbr.rel (0) target = $region29
    $region28: #{_lambda_.3} parent=1 // pred_region
      _
    $region29: #{_lambda_.3} parent=1 // pred_fallthru
      _
    // Predicated region
    $region30: #{_lambda_.3} parent=1 // pred_check
      _
    $region31: #{_lambda_.3} parent=1 // pred_check_branch
      %29 = sbr.rel (0) target = $region33
    $region32: #{_lambda_.3} parent=1 // pred_region
      _
    $region33: #{_lambda_.3} parent=1 // pred_fallthru
      _
    %v31 = vld [vmem:[%s0] sm:$0xff]
    %v32 = vld [vmem:[%s0 + $0x8] sm:$0xf]
    %v33 = vld [vmem:[%s0 + $0xc] sm:$0xff]
    %v34 = vld [vmem:[%s0 + $0x14] sm:$0xf]
    %v35 = vld [vmem:[%s0 + $0x18] sm:$0xff]
    %v36 = vld [vmem:[%s0 + $0x20] sm:$0xf]
    %v37 = vld [vmem:[%s0 + $0x24] sm:$0xff]
    %v38 = vld [vmem:[%s0 + $0x2c] sm:$0xf]
    %v39 = vld [vmem:[%s0 + $0x30] sm:$0xff]
    %v40 = vld [vmem:[%s0 + $0x38] sm:$0xf]
    %v41 = vld [vmem:[%s0 + $0x3c] sm:$0xff]
    %v42 = vld [vmem:[%s0 + $0x44] sm:$0xf]
    %v43 = vld [vmem:[%s0 + $0x48] sm:$0xff]
    %v44 = vld [vmem:[%s0 + $0x50] sm:$0xf]
    %v45 = vld [vmem:[%s0 + $0x54] sm:$0xff]
    %v46 = vld [vmem:[%s0 + $0x5c] sm:$0xf]
    %v47 = vld [vmem:[%s0 + $0x60] sm:$0xff]
    %v48 = vld [vmem:[%s0 + $0x68] sm:$0xf]
    %v49 = vld [vmem:[%s0 + $0x6c] sm:$0xff]
    %v50 = vld [vmem:[%s0 + $0x74] sm:$0xf]
    %v51 = vld [vmem:[%s0 + $0x78] sm:$0xff]
    %v52 = vld [vmem:[%s0 + $0x80] sm:$0xf]
    %v53 = vld [vmem:[%s0 + $0x84] sm:$0xff]
    %v54 = vld [vmem:[%s0 + $0x8c] sm:$0xf]
    %v55 = vld [vmem:[%s0 + $0x90] sm:$0xff]
    %v56 = vld [vmem:[%s0 + $0x98] sm:$0xf]
    %v57 = vld [vmem:[%s0 + $0x9c] sm:$0xff]
    %v58 = vld [vmem:[%s0 + $0xa4] sm:$0xf]
    %v59 = vld [vmem:[%s0 + $0xa8] sm:$0xff]
    %v60 = vld [vmem:[%s0 + $0xb0] sm:$0xf]
    %v61 = vld [vmem:[%s0 + $0xb4] sm:$0xff]
    %v62 = vld [vmem:[%s0 + $0xbc] sm:$0xf]
    %v63 = vld [vmem:[%s0 + $0xc0] sm:$0xff]
    %v64 = vld [vmem:[%s0 + $0xc8] sm:$0xf]
    %v65 = vld [vmem:[%s0 + $0xcc] sm:$0xff]
    %v66 = vld [vmem:[%s0 + $0xd4] sm:$0xf]
    %v67 = vld [vmem:[%s0 + $0xd8] sm:$0xff]
    %v68 = vld [vmem:[%s0 + $0xe0] sm:$0xf]
    %v69 = vld [vmem:[%s0 + $0xe4] sm:$0xff]
    %v70 = vld [vmem:[%s0 + $0xec] sm:$0xf]
    %v71 = vld [vmem:[%s0 + $0xf0] sm:$0xff]
    %v72 = vld [vmem:[%s0 + $0xf8] sm:$0xf]
    %v73 = vld [vmem:[%s0 + $0xfc] sm:$0xff]
    %v74 = vld [vmem:[%s0 + $0x104] sm:$0xf]
    %v75 = vld [vmem:[%s0 + $0x108] sm:$0xff]
    %v76 = vld [vmem:[%s0 + $0x110] sm:$0xf]
    %v77 = vld [vmem:[%s0 + $0x114] sm:$0xff]
    %v78 = vld [vmem:[%s0 + $0x11c] sm:$0xf]
    %v79 = vld [vmem:[%s0 + $0x120] sm:$0xff]
    %v80 = vld [vmem:[%s0 + $0x128] sm:$0xf]
    %v81 = vld [vmem:[%s0 + $0x12c] sm:$0xff]
    %v82 = vld [vmem:[%s0 + $0x134] sm:$0xf]
    %v83 = vld [vmem:[%s0 + $0x138] sm:$0xff]
    %v84 = vld [vmem:[%s0 + $0x140] sm:$0xf]
    %v85 = vld [vmem:[%s0 + $0x144] sm:$0xff]
    %v86 = vld [vmem:[%s0 + $0x14c] sm:$0xf]
    %v87 = vld [vmem:[%s0 + $0x150] sm:$0xff]
    %v88 = vld [vmem:[%s0 + $0x158] sm:$0xf]
    %v89 = vld [vmem:[%s0 + $0x15c] sm:$0xff]
    %v90 = vld [vmem:[%s0 + $0x164] sm:$0xf]
    %v91 = vld [vmem:[%s0 + $0x168] sm:$0xff]
    %v92 = vld [vmem:[%s0 + $0x170] sm:$0xf]
    %v93 = vld [vmem:[%s0 + $0x174] sm:$0xff]
    %v94 = vld [vmem:[%s0 + $0x17c] sm:$0xf]
    %v95 = vld [vmem:[%s0 + $0x180] sm:$0xff]
    %v96 = vld [vmem:[%s0 + $0x188] sm:$0xf]
    %v97 = vld [vmem:[%s0 + $0x18c] sm:$0xff]
    %v98 = vld [vmem:[%s0 + $0x194] sm:$0xf]
    %v99 = vld [vmem:[%s0 + $0x198] sm:$0xff]
    %v100 = vld [vmem:[%s0 + $0x1a0] sm:$0xf]
    %v101 = vld [vmem:[%s0 + $0x1a4] sm:$0xff]
    %v102 = vld [vmem:[%s0 + $0x1ac] sm:$0xf]
    %v103 = vld [vmem:[%s0 + $0x1b0] sm:$0xff]
    %v104 = vld [vmem:[%s0 + $0x1b8] sm:$0xf]
    %v105 = vld [vmem:[%s0 + $0x1bc] sm:$0xff]
    %v106 = vld [vmem:[%s0 + $0x1c4] sm:$0xf]
    %v107 = vld [vmem:[%s0 + $0x1c8] sm:$0xff]
    %v108 = vld [vmem:[%s0 + $0x1d0] sm:$0xf]
    %v109 = vld [vmem:[%s0 + $0x1d4] sm:$0xff]
    %v110 = vld [vmem:[%s0 + $0x1dc] sm:$0xf]
    %v111 = vld [vmem:[%s0 + $0x1e0] sm:$0xff]
    %v112 = vld [vmem:[%s0 + $0x1e8] sm:$0xf]
    %v113 = vld [vmem:[%s0 + $0x1ec] sm:$0xff]
    %v114 = vld [vmem:[%s0 + $0x1f4] sm:$0xf]
    %v115 = vld [vmem:[%s0 + $0x1f8] sm:$0xff]
    %v116 = vld [vmem:[%s0 + $0x200] sm:$0xf]
    %v117 = vld [vmem:[%s0 + $0x204] sm:$0xff]
    %v118 = vld [vmem:[%s0 + $0x20c] sm:$0xf]
    %v119 = vld [vmem:[%s0 + $0x210] sm:$0xff]
    %v120 = vld [vmem:[%s0 + $0x218] sm:$0xf]
    %v121 = vld [vmem:[%s0 + $0x21c] sm:$0xff]
    %v122 = vld [vmem:[%s0 + $0x224] sm:$0xf]
    %v123 = vld [vmem:[%s0 + $0x228] sm:$0xff]
    %v124 = vld [vmem:[%s0 + $0x230] sm:$0xf]
    %v125 = vld [vmem:[%s0 + $0x234] sm:$0xff]
    %v126 = vld [vmem:[%s0 + $0x23c] sm:$0xf]
    %v127 = vld [vmem:[%s0 + $0x240] sm:$0xff]
    %v128 = vld [vmem:[%s0 + $0x248] sm:$0xf]
    %v129 = vld [vmem:[%s0 + $0x24c] sm:$0xff]
    %v130 = vld [vmem:[%s0 + $0x254] sm:$0xf]
    %v131 = vld [vmem:[%s0 + $0x258] sm:$0xff]
    %v132 = vld [vmem:[%s0 + $0x260] sm:$0xf]
    %v133 = vld [vmem:[%s0 + $0x264] sm:$0xff]
    %v134 = vld [vmem:[%s0 + $0x26c] sm:$0xf]
    %v135 = vld [vmem:[%s0 + $0x270] sm:$0xff]
    %v136 = vld [vmem:[%s0 + $0x278] sm:$0xf]
    %v137 = vld [vmem:[%s0 + $0x27c] sm:$0xff]
    %v138 = vld [vmem:[%s0 + $0x284] sm:$0xf]
    %v139 = vld [vmem:[%s0 + $0x288] sm:$0xff]
    %v140 = vld [vmem:[%s0 + $0x290] sm:$0xf]
    %v141 = vld [vmem:[%s0 + $0x294] sm:$0xff]
    %v142 = vld [vmem:[%s0 + $0x29c] sm:$0xf]
    %v143 = vld [vmem:[%s0 + $0x2a0] sm:$0xff]
    %v144 = vld [vmem:[%s0 + $0x2a8] sm:$0xf]
    %v145 = vld [vmem:[%s0 + $0x2ac] sm:$0xff]
    %v146 = vld [vmem:[%s0 + $0x2b4] sm:$0xf]
    %v147 = vld [vmem:[%s0 + $0x2b8] sm:$0xff]
    %v148 = vld [vmem:[%s0 + $0x2c0] sm:$0xf]
    %v149 = vld [vmem:[%s0 + $0x2c4] sm:$0xff]
    %v150 = vld [vmem:[%s0 + $0x2cc] sm:$0xf]
    %v151 = vld [vmem:[%s0 + $0x2d0] sm:$0xff]
    %v152 = vld [vmem:[%s0 + $0x2d8] sm:$0xf]
    %v153 = vld [vmem:[%s0 + $0x2dc] sm:$0xff]
    %v154 = vld [vmem:[%s0 + $0x2e4] sm:$0xf]
    %v155 = vld [vmem:[%s0 + $0x2e8] sm:$0xff]
    %v156 = vld [vmem:[%s0 + $0x2f0] sm:$0xf]
    %v157 = vld [vmem:[%s0 + $0x2f4] sm:$0xff]
    %v158 = vld [vmem:[%s0 + $0x2fc] sm:$0xf]
    %v159 = vld [vmem:[%s2] sm:$0xf]
    %v160 = vld [vmem:[%s2 + $0x4] sm:$0xf]
    %v161 = vld [vmem:[%s2 + $0x8] sm:$0xf]
    %v162 = vld [vmem:[%s2 + $0xc] sm:$0xf]
    %v163 = vld [vmem:[%s2 + $0x10] sm:$0xf]
    %v164 = vld [vmem:[%s2 + $0x14] sm:$0xf]
    %v165 = vld [vmem:[%s2 + $0x18] sm:$0xf]
    %v166 = vld [vmem:[%s2 + $0x1c] sm:$0xf]
    %v167 = vld [vmem:[%s2 + $0x20] sm:$0xf]
    %v168 = vld [vmem:[%s2 + $0x24] sm:$0xf]
    %v169 = vld [vmem:[%s2 + $0x28] sm:$0xf]
    %v170 = vld [vmem:[%s2 + $0x2c] sm:$0xf]
    %v171 = vld [vmem:[%s2 + $0x30] sm:$0xf]
    %v172 = vld [vmem:[%s2 + $0x34] sm:$0xf]
    %v173 = vld [vmem:[%s2 + $0x38] sm:$0xf]
    %v174 = vld [vmem:[%s2 + $0x3c] sm:$0xf]
    %v175 = vld [vmem:[%s2 + $0x40] sm:$0xf]
    %v176 = vld [vmem:[%s2 + $0x44] sm:$0xf]
    %v177 = vld [vmem:[%s2 + $0x48] sm:$0xf]
    %v178 = vld [vmem:[%s2 + $0x4c] sm:$0xf]
    %v179 = vld [vmem:[%s2 + $0x50] sm:$0xf]
    %v180 = vld [vmem:[%s2 + $0x54] sm:$0xf]
    %v181 = vld [vmem:[%s2 + $0x58] sm:$0xf]
    %v182 = vld [vmem:[%s2 + $0x5c] sm:$0xf]
    %v183 = vld [vmem:[%s2 + $0x60] sm:$0xf]
    %v184 = vld [vmem:[%s2 + $0x64] sm:$0xf]
    %v185 = vld [vmem:[%s2 + $0x68] sm:$0xf]
    %v186 = vld [vmem:[%s2 + $0x6c] sm:$0xf]
    %v187 = vld [vmem:[%s2 + $0x70] sm:$0xf]
    %v188 = vld [vmem:[%s2 + $0x74] sm:$0xf]
    %v189 = vld [vmem:[%s2 + $0x78] sm:$0xf]
    %v190 = vld [vmem:[%s2 + $0x7c] sm:$0xf]
    %v191 = vld [vmem:[%s2 + $0x80] sm:$0xf]
    %v192 = vld [vmem:[%s2 + $0x84] sm:$0xf]
    %v193 = vld [vmem:[%s2 + $0x88] sm:$0xf]
    %v194 = vld [vmem:[%s2 + $0x8c] sm:$0xf]
    %v195 = vld [vmem:[%s3] sm:$0x1]
    %v197 = vlaneseq
    %v198 = vshrl.u32 %v197, 7
    %v199 = vsub.s32 0, %v198
    %v200 = vrot.slane %v195, %v199
    %v330 = vunpack.c.l.b16 %v31
    %v331 = vunpack.c.h.b16 %v31
    %v332 = vunpack.c.l.b16 %v32
    %v333 = vunpack.c.l.b16 %v33
    %v334 = vunpack.c.h.b16 %v33
    %v335 = vunpack.c.l.b16 %v34
    %v336 = vunpack.c.l.b16 %v35
    %v337 = vunpack.c.h.b16 %v35
    %v338 = vunpack.c.l.b16 %v36
    %v339 = vunpack.c.l.b16 %v37
    %v340 = vunpack.c.h.b16 %v37
    %v341 = vunpack.c.l.b16 %v38
    %v342 = vunpack.c.l.b16 %v39
    %v343 = vunpack.c.h.b16 %v39
    %v344 = vunpack.c.l.b16 %v40
    %v345 = vunpack.c.l.b16 %v41
    %v346 = vunpack.c.h.b16 %v41
    %v347 = vunpack.c.l.b16 %v42
    %v348 = vunpack.c.l.b16 %v43
    %v349 = vunpack.c.h.b16 %v43
    %v350 = vunpack.c.l.b16 %v44
    %v351 = vunpack.c.l.b16 %v45
    %v352 = vunpack.c.h.b16 %v45
    %v353 = vunpack.c.l.b16 %v46
    %v354 = vunpack.c.l.b16 %v47
    %v355 = vunpack.c.h.b16 %v47
    %v356 = vunpack.c.l.b16 %v48
    %v357 = vunpack.c.l.b16 %v49
    %v358 = vunpack.c.h.b16 %v49
    %v359 = vunpack.c.l.b16 %v50
    %v360 = vunpack.c.l.b16 %v51
    %v361 = vunpack.c.h.b16 %v51
    %v362 = vunpack.c.l.b16 %v52
    %v363 = vunpack.c.l.b16 %v53
    %v364 = vunpack.c.h.b16 %v53
    %v365 = vunpack.c.l.b16 %v54
    %v366 = vunpack.c.l.b16 %v55
    %v367 = vunpack.c.h.b16 %v55
    %v368 = vunpack.c.l.b16 %v56
    %v369 = vunpack.c.l.b16 %v57
    %v370 = vunpack.c.h.b16 %v57
    %v371 = vunpack.c.l.b16 %v58
    %v372 = vunpack.c.l.b16 %v59
    %v373 = vunpack.c.h.b16 %v59
    %v374 = vunpack.c.l.b16 %v60
    %v375 = vunpack.c.l.b16 %v61
    %v376 = vunpack.c.h.b16 %v61
    %v377 = vunpack.c.l.b16 %v62
    %v378 = vunpack.c.l.b16 %v63
    %v379 = vunpack.c.h.b16 %v63
    %v380 = vunpack.c.l.b16 %v64
    %v381 = vunpack.c.l.b16 %v65
    %v382 = vunpack.c.h.b16 %v65
    %v383 = vunpack.c.l.b16 %v66
    %v384 = vunpack.c.l.b16 %v67
    %v385 = vunpack.c.h.b16 %v67
    %v386 = vunpack.c.l.b16 %v68
    %v387 = vunpack.c.l.b16 %v69
    %v388 = vunpack.c.h.b16 %v69
    %v389 = vunpack.c.l.b16 %v70
    %v390 = vunpack.c.l.b16 %v71
    %v391 = vunpack.c.h.b16 %v71
    %v392 = vunpack.c.l.b16 %v72
    %v393 = vunpack.c.l.b16 %v73
    %v394 = vunpack.c.h.b16 %v73
    %v395 = vunpack.c.l.b16 %v74
    %v396 = vunpack.c.l.b16 %v75
    %v397 = vunpack.c.h.b16 %v75
    %v398 = vunpack.c.l.b16 %v76
    %v399 = vunpack.c.l.b16 %v77
    %v400 = vunpack.c.h.b16 %v77
    %v401 = vunpack.c.l.b16 %v78
    %v402 = vunpack.c.l.b16 %v79
    %v403 = vunpack.c.h.b16 %v79
    %v404 = vunpack.c.l.b16 %v80
    %v405 = vunpack.c.l.b16 %v81
    %v406 = vunpack.c.h.b16 %v81
    %v407 = vunpack.c.l.b16 %v82
    %v408 = vunpack.c.l.b16 %v83
    %v409 = vunpack.c.h.b16 %v83
    %v410 = vunpack.c.l.b16 %v84
    %v411 = vunpack.c.l.b16 %v85
    %v412 = vunpack.c.h.b16 %v85
    %v413 = vunpack.c.l.b16 %v86
    %v414 = vunpack.c.l.b16 %v87
    %v415 = vunpack.c.h.b16 %v87
    %v416 = vunpack.c.l.b16 %v88
    %v417 = vunpack.c.l.b16 %v89
    %v418 = vunpack.c.h.b16 %v89
    %v419 = vunpack.c.l.b16 %v90
    %v420 = vunpack.c.l.b16 %v91
    %v421 = vunpack.c.h.b16 %v91
    %v422 = vunpack.c.l.b16 %v92
    %v423 = vunpack.c.l.b16 %v93
    %v424 = vunpack.c.h.b16 %v93
    %v425 = vunpack.c.l.b16 %v94
    %v426 = vunpack.c.l.b16 %v95
    %v427 = vunpack.c.h.b16 %v95
    %v428 = vunpack.c.l.b16 %v96
    %v429 = vunpack.c.l.b16 %v97
    %v430 = vunpack.c.h.b16 %v97
    %v431 = vunpack.c.l.b16 %v98
    %v432 = vunpack.c.l.b16 %v99
    %v433 = vunpack.c.h.b16 %v99
    %v434 = vunpack.c.l.b16 %v100
    %v435 = vunpack.c.l.b16 %v101
    %v436 = vunpack.c.h.b16 %v101
    %v437 = vunpack.c.l.b16 %v102
    %v438 = vunpack.c.l.b16 %v103
    %v439 = vunpack.c.h.b16 %v103
    %v440 = vunpack.c.l.b16 %v104
    %v441 = vunpack.c.l.b16 %v105
    %v442 = vunpack.c.h.b16 %v105
    %v443 = vunpack.c.l.b16 %v106
    %v444 = vunpack.c.l.b16 %v107
    %v445 = vunpack.c.h.b16 %v107
    %v446 = vunpack.c.l.b16 %v108
    %v447 = vunpack.c.l.b16 %v109
    %v448 = vunpack.c.h.b16 %v109
    %v449 = vunpack.c.l.b16 %v110
    %v450 = vunpack.c.l.b16 %v111
    %v451 = vunpack.c.h.b16 %v111
    %v452 = vunpack.c.l.b16 %v112
    %v453 = vunpack.c.l.b16 %v113
    %v454 = vunpack.c.h.b16 %v113
    %v455 = vunpack.c.l.b16 %v114
    %v456 = vunpack.c.l.b16 %v115
    %v457 = vunpack.c.h.b16 %v115
    %v458 = vunpack.c.l.b16 %v116
    %v459 = vunpack.c.l.b16 %v117
    %v460 = vunpack.c.h.b16 %v117
    %v461 = vunpack.c.l.b16 %v118
    %v462 = vunpack.c.l.b16 %v119
    %v463 = vunpack.c.h.b16 %v119
    %v464 = vunpack.c.l.b16 %v120
    %v465 = vunpack.c.l.b16 %v121
    %v466 = vunpack.c.h.b16 %v121
    %v467 = vunpack.c.l.b16 %v122
    %v468 = vunpack.c.l.b16 %v123
    %v469 = vunpack.c.h.b16 %v123
    %v470 = vunpack.c.l.b16 %v124
    %v471 = vunpack.c.l.b16 %v125
    %v472 = vunpack.c.h.b16 %v125
    %v473 = vunpack.c.l.b16 %v126
    %v474 = vunpack.c.l.b16 %v127
    %v475 = vunpack.c.h.b16 %v127
    %v476 = vunpack.c.l.b16 %v128
    %v477 = vunpack.c.l.b16 %v129
    %v478 = vunpack.c.h.b16 %v129
    %v479 = vunpack.c.l.b16 %v130
    %v480 = vunpack.c.l.b16 %v131
    %v481 = vunpack.c.h.b16 %v131
    %v482 = vunpack.c.l.b16 %v132
    %v483 = vunpack.c.l.b16 %v133
    %v484 = vunpack.c.h.b16 %v133
    %v485 = vunpack.c.l.b16 %v134
    %v486 = vunpack.c.l.b16 %v135
    %v487 = vunpack.c.h.b16 %v135
    %v488 = vunpack.c.l.b16 %v136
    %v489 = vunpack.c.l.b16 %v137
    %v490 = vunpack.c.h.b16 %v137
    %v491 = vunpack.c.l.b16 %v138
    %v492 = vunpack.c.l.b16 %v139
    %v493 = vunpack.c.h.b16 %v139
    %v494 = vunpack.c.l.b16 %v140
    %v495 = vunpack.c.l.b16 %v141
    %v496 = vunpack.c.h.b16 %v141
    %v497 = vunpack.c.l.b16 %v142
    %v498 = vunpack.c.l.b16 %v143
    %v499 = vunpack.c.h.b16 %v143
    %v500 = vunpack.c.l.b16 %v144
    %v501 = vunpack.c.l.b16 %v145
    %v502 = vunpack.c.h.b16 %v145
    %v503 = vunpack.c.l.b16 %v146
    %v504 = vunpack.c.l.b16 %v147
    %v505 = vunpack.c.h.b16 %v147
    %v506 = vunpack.c.l.b16 %v148
    %v507 = vunpack.c.l.b16 %v149
    %v508 = vunpack.c.h.b16 %v149
    %v509 = vunpack.c.l.b16 %v150
    %v510 = vunpack.c.l.b16 %v151
    %v511 = vunpack.c.h.b16 %v151
    %v512 = vunpack.c.l.b16 %v152
    %v513 = vunpack.c.l.b16 %v153
    %v514 = vunpack.c.h.b16 %v153
    %v515 = vunpack.c.l.b16 %v154
    %v516 = vunpack.c.l.b16 %v155
    %v517 = vunpack.c.h.b16 %v155
    %v518 = vunpack.c.l.b16 %v156
    %v519 = vunpack.c.l.b16 %v157
    %v520 = vunpack.c.h.b16 %v157
    %v521 = vunpack.c.l.b16 %v158
    %v522 = vpack.c.b16 %v333, %v330
    %v523 = vpack.c.b16 %v334, %v331
    %v524 = vpack.c.b16 %v335, %v332
    %v525 = vpack.c.b16 %v339, %v336
    %v526 = vpack.c.b16 %v340, %v337
    %v527 = vpack.c.b16 %v341, %v338
    %v528 = vpack.c.b16 %v345, %v342
    %v529 = vpack.c.b16 %v346, %v343
    %v530 = vpack.c.b16 %v347, %v344
    %v531 = vpack.c.b16 %v351, %v348
    %v532 = vpack.c.b16 %v352, %v349
    %v533 = vpack.c.b16 %v353, %v350
    %v534 = vpack.c.b16 %v357, %v354
    %v535 = vpack.c.b16 %v358, %v355
    %v536 = vpack.c.b16 %v359, %v356
    %v537 = vpack.c.b16 %v363, %v360
    %v538 = vpack.c.b16 %v364, %v361
    %v539 = vpack.c.b16 %v365, %v362
    %v540 = vpack.c.b16 %v369, %v366
    %v541 = vpack.c.b16 %v370, %v367
    %v542 = vpack.c.b16 %v371, %v368
    %v543 = vpack.c.b16 %v375, %v372
    %v544 = vpack.c.b16 %v376, %v373
    %v545 = vpack.c.b16 %v377, %v374
    %v546 = vpack.c.b16 %v381, %v378
    %v547 = vpack.c.b16 %v382, %v379
    %v548 = vpack.c.b16 %v383, %v380
    %v549 = vpack.c.b16 %v387, %v384
    %v550 = vpack.c.b16 %v388, %v385
    %v551 = vpack.c.b16 %v389, %v386
    %v552 = vpack.c.b16 %v393, %v390
    %v553 = vpack.c.b16 %v394, %v391
    %v554 = vpack.c.b16 %v395, %v392
    %v555 = vpack.c.b16 %v399, %v396
    %v556 = vpack.c.b16 %v400, %v397
    %v557 = vpack.c.b16 %v401, %v398
    %v558 = vpack.c.b16 %v405, %v402
    %v559 = vpack.c.b16 %v406, %v403
    %v560 = vpack.c.b16 %v407, %v404
    %v561 = vpack.c.b16 %v411, %v408
    %v562 = vpack.c.b16 %v412, %v409
    %v563 = vpack.c.b16 %v413, %v410
    %v564 = vpack.c.b16 %v417, %v414
    %v565 = vpack.c.b16 %v418, %v415
    %v566 = vpack.c.b16 %v419, %v416
    %v567 = vpack.c.b16 %v423, %v420
    %v568 = vpack.c.b16 %v424, %v421
    %v569 = vpack.c.b16 %v425, %v422
    %v570 = vpack.c.b16 %v429, %v426
    %v571 = vpack.c.b16 %v430, %v427
    %v572 = vpack.c.b16 %v431, %v428
    %v573 = vpack.c.b16 %v435, %v432
    %v574 = vpack.c.b16 %v436, %v433
    %v575 = vpack.c.b16 %v437, %v434
    %v576 = vpack.c.b16 %v441, %v438
    %v577 = vpack.c.b16 %v442, %v439
    %v578 = vpack.c.b16 %v443, %v440
    %v579 = vpack.c.b16 %v447, %v444
    %v580 = vpack.c.b16 %v448, %v445
    %v581 = vpack.c.b16 %v449, %v446
    %v582 = vpack.c.b16 %v453, %v450
    %v583 = vpack.c.b16 %v454, %v451
    %v584 = vpack.c.b16 %v455, %v452
    %v585 = vpack.c.b16 %v459, %v456
    %v586 = vpack.c.b16 %v460, %v457
    %v587 = vpack.c.b16 %v461, %v458
    %v588 = vpack.c.b16 %v465, %v462
    %v589 = vpack.c.b16 %v466, %v463
    %v590 = vpack.c.b16 %v467, %v464
    %v591 = vpack.c.b16 %v471, %v468
    %v592 = vpack.c.b16 %v472, %v469
    %v593 = vpack.c.b16 %v473, %v470
    %v594 = vpack.c.b16 %v477, %v474
    %v595 = vpack.c.b16 %v478, %v475
    %v596 = vpack.c.b16 %v479, %v476
    %v597 = vpack.c.b16 %v483, %v480
    %v598 = vpack.c.b16 %v484, %v481
    %v599 = vpack.c.b16 %v485, %v482
    %v600 = vpack.c.b16 %v489, %v486
    %v601 = vpack.c.b16 %v490, %v487
    %v602 = vpack.c.b16 %v491, %v488
    %v603 = vpack.c.b16 %v495, %v492
    %v604 = vpack.c.b16 %v496, %v493
    %v605 = vpack.c.b16 %v497, %v494
    %v606 = vpack.c.b16 %v501, %v498
    %v607 = vpack.c.b16 %v502, %v499
    %v608 = vpack.c.b16 %v503, %v500
    %v609 = vpack.c.b16 %v507, %v504
    %v610 = vpack.c.b16 %v508, %v505
    %v611 = vpack.c.b16 %v509, %v506
    %v612 = vpack.c.b16 %v513, %v510
    %v613 = vpack.c.b16 %v514, %v511
    %v614 = vpack.c.b16 %v515, %v512
    %v615 = vpack.c.b16 %v519, %v516
    %v616 = vpack.c.b16 %v520, %v517
    %v617 = vpack.c.b16 %v521, %v518
    %v718 = vunpack.c.l.b16 %v159
    %v719 = vunpack.c.l.b16 %v160
    %v720 = vunpack.c.l.b16 %v161
    %v721 = vunpack.c.l.b16 %v162
    %v722 = vunpack.c.l.b16 %v163
    %v723 = vunpack.c.l.b16 %v164
    %v724 = vunpack.c.l.b16 %v165
    %v725 = vunpack.c.l.b16 %v166
    %v726 = vunpack.c.l.b16 %v167
    %v727 = vunpack.c.l.b16 %v168
    %v728 = vunpack.c.l.b16 %v169
    %v729 = vunpack.c.l.b16 %v170
    %v730 = vunpack.c.l.b16 %v171
    %v731 = vunpack.c.l.b16 %v172
    %v732 = vunpack.c.l.b16 %v173
    %v733 = vunpack.c.l.b16 %v174
    %v734 = vunpack.c.l.b16 %v175
    %v735 = vunpack.c.l.b16 %v176
    %v736 = vunpack.c.l.b16 %v177
    %v737 = vunpack.c.l.b16 %v178
    %v738 = vunpack.c.l.b16 %v179
    %v739 = vunpack.c.l.b16 %v180
    %v740 = vunpack.c.l.b16 %v181
    %v741 = vunpack.c.l.b16 %v182
    %v742 = vunpack.c.l.b16 %v183
    %v743 = vunpack.c.l.b16 %v184
    %v744 = vunpack.c.l.b16 %v185
    %v745 = vunpack.c.l.b16 %v186
    %v746 = vunpack.c.l.b16 %v187
    %v747 = vunpack.c.l.b16 %v188
    %v748 = vunpack.c.l.b16 %v189
    %v749 = vunpack.c.l.b16 %v190
    %v750 = vunpack.c.l.b16 %v191
    %v751 = vunpack.c.l.b16 %v192
    %v752 = vunpack.c.l.b16 %v193
    %v753 = vunpack.c.l.b16 %v194
    %v754 = vpack.c.b16 %v719, %v718
    %v755 = vpack.c.b16 %v721, %v720
    %v756 = vpack.c.b16 %v723, %v722
    %v757 = vpack.c.b16 %v725, %v724
    %v758 = vpack.c.b16 %v727, %v726
    %v759 = vpack.c.b16 %v729, %v728
    %v760 = vpack.c.b16 %v731, %v730
    %v761 = vpack.c.b16 %v733, %v732
    %v762 = vpack.c.b16 %v735, %v734
    %v763 = vpack.c.b16 %v737, %v736
    %v764 = vpack.c.b16 %v739, %v738
    %v765 = vpack.c.b16 %v741, %v740
    %v766 = vpack.c.b16 %v743, %v742
    %v767 = vpack.c.b16 %v745, %v744
    %v768 = vpack.c.b16 %v747, %v746
    %v769 = vpack.c.b16 %v749, %v748
    %v770 = vpack.c.b16 %v751, %v750
    %v771 = vpack.c.b16 %v753, %v752
    %vm790 = vcmask 261120
    %v792 = vsel %vm790, %v524, 0
    %v795 = vsel %vm790, %v527, 0
    %v798 = vsel %vm790, %v530, 0
    %v801 = vsel %vm790, %v533, 0
    %v804 = vsel %vm790, %v536, 0
    %v807 = vsel %vm790, %v539, 0
    %v810 = vsel %vm790, %v542, 0
    %v813 = vsel %vm790, %v545, 0
    %v816 = vsel %vm790, %v548, 0
    %v819 = vsel %vm790, %v551, 0
    %v822 = vsel %vm790, %v554, 0
    %v825 = vsel %vm790, %v557, 0
    %v828 = vsel %vm790, %v560, 0
    %v831 = vsel %vm790, %v563, 0
    %v834 = vsel %vm790, %v566, 0
    %v837 = vsel %vm790, %v569, 0
    %v840 = vsel %vm790, %v572, 0
    %v843 = vsel %vm790, %v575, 0
    %v846 = vsel %vm790, %v578, 0
    %v849 = vsel %vm790, %v581, 0
    %v852 = vsel %vm790, %v584, 0
    %v855 = vsel %vm790, %v587, 0
    %v858 = vsel %vm790, %v590, 0
    %v861 = vsel %vm790, %v593, 0
    %v864 = vsel %vm790, %v596, 0
    %v867 = vsel %vm790, %v599, 0
    %v870 = vsel %vm790, %v602, 0
    %v873 = vsel %vm790, %v605, 0
    %v876 = vsel %vm790, %v608, 0
    %v879 = vsel %vm790, %v611, 0
    %v882 = vsel %vm790, %v614, 0
    %v885 = vsel %vm790, %v617, 0
    %887 = vmatprep.subr.bf16.mxu0 0
    %888 = vmatpush1.bf16.msra.mxu0 %v754
    %889 = vmatprep.subr.bf16.mxu0 0
    %890 = vmatpush1.bf16.msra.mxu0 %v755
    %891 = vmatprep.subr.bf16.mxu0 0
    %892 = vmatpush1.bf16.msra.mxu0 %v756
    %893 = vmatprep.subr.bf16.mxu0 0
    %894 = vmatpush1.bf16.msra.mxu0 %v757
    %895 = vmatprep.subr.bf16.mxu0 0
    %896 = vmatpush1.bf16.msra.mxu0 %v758
    %897 = vmatprep.subr.bf16.mxu0 0
    %898 = vmatpush1.bf16.msra.mxu0 %v759
    %899 = vmatprep.subr.bf16.mxu0 0
    %900 = vmatpush1.bf16.msra.mxu0 %v760
    %901 = vmatprep.subr.bf16.mxu0 0
    %902 = vmatpush1.bf16.msra.mxu0 %v761
    %903 = vmatprep.subr.bf16.mxu0 0
    %904 = vmatpush1.bf16.msra.mxu0 %v762
    %905 = vmatprep.subr.bf16.mxu0 0
    %906 = vmatpush1.bf16.msra.mxu0 %v763
    %907 = vmatprep.subr.bf16.mxu0 0
    %908 = vmatpush1.bf16.msra.mxu0 %v764
    %909 = vmatprep.subr.bf16.mxu0 0
    %910 = vmatpush1.bf16.msra.mxu0 %v765
    %911 = vmatprep.subr.bf16.mxu0 0
    %912 = vmatpush1.bf16.msra.mxu0 %v766
    %913 = vmatprep.subr.bf16.mxu0 0
    %914 = vmatpush1.bf16.msra.mxu0 %v767
    %915 = vmatprep.subr.bf16.mxu0 0
    %916 = vmatpush1.bf16.msra.mxu0 %v768
    %917 = vmatprep.subr.bf16.mxu0 0
    %918 = vmatpush1.bf16.msra.mxu0 %v769
    %919 = vmatprep.mubr.bf16.mxu0 %v523
    %920 = vmatmul.mubr.bf16.gmra.mrb[0].mxu0 %v522
    %v921 = vpop.f32.mrb[0].mxu0
    %v922 = vadd.f32 %v200, %v921
    %v923 = vpop.f32.mrb[0].mxu0
    %v924 = vpop.f32.mrb[0].mxu0
    %v925 = vadd.f32 %v200, %v924
    %v926 = vpop.f32.mrb[0].mxu0
    %927 = vmatprep.mubr.bf16.mxu0 %v526
    %928 = vmatmul.mubr.bf16.gmra.mrb[0].mxu0 %v525
    %v929 = vpop.f32.mrb[0].mxu0
    %v930 = vadd.f32 %v200, %v929
    %v931 = vpop.f32.mrb[0].mxu0
    %v932 = vpop.f32.mrb[0].mxu0
    %v933 = vadd.f32 %v200, %v932
    %v934 = vpop.f32.mrb[0].mxu0
    %935 = vmatprep.mubr.bf16.mxu0 %v529
    %936 = vmatmul.mubr.bf16.gmra.mrb[0].mxu0 %v528
    %v937 = vpop.f32.mrb[0].mxu0
    %v938 = vadd.f32 %v200, %v937
    %v939 = vpop.f32.mrb[0].mxu0
    %v940 = vpop.f32.mrb[0].mxu0
    %v941 = vadd.f32 %v200, %v940
    %v942 = vpop.f32.mrb[0].mxu0
    %943 = vmatprep.mubr.bf16.mxu0 %v532
    %944 = vmatmul.mubr.bf16.gmra.mrb[0].mxu0 %v531
    %v945 = vpop.f32.mrb[0].mxu0
    %v946 = vadd.f32 %v200, %v945
    %v947 = vpop.f32.mrb[0].mxu0
    %v948 = vpop.f32.mrb[0].mxu0
    %v949 = vadd.f32 %v200, %v948
    %v950 = vpop.f32.mrb[0].mxu0
    %951 = vmatprep.mubr.bf16.mxu0 %v535
    %952 = vmatmul.mubr.bf16.gmra.mrb[0].mxu0 %v534
    %v953 = vpop.f32.mrb[0].mxu0
    %v954 = vadd.f32 %v200, %v953
    %v955 = vpop.f32.mrb[0].mxu0
    %v956 = vpop.f32.mrb[0].mxu0
    %v957 = vadd.f32 %v200, %v956
    %v958 = vpop.f32.mrb[0].mxu0
    %959 = vmatprep.mubr.bf16.mxu0 %v538
    %960 = vmatmul.mubr.bf16.gmra.mrb[0].mxu0 %v537
    %v961 = vpop.f32.mrb[0].mxu0
    %v962 = vadd.f32 %v200, %v961
    %v963 = vpop.f32.mrb[0].mxu0
    %v964 = vpop.f32.mrb[0].mxu0
    %v965 = vadd.f32 %v200, %v964
    %v966 = vpop.f32.mrb[0].mxu0
    %967 = vmatprep.mubr.bf16.mxu0 %v541
    %968 = vmatmul.mubr.bf16.gmra.mrb[0].mxu0 %v540
    %v969 = vpop.f32.mrb[0].mxu0
    %v970 = vadd.f32 %v200, %v969
    %v971 = vpop.f32.mrb[0].mxu0
    %v972 = vpop.f32.mrb[0].mxu0
    %v973 = vadd.f32 %v200, %v972
    %v974 = vpop.f32.mrb[0].mxu0
    %975 = vmatprep.mubr.bf16.mxu0 %v544
    %976 = vmatmul.mubr.bf16.gmra.mrb[0].mxu0 %v543
    %v977 = vpop.f32.mrb[0].mxu0
    %v978 = vadd.f32 %v200, %v977
    %v979 = vpop.f32.mrb[0].mxu0
    %v980 = vpop.f32.mrb[0].mxu0
    %v981 = vadd.f32 %v200, %v980
    %v982 = vpop.f32.mrb[0].mxu0
    %983 = vmatprep.mubr.bf16.mxu0 %v547
    %984 = vmatmul.mubr.bf16.gmra.mrb[0].mxu0 %v546
    %v985 = vpop.f32.mrb[0].mxu0
    %v986 = vadd.f32 %v200, %v985
    %v987 = vpop.f32.mrb[0].mxu0
    %v988 = vpop.f32.mrb[0].mxu0
    %v989 = vadd.f32 %v200, %v988
    %v990 = vpop.f32.mrb[0].mxu0
    %991 = vmatprep.mubr.bf16.mxu0 %v550
    %992 = vmatmul.mubr.bf16.gmra.mrb[0].mxu0 %v549
    %v993 = vpop.f32.mrb[0].mxu0
    %v994 = vadd.f32 %v200, %v993
    %v995 = vpop.f32.mrb[0].mxu0
    %v996 = vpop.f32.mrb[0].mxu0
    %v997 = vadd.f32 %v200, %v996
    %v998 = vpop.f32.mrb[0].mxu0
    %999 = vmatprep.mubr.bf16.mxu0 %v553
    %1000 = vmatmul.mubr.bf16.gmra.mrb[0].mxu0 %v552
    %v1001 = vpop.f32.mrb[0].mxu0
    %v1002 = vadd.f32 %v200, %v1001
    %v1003 = vpop.f32.mrb[0].mxu0
    %v1004 = vpop.f32.mrb[0].mxu0
    %v1005 = vadd.f32 %v200, %v1004
    %v1006 = vpop.f32.mrb[0].mxu0
    %1007 = vmatprep.mubr.bf16.mxu0 %v556
    %1008 = vmatmul.mubr.bf16.gmra.mrb[0].mxu0 %v555
    %v1009 = vpop.f32.mrb[0].mxu0
    %v1010 = vadd.f32 %v200, %v1009
    %v1011 = vpop.f32.mrb[0].mxu0
    %v1012 = vpop.f32.mrb[0].mxu0
    %v1013 = vadd.f32 %v200, %v1012
    %v1014 = vpop.f32.mrb[0].mxu0
    %1015 = vmatprep.mubr.bf16.mxu0 %v559
    %1016 = vmatmul.mubr.bf16.gmra.mrb[0].mxu0 %v558
    %v1017 = vpop.f32.mrb[0].mxu0
    %v1018 = vadd.f32 %v200, %v1017
    %v1019 = vpop.f32.mrb[0].mxu0
    %v1020 = vpop.f32.mrb[0].mxu0
    %v1021 = vadd.f32 %v200, %v1020
    %v1022 = vpop.f32.mrb[0].mxu0
    %1023 = vmatprep.mubr.bf16.mxu0 %v562
    %1024 = vmatmul.mubr.bf16.gmra.mrb[0].mxu0 %v561
    %v1025 = vpop.f32.mrb[0].mxu0
    %v1026 = vadd.f32 %v200, %v1025
    %v1027 = vpop.f32.mrb[0].mxu0
    %v1028 = vpop.f32.mrb[0].mxu0
    %v1029 = vadd.f32 %v200, %v1028
    %v1030 = vpop.f32.mrb[0].mxu0
    %1031 = vmatprep.mubr.bf16.mxu0 %v565
    %1032 = vmatmul.mubr.bf16.gmra.mrb[0].mxu0 %v564
    %v1033 = vpop.f32.mrb[0].mxu0
    %v1034 = vadd.f32 %v200, %v1033
    %v1035 = vpop.f32.mrb[0].mxu0
    %v1036 = vpop.f32.mrb[0].mxu0
    %v1037 = vadd.f32 %v200, %v1036
    %v1038 = vpop.f32.mrb[0].mxu0
    %1039 = vmatprep.mubr.bf16.mxu0 %v568
    %1040 = vmatmul.mubr.bf16.gmra.mrb[0].mxu0 %v567
    %v1041 = vpop.f32.mrb[0].mxu0
    %v1042 = vadd.f32 %v200, %v1041
    %v1043 = vpop.f32.mrb[0].mxu0
    %v1044 = vpop.f32.mrb[0].mxu0
    %v1045 = vadd.f32 %v200, %v1044
    %v1046 = vpop.f32.mrb[0].mxu0
    %1047 = vmatprep.mubr.bf16.mxu0 %v571
    %1048 = vmatmul.mubr.bf16.gmra.mrb[0].mxu0 %v570
    %v1049 = vpop.f32.mrb[0].mxu0
    %v1050 = vadd.f32 %v200, %v1049
    %v1051 = vpop.f32.mrb[0].mxu0
    %v1052 = vpop.f32.mrb[0].mxu0
    %v1053 = vadd.f32 %v200, %v1052
    %v1054 = vpop.f32.mrb[0].mxu0
    %1055 = vmatprep.mubr.bf16.mxu0 %v574
    %1056 = vmatmul.mubr.bf16.gmra.mrb[0].mxu0 %v573
    %v1057 = vpop.f32.mrb[0].mxu0
    %v1058 = vadd.f32 %v200, %v1057
    %v1059 = vpop.f32.mrb[0].mxu0
    %v1060 = vpop.f32.mrb[0].mxu0
    %v1061 = vadd.f32 %v200, %v1060
    %v1062 = vpop.f32.mrb[0].mxu0
    %1063 = vmatprep.mubr.bf16.mxu0 %v577
    %1064 = vmatmul.mubr.bf16.gmra.mrb[0].mxu0 %v576
    %v1065 = vpop.f32.mrb[0].mxu0
    %v1066 = vadd.f32 %v200, %v1065
    %v1067 = vpop.f32.mrb[0].mxu0
    %v1068 = vpop.f32.mrb[0].mxu0
    %v1069 = vadd.f32 %v200, %v1068
    %v1070 = vpop.f32.mrb[0].mxu0
    %1071 = vmatprep.mubr.bf16.mxu0 %v580
    %1072 = vmatmul.mubr.bf16.gmra.mrb[0].mxu0 %v579
    %v1073 = vpop.f32.mrb[0].mxu0
    %v1074 = vadd.f32 %v200, %v1073
    %v1075 = vpop.f32.mrb[0].mxu0
    %v1076 = vpop.f32.mrb[0].mxu0
    %v1077 = vadd.f32 %v200, %v1076
    %v1078 = vpop.f32.mrb[0].mxu0
    %1079 = vmatprep.mubr.bf16.mxu0 %v583
    %1080 = vmatmul.mubr.bf16.gmra.mrb[0].mxu0 %v582
    %v1081 = vpop.f32.mrb[0].mxu0
    %v1082 = vadd.f32 %v200, %v1081
    %v1083 = vpop.f32.mrb[0].mxu0
    %v1084 = vpop.f32.mrb[0].mxu0
    %v1085 = vadd.f32 %v200, %v1084
    %v1086 = vpop.f32.mrb[0].mxu0
    %1087 = vmatprep.mubr.bf16.mxu0 %v586
    %1088 = vmatmul.mubr.bf16.gmra.mrb[0].mxu0 %v585
    %v1089 = vpop.f32.mrb[0].mxu0
    %v1090 = vadd.f32 %v200, %v1089
    %v1091 = vpop.f32.mrb[0].mxu0
    %v1092 = vpop.f32.mrb[0].mxu0
    %v1093 = vadd.f32 %v200, %v1092
    %v1094 = vpop.f32.mrb[0].mxu0
    %1095 = vmatprep.mubr.bf16.mxu0 %v589
    %1096 = vmatmul.mubr.bf16.gmra.mrb[0].mxu0 %v588
    %v1097 = vpop.f32.mrb[0].mxu0
    %v1098 = vadd.f32 %v200, %v1097
    %v1099 = vpop.f32.mrb[0].mxu0
    %v1100 = vpop.f32.mrb[0].mxu0
    %v1101 = vadd.f32 %v200, %v1100
    %v1102 = vpop.f32.mrb[0].mxu0
    %1103 = vmatprep.mubr.bf16.mxu0 %v592
    %1104 = vmatmul.mubr.bf16.gmra.mrb[0].mxu0 %v591
    %v1105 = vpop.f32.mrb[0].mxu0
    %v1106 = vadd.f32 %v200, %v1105
    %v1107 = vpop.f32.mrb[0].mxu0
    %v1108 = vpop.f32.mrb[0].mxu0
    %v1109 = vadd.f32 %v200, %v1108
    %v1110 = vpop.f32.mrb[0].mxu0
    %1111 = vmatprep.mubr.bf16.mxu0 %v595
    %1112 = vmatmul.mubr.bf16.gmra.mrb[0].mxu0 %v594
    %v1113 = vpop.f32.mrb[0].mxu0
    %v1114 = vadd.f32 %v200, %v1113
    %v1115 = vpop.f32.mrb[0].mxu0
    %v1116 = vpop.f32.mrb[0].mxu0
    %v1117 = vadd.f32 %v200, %v1116
    %v1118 = vpop.f32.mrb[0].mxu0
    %1119 = vmatprep.mubr.bf16.mxu0 %v598
    %1120 = vmatmul.mubr.bf16.gmra.mrb[0].mxu0 %v597
    %v1121 = vpop.f32.mrb[0].mxu0
    %v1122 = vadd.f32 %v200, %v1121
    %v1123 = vpop.f32.mrb[0].mxu0
    %v1124 = vpop.f32.mrb[0].mxu0
    %v1125 = vadd.f32 %v200, %v1124
    %v1126 = vpop.f32.mrb[0].mxu0
    %1127 = vmatprep.mubr.bf16.mxu0 %v601
    %1128 = vmatmul.mubr.bf16.gmra.mrb[0].mxu0 %v600
    %v1129 = vpop.f32.mrb[0].mxu0
    %v1130 = vadd.f32 %v200, %v1129
    %v1131 = vpop.f32.mrb[0].mxu0
    %v1132 = vpop.f32.mrb[0].mxu0
    %v1133 = vadd.f32 %v200, %v1132
    %v1134 = vpop.f32.mrb[0].mxu0
    %1135 = vmatprep.mubr.bf16.mxu0 %v604
    %1136 = vmatmul.mubr.bf16.gmra.mrb[0].mxu0 %v603
    %v1137 = vpop.f32.mrb[0].mxu0
    %v1138 = vadd.f32 %v200, %v1137
    %v1139 = vpop.f32.mrb[0].mxu0
    %v1140 = vpop.f32.mrb[0].mxu0
    %v1141 = vadd.f32 %v200, %v1140
    %v1142 = vpop.f32.mrb[0].mxu0
    %1143 = vmatprep.mubr.bf16.mxu0 %v607
    %1144 = vmatmul.mubr.bf16.gmra.mrb[0].mxu0 %v606
    %v1145 = vpop.f32.mrb[0].mxu0
    %v1146 = vadd.f32 %v200, %v1145
    %v1147 = vpop.f32.mrb[0].mxu0
    %v1148 = vpop.f32.mrb[0].mxu0
    %v1149 = vadd.f32 %v200, %v1148
    %v1150 = vpop.f32.mrb[0].mxu0
    %1151 = vmatprep.mubr.bf16.mxu0 %v610
    %1152 = vmatmul.mubr.bf16.gmra.mrb[0].mxu0 %v609
    %v1153 = vpop.f32.mrb[0].mxu0
    %v1154 = vadd.f32 %v200, %v1153
    %v1155 = vpop.f32.mrb[0].mxu0
    %v1156 = vpop.f32.mrb[0].mxu0
    %v1157 = vadd.f32 %v200, %v1156
    %v1158 = vpop.f32.mrb[0].mxu0
    %1159 = vmatprep.mubr.bf16.mxu0 %v613
    %1160 = vmatmul.mubr.bf16.gmra.mrb[0].mxu0 %v612
    %v1161 = vpop.f32.mrb[0].mxu0
    %v1162 = vadd.f32 %v200, %v1161
    %v1163 = vpop.f32.mrb[0].mxu0
    %v1164 = vpop.f32.mrb[0].mxu0
    %v1165 = vadd.f32 %v200, %v1164
    %v1166 = vpop.f32.mrb[0].mxu0
    %1167 = vmatprep.mubr.bf16.mxu0 %v616
    %1168 = vmatmul.mubr.bf16.gmra.mrb[0].mxu0 %v615
    %v1169 = vpop.f32.mrb[0].mxu0
    %v1170 = vadd.f32 %v200, %v1169
    %v1171 = vpop.f32.mrb[0].mxu0
    %v1172 = vpop.f32.mrb[0].mxu0
    %v1173 = vadd.f32 %v200, %v1172
    %v1174 = vpop.f32.mrb[0].mxu0
    %1175 = vdwg.mxu0
    %1176 = vmatprep.subr.bf16.mxu0 0
    %1177 = vmatpush1.bf16.msra.mxu0 %v770
    %1178 = vmatprep.subr.bf16.mxu0 0
    %1179 = vmatpush1.bf16.msra.mxu0 %v771
    %1180 = vmatprep.subr.bf16.mxu0 0
    %1181 = vmatpush1.bf16.msra.mxu0 0
    %1182 = vmatprep.subr.bf16.mxu0 0
    %1183 = vmatpush1.bf16.msra.mxu0 0
    %1184 = vmatprep.subr.bf16.mxu0 0
    %1185 = vmatpush1.bf16.msra.mxu0 0
    %1186 = vmatprep.subr.bf16.mxu0 0
    %1187 = vmatpush1.bf16.msra.mxu0 0
    %1188 = vmatprep.subr.bf16.mxu0 0
    %1189 = vmatpush1.bf16.msra.mxu0 0
    %1190 = vmatprep.subr.bf16.mxu0 0
    %1191 = vmatpush1.bf16.msra.mxu0 0
    %1192 = vmatprep.subr.bf16.mxu0 0
    %1193 = vmatpush1.bf16.msra.mxu0 0
    %1194 = vmatprep.subr.bf16.mxu0 0
    %1195 = vmatpush1.bf16.msra.mxu0 0
    %1196 = vmatprep.subr.bf16.mxu0 0
    %1197 = vmatpush1.bf16.msra.mxu0 0
    %1198 = vmatprep.subr.bf16.mxu0 0
    %1199 = vmatpush1.bf16.msra.mxu0 0
    %1200 = vmatprep.subr.bf16.mxu0 0
    %1201 = vmatpush1.bf16.msra.mxu0 0
    %1202 = vmatprep.subr.bf16.mxu0 0
    %1203 = vmatpush1.bf16.msra.mxu0 0
    %1204 = vmatprep.subr.bf16.mxu0 0
    %1205 = vmatpush1.bf16.msra.mxu0 0
    %1206 = vmatprep.subr.bf16.mxu0 0
    %1207 = vmatpush1.bf16.msra.mxu0 0
    %1208 = vmatprep.mubr.bf16.mxu0 0
    %1209 = vmatmul.mubr.bf16.gmra.mrb[0].mxu0 %v792
    %v1210 = vpop.f32.mrb[0].mxu0
    %v1211 = vadd.f32 %v922, %v1210
    %v1212 = vpop.f32.mrb[0].mxu0
    %v1213 = vpop.f32.mrb[0].mxu0
    %v1214 = vadd.f32 %v925, %v1213
    %v1215 = vpop.f32.mrb[0].mxu0
    %1216 = vmatprep.mubr.bf16.mxu0 0
    %1217 = vmatmul.mubr.bf16.gmra.mrb[0].mxu0 %v795
    %v1218 = vpop.f32.mrb[0].mxu0
    %v1219 = vadd.f32 %v930, %v1218
    %v1220 = vpop.f32.mrb[0].mxu0
    %v1221 = vpop.f32.mrb[0].mxu0
    %v1222 = vadd.f32 %v933, %v1221
    %v1223 = vpop.f32.mrb[0].mxu0
    %1224 = vmatprep.mubr.bf16.mxu0 0
    %1225 = vmatmul.mubr.bf16.gmra.mrb[0].mxu0 %v798
    %v1226 = vpop.f32.mrb[0].mxu0
    %v1227 = vadd.f32 %v938, %v1226
    %v1228 = vpop.f32.mrb[0].mxu0
    %v1229 = vpop.f32.mrb[0].mxu0
    %v1230 = vadd.f32 %v941, %v1229
    %v1231 = vpop.f32.mrb[0].mxu0
    %1232 = vmatprep.mubr.bf16.mxu0 0
    %1233 = vmatmul.mubr.bf16.gmra.mrb[0].mxu0 %v801
    %v1234 = vpop.f32.mrb[0].mxu0
    %v1235 = vadd.f32 %v946, %v1234
    %v1236 = vpop.f32.mrb[0].mxu0
    %v1237 = vpop.f32.mrb[0].mxu0
    %v1238 = vadd.f32 %v949, %v1237
    %v1239 = vpop.f32.mrb[0].mxu0
    %1240 = vmatprep.mubr.bf16.mxu0 0
    %1241 = vmatmul.mubr.bf16.gmra.mrb[0].mxu0 %v804
    %v1242 = vpop.f32.mrb[0].mxu0
    %v1243 = vadd.f32 %v954, %v1242
    %v1244 = vpop.f32.mrb[0].mxu0
    %v1245 = vpop.f32.mrb[0].mxu0
    %v1246 = vadd.f32 %v957, %v1245
    %v1247 = vpop.f32.mrb[0].mxu0
    %1248 = vmatprep.mubr.bf16.mxu0 0
    %1249 = vmatmul.mubr.bf16.gmra.mrb[0].mxu0 %v807
    %v1250 = vpop.f32.mrb[0].mxu0
    %v1251 = vadd.f32 %v962, %v1250
    %v1252 = vpop.f32.mrb[0].mxu0
    %v1253 = vpop.f32.mrb[0].mxu0
    %v1254 = vadd.f32 %v965, %v1253
    %v1255 = vpop.f32.mrb[0].mxu0
    %1256 = vmatprep.mubr.bf16.mxu0 0
    %1257 = vmatmul.mubr.bf16.gmra.mrb[0].mxu0 %v810
    %v1258 = vpop.f32.mrb[0].mxu0
    %v1259 = vadd.f32 %v970, %v1258
    %v1260 = vpop.f32.mrb[0].mxu0
    %v1261 = vpop.f32.mrb[0].mxu0
    %v1262 = vadd.f32 %v973, %v1261
    %v1263 = vpop.f32.mrb[0].mxu0
    %1264 = vmatprep.mubr.bf16.mxu0 0
    %1265 = vmatmul.mubr.bf16.gmra.mrb[0].mxu0 %v813
    %v1266 = vpop.f32.mrb[0].mxu0
    %v1267 = vadd.f32 %v978, %v1266
    %v1268 = vpop.f32.mrb[0].mxu0
    %v1269 = vpop.f32.mrb[0].mxu0
    %v1270 = vadd.f32 %v981, %v1269
    %v1271 = vpop.f32.mrb[0].mxu0
    %1272 = vmatprep.mubr.bf16.mxu0 0
    %1273 = vmatmul.mubr.bf16.gmra.mrb[0].mxu0 %v816
    %v1274 = vpop.f32.mrb[0].mxu0
    %v1275 = vadd.f32 %v986, %v1274
    %v1276 = vpop.f32.mrb[0].mxu0
    %v1277 = vpop.f32.mrb[0].mxu0
    %v1278 = vadd.f32 %v989, %v1277
    %v1279 = vpop.f32.mrb[0].mxu0
    %1280 = vmatprep.mubr.bf16.mxu0 0
    %1281 = vmatmul.mubr.bf16.gmra.mrb[0].mxu0 %v819
    %v1282 = vpop.f32.mrb[0].mxu0
    %v1283 = vadd.f32 %v994, %v1282
    %v1284 = vpop.f32.mrb[0].mxu0
    %v1285 = vpop.f32.mrb[0].mxu0
    %v1286 = vadd.f32 %v997, %v1285
    %v1287 = vpop.f32.mrb[0].mxu0
    %1288 = vmatprep.mubr.bf16.mxu0 0
    %1289 = vmatmul.mubr.bf16.gmra.mrb[0].mxu0 %v822
    %v1290 = vpop.f32.mrb[0].mxu0
    %v1291 = vadd.f32 %v1002, %v1290
    %v1292 = vpop.f32.mrb[0].mxu0
    %v1293 = vpop.f32.mrb[0].mxu0
    %v1294 = vadd.f32 %v1005, %v1293
    %v1295 = vpop.f32.mrb[0].mxu0
    %1296 = vmatprep.mubr.bf16.mxu0 0
    %1297 = vmatmul.mubr.bf16.gmra.mrb[0].mxu0 %v825
    %v1298 = vpop.f32.mrb[0].mxu0
    %v1299 = vadd.f32 %v1010, %v1298
    %v1300 = vpop.f32.mrb[0].mxu0
    %v1301 = vpop.f32.mrb[0].mxu0
    %v1302 = vadd.f32 %v1013, %v1301
    %v1303 = vpop.f32.mrb[0].mxu0
    %1304 = vmatprep.mubr.bf16.mxu0 0
    %1305 = vmatmul.mubr.bf16.gmra.mrb[0].mxu0 %v828
    %v1306 = vpop.f32.mrb[0].mxu0
    %v1307 = vadd.f32 %v1018, %v1306
    %v1308 = vpop.f32.mrb[0].mxu0
    %v1309 = vpop.f32.mrb[0].mxu0
    %v1310 = vadd.f32 %v1021, %v1309
    %v1311 = vpop.f32.mrb[0].mxu0
    %1312 = vmatprep.mubr.bf16.mxu0 0
    %1313 = vmatmul.mubr.bf16.gmra.mrb[0].mxu0 %v831
    %v1314 = vpop.f32.mrb[0].mxu0
    %v1315 = vadd.f32 %v1026, %v1314
    %v1316 = vpop.f32.mrb[0].mxu0
    %v1317 = vpop.f32.mrb[0].mxu0
    %v1318 = vadd.f32 %v1029, %v1317
    %v1319 = vpop.f32.mrb[0].mxu0
    %1320 = vmatprep.mubr.bf16.mxu0 0
    %1321 = vmatmul.mubr.bf16.gmra.mrb[0].mxu0 %v834
    %v1322 = vpop.f32.mrb[0].mxu0
    %v1323 = vadd.f32 %v1034, %v1322
    %v1324 = vpop.f32.mrb[0].mxu0
    %v1325 = vpop.f32.mrb[0].mxu0
    %v1326 = vadd.f32 %v1037, %v1325
    %v1327 = vpop.f32.mrb[0].mxu0
    %1328 = vmatprep.mubr.bf16.mxu0 0
    %1329 = vmatmul.mubr.bf16.gmra.mrb[0].mxu0 %v837
    %v1330 = vpop.f32.mrb[0].mxu0
    %v1331 = vadd.f32 %v1042, %v1330
    %v1332 = vpop.f32.mrb[0].mxu0
    %v1333 = vpop.f32.mrb[0].mxu0
    %v1334 = vadd.f32 %v1045, %v1333
    %v1335 = vpop.f32.mrb[0].mxu0
    %1336 = vmatprep.mubr.bf16.mxu0 0
    %1337 = vmatmul.mubr.bf16.gmra.mrb[0].mxu0 %v840
    %v1338 = vpop.f32.mrb[0].mxu0
    %v1339 = vadd.f32 %v1050, %v1338
    %v1340 = vpop.f32.mrb[0].mxu0
    %v1341 = vpop.f32.mrb[0].mxu0
    %v1342 = vadd.f32 %v1053, %v1341
    %v1343 = vpop.f32.mrb[0].mxu0
    %1344 = vmatprep.mubr.bf16.mxu0 0
    %1345 = vmatmul.mubr.bf16.gmra.mrb[0].mxu0 %v843
    %v1346 = vpop.f32.mrb[0].mxu0
    %v1347 = vadd.f32 %v1058, %v1346
    %v1348 = vpop.f32.mrb[0].mxu0
    %v1349 = vpop.f32.mrb[0].mxu0
    %v1350 = vadd.f32 %v1061, %v1349
    %v1351 = vpop.f32.mrb[0].mxu0
    %1352 = vmatprep.mubr.bf16.mxu0 0
    %1353 = vmatmul.mubr.bf16.gmra.mrb[0].mxu0 %v846
    %v1354 = vpop.f32.mrb[0].mxu0
    %v1355 = vadd.f32 %v1066, %v1354
    %v1356 = vpop.f32.mrb[0].mxu0
    %v1357 = vpop.f32.mrb[0].mxu0
    %v1358 = vadd.f32 %v1069, %v1357
    %v1359 = vpop.f32.mrb[0].mxu0
    %1360 = vmatprep.mubr.bf16.mxu0 0
    %1361 = vmatmul.mubr.bf16.gmra.mrb[0].mxu0 %v849
    %v1362 = vpop.f32.mrb[0].mxu0
    %v1363 = vadd.f32 %v1074, %v1362
    %v1364 = vpop.f32.mrb[0].mxu0
    %v1365 = vpop.f32.mrb[0].mxu0
    %v1366 = vadd.f32 %v1077, %v1365
    %v1367 = vpop.f32.mrb[0].mxu0
    %1368 = vmatprep.mubr.bf16.mxu0 0
    %1369 = vmatmul.mubr.bf16.gmra.mrb[0].mxu0 %v852
    %v1370 = vpop.f32.mrb[0].mxu0
    %v1371 = vadd.f32 %v1082, %v1370
    %v1372 = vpop.f32.mrb[0].mxu0
    %v1373 = vpop.f32.mrb[0].mxu0
    %v1374 = vadd.f32 %v1085, %v1373
    %v1375 = vpop.f32.mrb[0].mxu0
    %1376 = vmatprep.mubr.bf16.mxu0 0
    %1377 = vmatmul.mubr.bf16.gmra.mrb[0].mxu0 %v855
    %v1378 = vpop.f32.mrb[0].mxu0
    %v1379 = vadd.f32 %v1090, %v1378
    %v1380 = vpop.f32.mrb[0].mxu0
    %v1381 = vpop.f32.mrb[0].mxu0
    %v1382 = vadd.f32 %v1093, %v1381
    %v1383 = vpop.f32.mrb[0].mxu0
    %1384 = vmatprep.mubr.bf16.mxu0 0
    %1385 = vmatmul.mubr.bf16.gmra.mrb[0].mxu0 %v858
    %v1386 = vpop.f32.mrb[0].mxu0
    %v1387 = vadd.f32 %v1098, %v1386
    %v1388 = vpop.f32.mrb[0].mxu0
    %v1389 = vpop.f32.mrb[0].mxu0
    %v1390 = vadd.f32 %v1101, %v1389
    %v1391 = vpop.f32.mrb[0].mxu0
    %1392 = vmatprep.mubr.bf16.mxu0 0
    %1393 = vmatmul.mubr.bf16.gmra.mrb[0].mxu0 %v861
    %v1394 = vpop.f32.mrb[0].mxu0
    %v1395 = vadd.f32 %v1106, %v1394
    %v1396 = vpop.f32.mrb[0].mxu0
    %v1397 = vpop.f32.mrb[0].mxu0
    %v1398 = vadd.f32 %v1109, %v1397
    %v1399 = vpop.f32.mrb[0].mxu0
    %1400 = vmatprep.mubr.bf16.mxu0 0
    %1401 = vmatmul.mubr.bf16.gmra.mrb[0].mxu0 %v864
    %v1402 = vpop.f32.mrb[0].mxu0
    %v1403 = vadd.f32 %v1114, %v1402
    %v1404 = vpop.f32.mrb[0].mxu0
    %v1405 = vpop.f32.mrb[0].mxu0
    %v1406 = vadd.f32 %v1117, %v1405
    %v1407 = vpop.f32.mrb[0].mxu0
    %1408 = vmatprep.mubr.bf16.mxu0 0
    %1409 = vmatmul.mubr.bf16.gmra.mrb[0].mxu0 %v867
    %v1410 = vpop.f32.mrb[0].mxu0
    %v1411 = vadd.f32 %v1122, %v1410
    %v1412 = vpop.f32.mrb[0].mxu0
    %v1413 = vpop.f32.mrb[0].mxu0
    %v1414 = vadd.f32 %v1125, %v1413
    %v1415 = vpop.f32.mrb[0].mxu0
    %1416 = vmatprep.mubr.bf16.mxu0 0
    %1417 = vmatmul.mubr.bf16.gmra.mrb[0].mxu0 %v870
    %v1418 = vpop.f32.mrb[0].mxu0
    %v1419 = vadd.f32 %v1130, %v1418
    %v1420 = vpop.f32.mrb[0].mxu0
    %v1421 = vpop.f32.mrb[0].mxu0
    %v1422 = vadd.f32 %v1133, %v1421
    %v1423 = vpop.f32.mrb[0].mxu0
    %1424 = vmatprep.mubr.bf16.mxu0 0
    %1425 = vmatmul.mubr.bf16.gmra.mrb[0].mxu0 %v873
    %v1426 = vpop.f32.mrb[0].mxu0
    %v1427 = vadd.f32 %v1138, %v1426
    %v1428 = vpop.f32.mrb[0].mxu0
    %v1429 = vpop.f32.mrb[0].mxu0
    %v1430 = vadd.f32 %v1141, %v1429
    %v1431 = vpop.f32.mrb[0].mxu0
    %1432 = vmatprep.mubr.bf16.mxu0 0
    %1433 = vmatmul.mubr.bf16.gmra.mrb[0].mxu0 %v876
    %v1434 = vpop.f32.mrb[0].mxu0
    %v1435 = vadd.f32 %v1146, %v1434
    %v1436 = vpop.f32.mrb[0].mxu0
    %v1437 = vpop.f32.mrb[0].mxu0
    %v1438 = vadd.f32 %v1149, %v1437
    %v1439 = vpop.f32.mrb[0].mxu0
    %1440 = vmatprep.mubr.bf16.mxu0 0
    %1441 = vmatmul.mubr.bf16.gmra.mrb[0].mxu0 %v879
    %v1442 = vpop.f32.mrb[0].mxu0
    %v1443 = vadd.f32 %v1154, %v1442
    %v1444 = vpop.f32.mrb[0].mxu0
    %v1445 = vpop.f32.mrb[0].mxu0
    %v1446 = vadd.f32 %v1157, %v1445
    %v1447 = vpop.f32.mrb[0].mxu0
    %1448 = vmatprep.mubr.bf16.mxu0 0
    %1449 = vmatmul.mubr.bf16.gmra.mrb[0].mxu0 %v882
    %v1450 = vpop.f32.mrb[0].mxu0
    %v1451 = vadd.f32 %v1162, %v1450
    %v1452 = vpop.f32.mrb[0].mxu0
    %v1453 = vpop.f32.mrb[0].mxu0
    %v1454 = vadd.f32 %v1165, %v1453
    %v1455 = vpop.f32.mrb[0].mxu0
    %1456 = vmatprep.mubr.bf16.mxu0 0
    %1457 = vmatmul.mubr.bf16.gmra.mrb[0].mxu0 %v885
    %v1458 = vpop.f32.mrb[0].mxu0
    %v1459 = vadd.f32 %v1170, %v1458
    %v1460 = vpop.f32.mrb[0].mxu0
    %v1461 = vpop.f32.mrb[0].mxu0
    %v1462 = vadd.f32 %v1173, %v1461
    %v1463 = vpop.f32.mrb[0].mxu0
    %1464 = vdwg.mxu0
    %v1465 = vmax.f32 %v1211, 0.0
    %v1466 = vmax.f32 %v1214, 0.0
    %v1467 = vmax.f32 %v1219, 0.0
    %v1468 = vmax.f32 %v1222, 0.0
    %v1469 = vmax.f32 %v1227, 0.0
    %v1470 = vmax.f32 %v1230, 0.0
    %v1471 = vmax.f32 %v1235, 0.0
    %v1472 = vmax.f32 %v1238, 0.0
    %v1473 = vmax.f32 %v1243, 0.0
    %v1474 = vmax.f32 %v1246, 0.0
    %v1475 = vmax.f32 %v1251, 0.0
    %v1476 = vmax.f32 %v1254, 0.0
    %v1477 = vmax.f32 %v1259, 0.0
    %v1478 = vmax.f32 %v1262, 0.0
    %v1479 = vmax.f32 %v1267, 0.0
    %v1480 = vmax.f32 %v1270, 0.0
    %v1481 = vmax.f32 %v1275, 0.0
    %v1482 = vmax.f32 %v1278, 0.0
    %v1483 = vmax.f32 %v1283, 0.0
    %v1484 = vmax.f32 %v1286, 0.0
    %v1485 = vmax.f32 %v1291, 0.0
    %v1486 = vmax.f32 %v1294, 0.0
    %v1487 = vmax.f32 %v1299, 0.0
    %v1488 = vmax.f32 %v1302, 0.0
    %v1489 = vmax.f32 %v1307, 0.0
    %v1490 = vmax.f32 %v1310, 0.0
    %v1491 = vmax.f32 %v1315, 0.0
    %v1492 = vmax.f32 %v1318, 0.0
    %v1493 = vmax.f32 %v1323, 0.0
    %v1494 = vmax.f32 %v1326, 0.0
    %v1495 = vmax.f32 %v1331, 0.0
    %v1496 = vmax.f32 %v1334, 0.0
    %v1497 = vmax.f32 %v1339, 0.0
    %v1498 = vmax.f32 %v1342, 0.0
    %v1499 = vmax.f32 %v1347, 0.0
    %v1500 = vmax.f32 %v1350, 0.0
    %v1501 = vmax.f32 %v1355, 0.0
    %v1502 = vmax.f32 %v1358, 0.0
    %v1503 = vmax.f32 %v1363, 0.0
    %v1504 = vmax.f32 %v1366, 0.0
    %v1505 = vmax.f32 %v1371, 0.0
    %v1506 = vmax.f32 %v1374, 0.0
    %v1507 = vmax.f32 %v1379, 0.0
    %v1508 = vmax.f32 %v1382, 0.0
    %v1509 = vmax.f32 %v1387, 0.0
    %v1510 = vmax.f32 %v1390, 0.0
    %v1511 = vmax.f32 %v1395, 0.0
    %v1512 = vmax.f32 %v1398, 0.0
    %v1513 = vmax.f32 %v1403, 0.0
    %v1514 = vmax.f32 %v1406, 0.0
    %v1515 = vmax.f32 %v1411, 0.0
    %v1516 = vmax.f32 %v1414, 0.0
    %v1517 = vmax.f32 %v1419, 0.0
    %v1518 = vmax.f32 %v1422, 0.0
    %v1519 = vmax.f32 %v1427, 0.0
    %v1520 = vmax.f32 %v1430, 0.0
    %v1521 = vmax.f32 %v1435, 0.0
    %v1522 = vmax.f32 %v1438, 0.0
    %v1523 = vmax.f32 %v1443, 0.0
    %v1524 = vmax.f32 %v1446, 0.0
    %v1525 = vmax.f32 %v1451, 0.0
    %v1526 = vmax.f32 %v1454, 0.0
    %v1527 = vmax.f32 %v1459, 0.0
    %v1528 = vmax.f32 %v1462, 0.0
    %v1529 = vpack.c.bf16 %v1466, %v1465
    %v1530 = vpack.c.bf16 %v1468, %v1467
    %v1531 = vpack.c.bf16 %v1470, %v1469
    %v1532 = vpack.c.bf16 %v1472, %v1471
    %v1533 = vpack.c.bf16 %v1474, %v1473
    %v1534 = vpack.c.bf16 %v1476, %v1475
    %v1535 = vpack.c.bf16 %v1478, %v1477
    %v1536 = vpack.c.bf16 %v1480, %v1479
    %v1537 = vpack.c.bf16 %v1482, %v1481
    %v1538 = vpack.c.bf16 %v1484, %v1483
    %v1539 = vpack.c.bf16 %v1486, %v1485
    %v1540 = vpack.c.bf16 %v1488, %v1487
    %v1541 = vpack.c.bf16 %v1490, %v1489
    %v1542 = vpack.c.bf16 %v1492, %v1491
    %v1543 = vpack.c.bf16 %v1494, %v1493
    %v1544 = vpack.c.bf16 %v1496, %v1495
    %v1545 = vpack.c.bf16 %v1498, %v1497
    %v1546 = vpack.c.bf16 %v1500, %v1499
    %v1547 = vpack.c.bf16 %v1502, %v1501
    %v1548 = vpack.c.bf16 %v1504, %v1503
    %v1549 = vpack.c.bf16 %v1506, %v1505
    %v1550 = vpack.c.bf16 %v1508, %v1507
    %v1551 = vpack.c.bf16 %v1510, %v1509
    %v1552 = vpack.c.bf16 %v1512, %v1511
    %v1553 = vpack.c.bf16 %v1514, %v1513
    %v1554 = vpack.c.bf16 %v1516, %v1515
    %v1555 = vpack.c.bf16 %v1518, %v1517
    %v1556 = vpack.c.bf16 %v1520, %v1519
    %v1557 = vpack.c.bf16 %v1522, %v1521
    %v1558 = vpack.c.bf16 %v1524, %v1523
    %v1559 = vpack.c.bf16 %v1526, %v1525
    %v1560 = vpack.c.bf16 %v1528, %v1527
    %v1561 = vld [vmem:[%s4] sm:$0xf]
    %v1562 = vld [vmem:[%s4 + $0x4] sm:$0xf]
    %v1563 = vld [vmem:[%s4 + $0x8] sm:$0xf]
    %v1564 = vld [vmem:[%s4 + $0xc] sm:$0xf]
    %v1565 = vld [vmem:[%s5] sm:$0x1]
    %v1567 = vlaneseq
    %v1568 = vshrl.u32 %v1567, 7
    %v1569 = vsub.s32 0, %v1568
    %v1570 = vrot.slane %v1565, %v1569
    %v1576 = vunpack.c.l.b16 %v1561
    %v1577 = vunpack.c.l.b16 %v1562
    %v1578 = vunpack.c.l.b16 %v1563
    %v1579 = vunpack.c.l.b16 %v1564
    %v1580 = vpack.c.b16 %v1577, %v1576
    %v1581 = vpack.c.b16 %v1579, %v1578
    %v1585 = vsel %vm790, %v1529, 0
    %v1588 = vsel %vm790, %v1530, 0
    %v1591 = vsel %vm790, %v1531, 0
    %v1594 = vsel %vm790, %v1532, 0
    %v1597 = vsel %vm790, %v1533, 0
    %v1600 = vsel %vm790, %v1534, 0
    %v1603 = vsel %vm790, %v1535, 0
    %v1606 = vsel %vm790, %v1536, 0
    %v1609 = vsel %vm790, %v1537, 0
    %v1612 = vsel %vm790, %v1538, 0
    %v1615 = vsel %vm790, %v1539, 0
    %v1618 = vsel %vm790, %v1540, 0
    %v1621 = vsel %vm790, %v1541, 0
    %v1624 = vsel %vm790, %v1542, 0
    %v1627 = vsel %vm790, %v1543, 0
    %v1630 = vsel %vm790, %v1544, 0
    %v1633 = vsel %vm790, %v1545, 0
    %v1636 = vsel %vm790, %v1546, 0
    %v1639 = vsel %vm790, %v1547, 0
    %v1642 = vsel %vm790, %v1548, 0
    %v1645 = vsel %vm790, %v1549, 0
    %v1648 = vsel %vm790, %v1550, 0
    %v1651 = vsel %vm790, %v1551, 0
    %v1654 = vsel %vm790, %v1552, 0
    %v1657 = vsel %vm790, %v1553, 0
    %v1660 = vsel %vm790, %v1554, 0
    %v1663 = vsel %vm790, %v1555, 0
    %v1666 = vsel %vm790, %v1556, 0
    %v1669 = vsel %vm790, %v1557, 0
    %v1672 = vsel %vm790, %v1558, 0
    %v1675 = vsel %vm790, %v1559, 0
    %v1678 = vsel %vm790, %v1560, 0
    %1680 = vmatprep.subr.bf16.mxu0 0
    %1681 = vmatpush1.bf16.msra.mxu0 %v1580
    %1682 = vmatprep.subr.bf16.mxu0 0
    %1683 = vmatpush1.bf16.msra.mxu0 %v1581
    %1684 = vmatprep.subr.bf16.mxu0 0
    %1685 = vmatpush1.bf16.msra.mxu0 0
    %1686 = vmatprep.subr.bf16.mxu0 0
    %1687 = vmatpush1.bf16.msra.mxu0 0
    %1688 = vmatprep.subr.bf16.mxu0 0
    %1689 = vmatpush1.bf16.msra.mxu0 0
    %1690 = vmatprep.subr.bf16.mxu0 0
    %1691 = vmatpush1.bf16.msra.mxu0 0
    %1692 = vmatprep.subr.bf16.mxu0 0
    %1693 = vmatpush1.bf16.msra.mxu0 0
    %1694 = vmatprep.subr.bf16.mxu0 0
    %1695 = vmatpush1.bf16.msra.mxu0 0
    %1696 = vmatprep.subr.bf16.mxu0 0
    %1697 = vmatpush1.bf16.msra.mxu0 0
    %1698 = vmatprep.subr.bf16.mxu0 0
    %1699 = vmatpush1.bf16.msra.mxu0 0
    %1700 = vmatprep.subr.bf16.mxu0 0
    %1701 = vmatpush1.bf16.msra.mxu0 0
    %1702 = vmatprep.subr.bf16.mxu0 0
    %1703 = vmatpush1.bf16.msra.mxu0 0
    %1704 = vmatprep.subr.bf16.mxu0 0
    %1705 = vmatpush1.bf16.msra.mxu0 0
    %1706 = vmatprep.subr.bf16.mxu0 0
    %1707 = vmatpush1.bf16.msra.mxu0 0
    %1708 = vmatprep.subr.bf16.mxu0 0
    %1709 = vmatpush1.bf16.msra.mxu0 0
    %1710 = vmatprep.subr.bf16.mxu0 0
    %1711 = vmatpush1.bf16.msra.mxu0 0
    %1712 = vmatprep.mubr.bf16.mxu0 0
    %1713 = vmatmul.mubr.bf16.gmra.mrb[0].mxu0 %v1585
    %v1714 = vpop.f32.mrb[0].mxu0
    %v1715 = vadd.f32 %v1570, %v1714
    %v1716 = vpop.f32.mrb[0].mxu0
    %v1717 = vpop.f32.mrb[0].mxu0
    %v1718 = vadd.f32 %v1570, %v1717
    %v1719 = vpop.f32.mrb[0].mxu0
    %1720 = vmatprep.mubr.bf16.mxu0 0
    %1721 = vmatmul.mubr.bf16.gmra.mrb[0].mxu0 %v1588
    %v1722 = vpop.f32.mrb[0].mxu0
    %v1723 = vadd.f32 %v1570, %v1722
    %v1724 = vpop.f32.mrb[0].mxu0
    %v1725 = vpop.f32.mrb[0].mxu0
    %v1726 = vadd.f32 %v1570, %v1725
    %v1727 = vpop.f32.mrb[0].mxu0
    %1728 = vmatprep.mubr.bf16.mxu0 0
    %1729 = vmatmul.mubr.bf16.gmra.mrb[0].mxu0 %v1591
    %v1730 = vpop.f32.mrb[0].mxu0
    %v1731 = vadd.f32 %v1570, %v1730
    %v1732 = vpop.f32.mrb[0].mxu0
    %v1733 = vpop.f32.mrb[0].mxu0
    %v1734 = vadd.f32 %v1570, %v1733
    %v1735 = vpop.f32.mrb[0].mxu0
    %1736 = vmatprep.mubr.bf16.mxu0 0
    %1737 = vmatmul.mubr.bf16.gmra.mrb[0].mxu0 %v1594
    %v1738 = vpop.f32.mrb[0].mxu0
    %v1739 = vadd.f32 %v1570, %v1738
    %v1740 = vpop.f32.mrb[0].mxu0
    %v1741 = vpop.f32.mrb[0].mxu0
    %v1742 = vadd.f32 %v1570, %v1741
    %v1743 = vpop.f32.mrb[0].mxu0
    %1744 = vmatprep.mubr.bf16.mxu0 0
    %1745 = vmatmul.mubr.bf16.gmra.mrb[0].mxu0 %v1597
    %v1746 = vpop.f32.mrb[0].mxu0
    %v1747 = vadd.f32 %v1570, %v1746
    %v1748 = vpop.f32.mrb[0].mxu0
    %v1749 = vpop.f32.mrb[0].mxu0
    %v1750 = vadd.f32 %v1570, %v1749
    %v1751 = vpop.f32.mrb[0].mxu0
    %1752 = vmatprep.mubr.bf16.mxu0 0
    %1753 = vmatmul.mubr.bf16.gmra.mrb[0].mxu0 %v1600
    %v1754 = vpop.f32.mrb[0].mxu0
    %v1755 = vadd.f32 %v1570, %v1754
    %v1756 = vpop.f32.mrb[0].mxu0
    %v1757 = vpop.f32.mrb[0].mxu0
    %v1758 = vadd.f32 %v1570, %v1757
    %v1759 = vpop.f32.mrb[0].mxu0
    %1760 = vmatprep.mubr.bf16.mxu0 0
    %1761 = vmatmul.mubr.bf16.gmra.mrb[0].mxu0 %v1603
    %v1762 = vpop.f32.mrb[0].mxu0
    %v1763 = vadd.f32 %v1570, %v1762
    %v1764 = vpop.f32.mrb[0].mxu0
    %v1765 = vpop.f32.mrb[0].mxu0
    %v1766 = vadd.f32 %v1570, %v1765
    %v1767 = vpop.f32.mrb[0].mxu0
    %1768 = vmatprep.mubr.bf16.mxu0 0
    %1769 = vmatmul.mubr.bf16.gmra.mrb[0].mxu0 %v1606
    %v1770 = vpop.f32.mrb[0].mxu0
    %v1771 = vadd.f32 %v1570, %v1770
    %v1772 = vpop.f32.mrb[0].mxu0
    %v1773 = vpop.f32.mrb[0].mxu0
    %v1774 = vadd.f32 %v1570, %v1773
    %v1775 = vpop.f32.mrb[0].mxu0
    %1776 = vmatprep.mubr.bf16.mxu0 0
    %1777 = vmatmul.mubr.bf16.gmra.mrb[0].mxu0 %v1609
    %v1778 = vpop.f32.mrb[0].mxu0
    %v1779 = vadd.f32 %v1570, %v1778
    %v1780 = vpop.f32.mrb[0].mxu0
    %v1781 = vpop.f32.mrb[0].mxu0
    %v1782 = vadd.f32 %v1570, %v1781
    %v1783 = vpop.f32.mrb[0].mxu0
    %1784 = vmatprep.mubr.bf16.mxu0 0
    %1785 = vmatmul.mubr.bf16.gmra.mrb[0].mxu0 %v1612
    %v1786 = vpop.f32.mrb[0].mxu0
    %v1787 = vadd.f32 %v1570, %v1786
    %v1788 = vpop.f32.mrb[0].mxu0
    %v1789 = vpop.f32.mrb[0].mxu0
    %v1790 = vadd.f32 %v1570, %v1789
    %v1791 = vpop.f32.mrb[0].mxu0
    %1792 = vmatprep.mubr.bf16.mxu0 0
    %1793 = vmatmul.mubr.bf16.gmra.mrb[0].mxu0 %v1615
    %v1794 = vpop.f32.mrb[0].mxu0
    %v1795 = vadd.f32 %v1570, %v1794
    %v1796 = vpop.f32.mrb[0].mxu0
    %v1797 = vpop.f32.mrb[0].mxu0
    %v1798 = vadd.f32 %v1570, %v1797
    %v1799 = vpop.f32.mrb[0].mxu0
    %1800 = vmatprep.mubr.bf16.mxu0 0
    %1801 = vmatmul.mubr.bf16.gmra.mrb[0].mxu0 %v1618
    %v1802 = vpop.f32.mrb[0].mxu0
    %v1803 = vadd.f32 %v1570, %v1802
    %v1804 = vpop.f32.mrb[0].mxu0
    %v1805 = vpop.f32.mrb[0].mxu0
    %v1806 = vadd.f32 %v1570, %v1805
    %v1807 = vpop.f32.mrb[0].mxu0
    %1808 = vmatprep.mubr.bf16.mxu0 0
    %1809 = vmatmul.mubr.bf16.gmra.mrb[0].mxu0 %v1621
    %v1810 = vpop.f32.mrb[0].mxu0
    %v1811 = vadd.f32 %v1570, %v1810
    %v1812 = vpop.f32.mrb[0].mxu0
    %v1813 = vpop.f32.mrb[0].mxu0
    %v1814 = vadd.f32 %v1570, %v1813
    %v1815 = vpop.f32.mrb[0].mxu0
    %1816 = vmatprep.mubr.bf16.mxu0 0
    %1817 = vmatmul.mubr.bf16.gmra.mrb[0].mxu0 %v1624
    %v1818 = vpop.f32.mrb[0].mxu0
    %v1819 = vadd.f32 %v1570, %v1818
    %v1820 = vpop.f32.mrb[0].mxu0
    %v1821 = vpop.f32.mrb[0].mxu0
    %v1822 = vadd.f32 %v1570, %v1821
    %v1823 = vpop.f32.mrb[0].mxu0
    %1824 = vmatprep.mubr.bf16.mxu0 0
    %1825 = vmatmul.mubr.bf16.gmra.mrb[0].mxu0 %v1627
    %v1826 = vpop.f32.mrb[0].mxu0
    %v1827 = vadd.f32 %v1570, %v1826
    %v1828 = vpop.f32.mrb[0].mxu0
    %v1829 = vpop.f32.mrb[0].mxu0
    %v1830 = vadd.f32 %v1570, %v1829
    %v1831 = vpop.f32.mrb[0].mxu0
    %1832 = vmatprep.mubr.bf16.mxu0 0
    %1833 = vmatmul.mubr.bf16.gmra.mrb[0].mxu0 %v1630
    %v1834 = vpop.f32.mrb[0].mxu0
    %v1835 = vadd.f32 %v1570, %v1834
    %v1836 = vpop.f32.mrb[0].mxu0
    %v1837 = vpop.f32.mrb[0].mxu0
    %v1838 = vadd.f32 %v1570, %v1837
    %v1839 = vpop.f32.mrb[0].mxu0
    %1840 = vmatprep.mubr.bf16.mxu0 0
    %1841 = vmatmul.mubr.bf16.gmra.mrb[0].mxu0 %v1633
    %v1842 = vpop.f32.mrb[0].mxu0
    %v1843 = vadd.f32 %v1570, %v1842
    %v1844 = vpop.f32.mrb[0].mxu0
    %v1845 = vpop.f32.mrb[0].mxu0
    %v1846 = vadd.f32 %v1570, %v1845
    %v1847 = vpop.f32.mrb[0].mxu0
    %1848 = vmatprep.mubr.bf16.mxu0 0
    %1849 = vmatmul.mubr.bf16.gmra.mrb[0].mxu0 %v1636
    %v1850 = vpop.f32.mrb[0].mxu0
    %v1851 = vadd.f32 %v1570, %v1850
    %v1852 = vpop.f32.mrb[0].mxu0
    %v1853 = vpop.f32.mrb[0].mxu0
    %v1854 = vadd.f32 %v1570, %v1853
    %v1855 = vpop.f32.mrb[0].mxu0
    %1856 = vmatprep.mubr.bf16.mxu0 0
    %1857 = vmatmul.mubr.bf16.gmra.mrb[0].mxu0 %v1639
    %v1858 = vpop.f32.mrb[0].mxu0
    %v1859 = vadd.f32 %v1570, %v1858
    %v1860 = vpop.f32.mrb[0].mxu0
    %v1861 = vpop.f32.mrb[0].mxu0
    %v1862 = vadd.f32 %v1570, %v1861
    %v1863 = vpop.f32.mrb[0].mxu0
    %1864 = vmatprep.mubr.bf16.mxu0 0
    %1865 = vmatmul.mubr.bf16.gmra.mrb[0].mxu0 %v1642
    %v1866 = vpop.f32.mrb[0].mxu0
    %v1867 = vadd.f32 %v1570, %v1866
    %v1868 = vpop.f32.mrb[0].mxu0
    %v1869 = vpop.f32.mrb[0].mxu0
    %v1870 = vadd.f32 %v1570, %v1869
    %v1871 = vpop.f32.mrb[0].mxu0
    %1872 = vmatprep.mubr.bf16.mxu0 0
    %1873 = vmatmul.mubr.bf16.gmra.mrb[0].mxu0 %v1645
    %v1874 = vpop.f32.mrb[0].mxu0
    %v1875 = vadd.f32 %v1570, %v1874
    %v1876 = vpop.f32.mrb[0].mxu0
    %v1877 = vpop.f32.mrb[0].mxu0
    %v1878 = vadd.f32 %v1570, %v1877
    %v1879 = vpop.f32.mrb[0].mxu0
    %1880 = vmatprep.mubr.bf16.mxu0 0
    %1881 = vmatmul.mubr.bf16.gmra.mrb[0].mxu0 %v1648
    %v1882 = vpop.f32.mrb[0].mxu0
    %v1883 = vadd.f32 %v1570, %v1882
    %v1884 = vpop.f32.mrb[0].mxu0
    %v1885 = vpop.f32.mrb[0].mxu0
    %v1886 = vadd.f32 %v1570, %v1885
    %v1887 = vpop.f32.mrb[0].mxu0
    %1888 = vmatprep.mubr.bf16.mxu0 0
    %1889 = vmatmul.mubr.bf16.gmra.mrb[0].mxu0 %v1651
    %v1890 = vpop.f32.mrb[0].mxu0
    %v1891 = vadd.f32 %v1570, %v1890
    %v1892 = vpop.f32.mrb[0].mxu0
    %v1893 = vpop.f32.mrb[0].mxu0
    %v1894 = vadd.f32 %v1570, %v1893
    %v1895 = vpop.f32.mrb[0].mxu0
    %1896 = vmatprep.mubr.bf16.mxu0 0
    %1897 = vmatmul.mubr.bf16.gmra.mrb[0].mxu0 %v1654
    %v1898 = vpop.f32.mrb[0].mxu0
    %v1899 = vadd.f32 %v1570, %v1898
    %v1900 = vpop.f32.mrb[0].mxu0
    %v1901 = vpop.f32.mrb[0].mxu0
    %v1902 = vadd.f32 %v1570, %v1901
    %v1903 = vpop.f32.mrb[0].mxu0
    %1904 = vmatprep.mubr.bf16.mxu0 0
    %1905 = vmatmul.mubr.bf16.gmra.mrb[0].mxu0 %v1657
    %v1906 = vpop.f32.mrb[0].mxu0
    %v1907 = vadd.f32 %v1570, %v1906
    %v1908 = vpop.f32.mrb[0].mxu0
    %v1909 = vpop.f32.mrb[0].mxu0
    %v1910 = vadd.f32 %v1570, %v1909
    %v1911 = vpop.f32.mrb[0].mxu0
    %1912 = vmatprep.mubr.bf16.mxu0 0
    %1913 = vmatmul.mubr.bf16.gmra.mrb[0].mxu0 %v1660
    %v1914 = vpop.f32.mrb[0].mxu0
    %v1915 = vadd.f32 %v1570, %v1914
    %v1916 = vpop.f32.mrb[0].mxu0
    %v1917 = vpop.f32.mrb[0].mxu0
    %v1918 = vadd.f32 %v1570, %v1917
    %v1919 = vpop.f32.mrb[0].mxu0
    %1920 = vmatprep.mubr.bf16.mxu0 0
    %1921 = vmatmul.mubr.bf16.gmra.mrb[0].mxu0 %v1663
    %v1922 = vpop.f32.mrb[0].mxu0
    %v1923 = vadd.f32 %v1570, %v1922
    %v1924 = vpop.f32.mrb[0].mxu0
    %v1925 = vpop.f32.mrb[0].mxu0
    %v1926 = vadd.f32 %v1570, %v1925
    %v1927 = vpop.f32.mrb[0].mxu0
    %1928 = vmatprep.mubr.bf16.mxu0 0
    %1929 = vmatmul.mubr.bf16.gmra.mrb[0].mxu0 %v1666
    %v1930 = vpop.f32.mrb[0].mxu0
    %v1931 = vadd.f32 %v1570, %v1930
    %v1932 = vpop.f32.mrb[0].mxu0
    %v1933 = vpop.f32.mrb[0].mxu0
    %v1934 = vadd.f32 %v1570, %v1933
    %v1935 = vpop.f32.mrb[0].mxu0
    %1936 = vmatprep.mubr.bf16.mxu0 0
    %1937 = vmatmul.mubr.bf16.gmra.mrb[0].mxu0 %v1669
    %v1938 = vpop.f32.mrb[0].mxu0
    %v1939 = vadd.f32 %v1570, %v1938
    %v1940 = vpop.f32.mrb[0].mxu0
    %v1941 = vpop.f32.mrb[0].mxu0
    %v1942 = vadd.f32 %v1570, %v1941
    %v1943 = vpop.f32.mrb[0].mxu0
    %1944 = vmatprep.mubr.bf16.mxu0 0
    %1945 = vmatmul.mubr.bf16.gmra.mrb[0].mxu0 %v1672
    %v1946 = vpop.f32.mrb[0].mxu0
    %v1947 = vadd.f32 %v1570, %v1946
    %v1948 = vpop.f32.mrb[0].mxu0
    %v1949 = vpop.f32.mrb[0].mxu0
    %v1950 = vadd.f32 %v1570, %v1949
    %v1951 = vpop.f32.mrb[0].mxu0
    %1952 = vmatprep.mubr.bf16.mxu0 0
    %1953 = vmatmul.mubr.bf16.gmra.mrb[0].mxu0 %v1675
    %v1954 = vpop.f32.mrb[0].mxu0
    %v1955 = vadd.f32 %v1570, %v1954
    %v1956 = vpop.f32.mrb[0].mxu0
    %v1957 = vpop.f32.mrb[0].mxu0
    %v1958 = vadd.f32 %v1570, %v1957
    %v1959 = vpop.f32.mrb[0].mxu0
    %1960 = vmatprep.mubr.bf16.mxu0 0
    %1961 = vmatmul.mubr.bf16.gmra.mrb[0].mxu0 %v1678
    %v1962 = vpop.f32.mrb[0].mxu0
    %v1963 = vadd.f32 %v1570, %v1962
    %v1964 = vpop.f32.mrb[0].mxu0
    %v1965 = vpop.f32.mrb[0].mxu0
    %v1966 = vadd.f32 %v1570, %v1965
    %v1967 = vpop.f32.mrb[0].mxu0
    %1968 = vdwg.mxu0
    %v1969 = vld [vmem:[%s1] sm:$0xf]
    %v1970 = vld [vmem:[%s1 + $0x4] sm:$0xf]
    %v1971 = vld [vmem:[%s1 + $0x8] sm:$0xf]
    %v1972 = vld [vmem:[%s1 + $0xc] sm:$0xf]
    %v1973 = vld [vmem:[%s1 + $0x10] sm:$0xf]
    %v1974 = vld [vmem:[%s1 + $0x14] sm:$0xf]
    %v1975 = vld [vmem:[%s1 + $0x18] sm:$0xf]
    %v1976 = vld [vmem:[%s1 + $0x1c] sm:$0xf]
    %v1977 = vld [vmem:[%s1 + $0x20] sm:$0xf]
    %v1978 = vld [vmem:[%s1 + $0x24] sm:$0xf]
    %v1979 = vld [vmem:[%s1 + $0x28] sm:$0xf]
    %v1980 = vld [vmem:[%s1 + $0x2c] sm:$0xf]
    %v1981 = vld [vmem:[%s1 + $0x30] sm:$0xf]
    %v1982 = vld [vmem:[%s1 + $0x34] sm:$0xf]
    %v1983 = vld [vmem:[%s1 + $0x38] sm:$0xf]
    %v1984 = vld [vmem:[%s1 + $0x3c] sm:$0xf]
    %v1985 = vld [vmem:[%s1 + $0x40] sm:$0xf]
    %v1986 = vld [vmem:[%s1 + $0x44] sm:$0xf]
    %v1987 = vld [vmem:[%s1 + $0x48] sm:$0xf]
    %v1988 = vld [vmem:[%s1 + $0x4c] sm:$0xf]
    %v1989 = vld [vmem:[%s1 + $0x50] sm:$0xf]
    %v1990 = vld [vmem:[%s1 + $0x54] sm:$0xf]
    %v1991 = vld [vmem:[%s1 + $0x58] sm:$0xf]
    %v1992 = vld [vmem:[%s1 + $0x5c] sm:$0xf]
    %v1993 = vld [vmem:[%s1 + $0x60] sm:$0xf]
    %v1994 = vld [vmem:[%s1 + $0x64] sm:$0xf]
    %v1995 = vld [vmem:[%s1 + $0x68] sm:$0xf]
    %v1996 = vld [vmem:[%s1 + $0x6c] sm:$0xf]
    %v1997 = vld [vmem:[%s1 + $0x70] sm:$0xf]
    %v1998 = vld [vmem:[%s1 + $0x74] sm:$0xf]
    %v1999 = vld [vmem:[%s1 + $0x78] sm:$0xf]
    %v2000 = vld [vmem:[%s1 + $0x7c] sm:$0xf]
    %v2001 = vld [vmem:[%s1 + $0x80] sm:$0xf]
    %v2002 = vld [vmem:[%s1 + $0x84] sm:$0xf]
    %v2003 = vld [vmem:[%s1 + $0x88] sm:$0xf]
    %v2004 = vld [vmem:[%s1 + $0x8c] sm:$0xf]
    %v2005 = vld [vmem:[%s1 + $0x90] sm:$0xf]
    %v2006 = vld [vmem:[%s1 + $0x94] sm:$0xf]
    %v2007 = vld [vmem:[%s1 + $0x98] sm:$0xf]
    %v2008 = vld [vmem:[%s1 + $0x9c] sm:$0xf]
    %v2009 = vld [vmem:[%s1 + $0xa0] sm:$0xf]
    %v2010 = vld [vmem:[%s1 + $0xa4] sm:$0xf]
    %v2011 = vld [vmem:[%s1 + $0xa8] sm:$0xf]
    %v2012 = vld [vmem:[%s1 + $0xac] sm:$0xf]
    %v2013 = vld [vmem:[%s1 + $0xb0] sm:$0xf]
    %v2014 = vld [vmem:[%s1 + $0xb4] sm:$0xf]
    %v2015 = vld [vmem:[%s1 + $0xb8] sm:$0xf]
    %v2016 = vld [vmem:[%s1 + $0xbc] sm:$0xf]
    %v2017 = vld [vmem:[%s1 + $0xc0] sm:$0xf]
    %v2018 = vld [vmem:[%s1 + $0xc4] sm:$0xf]
    %v2019 = vld [vmem:[%s1 + $0xc8] sm:$0xf]
    %v2020 = vld [vmem:[%s1 + $0xcc] sm:$0xf]
    %v2021 = vld [vmem:[%s1 + $0xd0] sm:$0xf]
    %v2022 = vld [vmem:[%s1 + $0xd4] sm:$0xf]
    %v2023 = vld [vmem:[%s1 + $0xd8] sm:$0xf]
    %v2024 = vld [vmem:[%s1 + $0xdc] sm:$0xf]
    %v2025 = vld [vmem:[%s1 + $0xe0] sm:$0xf]
    %v2026 = vld [vmem:[%s1 + $0xe4] sm:$0xf]
    %v2027 = vld [vmem:[%s1 + $0xe8] sm:$0xf]
    %v2028 = vld [vmem:[%s1 + $0xec] sm:$0xf]
    %v2029 = vld [vmem:[%s1 + $0xf0] sm:$0xf]
    %v2030 = vld [vmem:[%s1 + $0xf4] sm:$0xf]
    %v2031 = vld [vmem:[%s1 + $0xf8] sm:$0xf]
    %v2032 = vld [vmem:[%s1 + $0xfc] sm:$0xf]
    %v2033 = vld [vmem:[%s6] sm:$0xf]
    %v2034 = vld [vmem:[%s6 + $0x4] sm:$0xf]
    %v2035 = vld [vmem:[%s7] sm:$0x1]
    %v2037 = vlaneseq
    %v2038 = vshrl.u32 %v2037, 7
    %v2039 = vsub.s32 0, %v2038
    %v2040 = vrot.slane %v2035, %v2039
    %v2106 = vunpack.c.l.b16 %v1969
    %v2107 = vunpack.c.l.b16 %v1970
    %v2108 = vunpack.c.l.b16 %v1971
    %v2109 = vunpack.c.l.b16 %v1972
    %v2110 = vunpack.c.l.b16 %v1973
    %v2111 = vunpack.c.l.b16 %v1974
    %v2112 = vunpack.c.l.b16 %v1975
    %v2113 = vunpack.c.l.b16 %v1976
    %v2114 = vunpack.c.l.b16 %v1977
    %v2115 = vunpack.c.l.b16 %v1978
    %v2116 = vunpack.c.l.b16 %v1979
    %v2117 = vunpack.c.l.b16 %v1980
    %v2118 = vunpack.c.l.b16 %v1981
    %v2119 = vunpack.c.l.b16 %v1982
    %v2120 = vunpack.c.l.b16 %v1983
    %v2121 = vunpack.c.l.b16 %v1984
    %v2122 = vunpack.c.l.b16 %v1985
    %v2123 = vunpack.c.l.b16 %v1986
    %v2124 = vunpack.c.l.b16 %v1987
    %v2125 = vunpack.c.l.b16 %v1988
    %v2126 = vunpack.c.l.b16 %v1989
    %v2127 = vunpack.c.l.b16 %v1990
    %v2128 = vunpack.c.l.b16 %v1991
    %v2129 = vunpack.c.l.b16 %v1992
    %v2130 = vunpack.c.l.b16 %v1993
    %v2131 = vunpack.c.l.b16 %v1994
    %v2132 = vunpack.c.l.b16 %v1995
    %v2133 = vunpack.c.l.b16 %v1996
    %v2134 = vunpack.c.l.b16 %v1997
    %v2135 = vunpack.c.l.b16 %v1998
    %v2136 = vunpack.c.l.b16 %v1999
    %v2137 = vunpack.c.l.b16 %v2000
    %v2138 = vunpack.c.l.b16 %v2001
    %v2139 = vunpack.c.l.b16 %v2002
    %v2140 = vunpack.c.l.b16 %v2003
    %v2141 = vunpack.c.l.b16 %v2004
    %v2142 = vunpack.c.l.b16 %v2005
    %v2143 = vunpack.c.l.b16 %v2006
    %v2144 = vunpack.c.l.b16 %v2007
    %v2145 = vunpack.c.l.b16 %v2008
    %v2146 = vunpack.c.l.b16 %v2009
    %v2147 = vunpack.c.l.b16 %v2010
    %v2148 = vunpack.c.l.b16 %v2011
    %v2149 = vunpack.c.l.b16 %v2012
    %v2150 = vunpack.c.l.b16 %v2013
    %v2151 = vunpack.c.l.b16 %v2014
    %v2152 = vunpack.c.l.b16 %v2015
    %v2153 = vunpack.c.l.b16 %v2016
    %v2154 = vunpack.c.l.b16 %v2017
    %v2155 = vunpack.c.l.b16 %v2018
    %v2156 = vunpack.c.l.b16 %v2019
    %v2157 = vunpack.c.l.b16 %v2020
    %v2158 = vunpack.c.l.b16 %v2021
    %v2159 = vunpack.c.l.b16 %v2022
    %v2160 = vunpack.c.l.b16 %v2023
    %v2161 = vunpack.c.l.b16 %v2024
    %v2162 = vunpack.c.l.b16 %v2025
    %v2163 = vunpack.c.l.b16 %v2026
    %v2164 = vunpack.c.l.b16 %v2027
    %v2165 = vunpack.c.l.b16 %v2028
    %v2166 = vunpack.c.l.b16 %v2029
    %v2167 = vunpack.c.l.b16 %v2030
    %v2168 = vunpack.c.l.b16 %v2031
    %v2169 = vunpack.c.l.b16 %v2032
    %v2170 = vpack.c.b16 %v2107, %v2106
    %v2171 = vpack.c.b16 %v2109, %v2108
    %v2172 = vpack.c.b16 %v2111, %v2110
    %v2173 = vpack.c.b16 %v2113, %v2112
    %v2174 = vpack.c.b16 %v2115, %v2114
    %v2175 = vpack.c.b16 %v2117, %v2116
    %v2176 = vpack.c.b16 %v2119, %v2118
    %v2177 = vpack.c.b16 %v2121, %v2120
    %v2178 = vpack.c.b16 %v2123, %v2122
    %v2179 = vpack.c.b16 %v2125, %v2124
    %v2180 = vpack.c.b16 %v2127, %v2126
    %v2181 = vpack.c.b16 %v2129, %v2128
    %v2182 = vpack.c.b16 %v2131, %v2130
    %v2183 = vpack.c.b16 %v2133, %v2132
    %v2184 = vpack.c.b16 %v2135, %v2134
    %v2185 = vpack.c.b16 %v2137, %v2136
    %v2186 = vpack.c.b16 %v2139, %v2138
    %v2187 = vpack.c.b16 %v2141, %v2140
    %v2188 = vpack.c.b16 %v2143, %v2142
    %v2189 = vpack.c.b16 %v2145, %v2144
    %v2190 = vpack.c.b16 %v2147, %v2146
    %v2191 = vpack.c.b16 %v2149, %v2148
    %v2192 = vpack.c.b16 %v2151, %v2150
    %v2193 = vpack.c.b16 %v2153, %v2152
    %v2194 = vpack.c.b16 %v2155, %v2154
    %v2195 = vpack.c.b16 %v2157, %v2156
    %v2196 = vpack.c.b16 %v2159, %v2158
    %v2197 = vpack.c.b16 %v2161, %v2160
    %v2198 = vpack.c.b16 %v2163, %v2162
    %v2199 = vpack.c.b16 %v2165, %v2164
    %v2200 = vpack.c.b16 %v2167, %v2166
    %v2201 = vpack.c.b16 %v2169, %v2168
    %v2204 = vunpack.c.l.b16 %v2033
    %v2205 = vunpack.c.l.b16 %v2034
    %v2206 = vpack.c.b16 %v2205, %v2204
    %vm2208 = vcmask 130048
    %v2210 = vsel %vm2208, %v2170, 0
    %v2213 = vsel %vm2208, %v2171, 0
    %v2216 = vsel %vm2208, %v2172, 0
    %v2219 = vsel %vm2208, %v2173, 0
    %v2222 = vsel %vm2208, %v2174, 0
    %v2225 = vsel %vm2208, %v2175, 0
    %v2228 = vsel %vm2208, %v2176, 0
    %v2231 = vsel %vm2208, %v2177, 0
    %v2234 = vsel %vm2208, %v2178, 0
    %v2237 = vsel %vm2208, %v2179, 0
    %v2240 = vsel %vm2208, %v2180, 0
    %v2243 = vsel %vm2208, %v2181, 0
    %v2246 = vsel %vm2208, %v2182, 0
    %v2249 = vsel %vm2208, %v2183, 0
    %v2252 = vsel %vm2208, %v2184, 0
    %v2255 = vsel %vm2208, %v2185, 0
    %v2258 = vsel %vm2208, %v2186, 0
    %v2261 = vsel %vm2208, %v2187, 0
    %v2264 = vsel %vm2208, %v2188, 0
    %v2267 = vsel %vm2208, %v2189, 0
    %v2270 = vsel %vm2208, %v2190, 0
    %v2273 = vsel %vm2208, %v2191, 0
    %v2276 = vsel %vm2208, %v2192, 0
    %v2279 = vsel %vm2208, %v2193, 0
    %v2282 = vsel %vm2208, %v2194, 0
    %v2285 = vsel %vm2208, %v2195, 0
    %v2288 = vsel %vm2208, %v2196, 0
    %v2291 = vsel %vm2208, %v2197, 0
    %v2294 = vsel %vm2208, %v2198, 0
    %v2297 = vsel %vm2208, %v2199, 0
    %v2300 = vsel %vm2208, %v2200, 0
    %v2303 = vsel %vm2208, %v2201, 0
    %2305 = vmatprep.subr.bf16.mxu0 0
    %2306 = vmatpush1.bf16.msra.mxu0 %v2206
    %2307 = vmatprep.subr.bf16.mxu0 0
    %2308 = vmatpush1.bf16.msra.mxu0 0
    %2309 = vmatprep.subr.bf16.mxu0 0
    %2310 = vmatpush1.bf16.msra.mxu0 0
    %2311 = vmatprep.subr.bf16.mxu0 0
    %2312 = vmatpush1.bf16.msra.mxu0 0
    %2313 = vmatprep.subr.bf16.mxu0 0
    %2314 = vmatpush1.bf16.msra.mxu0 0
    %2315 = vmatprep.subr.bf16.mxu0 0
    %2316 = vmatpush1.bf16.msra.mxu0 0
    %2317 = vmatprep.subr.bf16.mxu0 0
    %2318 = vmatpush1.bf16.msra.mxu0 0
    %2319 = vmatprep.subr.bf16.mxu0 0
    %2320 = vmatpush1.bf16.msra.mxu0 0
    %2321 = vmatprep.subr.bf16.mxu0 0
    %2322 = vmatpush1.bf16.msra.mxu0 0
    %2323 = vmatprep.subr.bf16.mxu0 0
    %2324 = vmatpush1.bf16.msra.mxu0 0
    %2325 = vmatprep.subr.bf16.mxu0 0
    %2326 = vmatpush1.bf16.msra.mxu0 0
    %2327 = vmatprep.subr.bf16.mxu0 0
    %2328 = vmatpush1.bf16.msra.mxu0 0
    %2329 = vmatprep.subr.bf16.mxu0 0
    %2330 = vmatpush1.bf16.msra.mxu0 0
    %2331 = vmatprep.subr.bf16.mxu0 0
    %2332 = vmatpush1.bf16.msra.mxu0 0
    %2333 = vmatprep.subr.bf16.mxu0 0
    %2334 = vmatpush1.bf16.msra.mxu0 0
    %2335 = vmatprep.subr.bf16.mxu0 0
    %2336 = vmatpush1.bf16.msra.mxu0 0
    %2337 = vmatprep.mubr.bf16.mxu0 0
    %2338 = vmatmul.mubr.bf16.gmra.mrb[0].mxu0 %v2210
    %v2339 = vpop.f32.mrb[0].mxu0
    %v2340 = vadd.f32 %v2040, %v2339
    %v2341 = vpop.f32.mrb[0].mxu0
    %v2342 = vpop.f32.mrb[0].mxu0
    %v2343 = vadd.f32 %v2040, %v2342
    %v2344 = vpop.f32.mrb[0].mxu0
    %2345 = vmatprep.mubr.bf16.mxu0 0
    %2346 = vmatmul.mubr.bf16.gmra.mrb[0].mxu0 %v2213
    %v2347 = vpop.f32.mrb[0].mxu0
    %v2348 = vadd.f32 %v2040, %v2347
    %v2349 = vpop.f32.mrb[0].mxu0
    %v2350 = vpop.f32.mrb[0].mxu0
    %v2351 = vadd.f32 %v2040, %v2350
    %v2352 = vpop.f32.mrb[0].mxu0
    %2353 = vmatprep.mubr.bf16.mxu0 0
    %2354 = vmatmul.mubr.bf16.gmra.mrb[0].mxu0 %v2216
    %v2355 = vpop.f32.mrb[0].mxu0
    %v2356 = vadd.f32 %v2040, %v2355
    %v2357 = vpop.f32.mrb[0].mxu0
    %v2358 = vpop.f32.mrb[0].mxu0
    %v2359 = vadd.f32 %v2040, %v2358
    %v2360 = vpop.f32.mrb[0].mxu0
    %2361 = vmatprep.mubr.bf16.mxu0 0
    %2362 = vmatmul.mubr.bf16.gmra.mrb[0].mxu0 %v2219
    %v2363 = vpop.f32.mrb[0].mxu0
    %v2364 = vadd.f32 %v2040, %v2363
    %v2365 = vpop.f32.mrb[0].mxu0
    %v2366 = vpop.f32.mrb[0].mxu0
    %v2367 = vadd.f32 %v2040, %v2366
    %v2368 = vpop.f32.mrb[0].mxu0
    %2369 = vmatprep.mubr.bf16.mxu0 0
    %2370 = vmatmul.mubr.bf16.gmra.mrb[0].mxu0 %v2222
    %v2371 = vpop.f32.mrb[0].mxu0
    %v2372 = vadd.f32 %v2040, %v2371
    %v2373 = vpop.f32.mrb[0].mxu0
    %v2374 = vpop.f32.mrb[0].mxu0
    %v2375 = vadd.f32 %v2040, %v2374
    %v2376 = vpop.f32.mrb[0].mxu0
    %2377 = vmatprep.mubr.bf16.mxu0 0
    %2378 = vmatmul.mubr.bf16.gmra.mrb[0].mxu0 %v2225
    %v2379 = vpop.f32.mrb[0].mxu0
    %v2380 = vadd.f32 %v2040, %v2379
    %v2381 = vpop.f32.mrb[0].mxu0
    %v2382 = vpop.f32.mrb[0].mxu0
    %v2383 = vadd.f32 %v2040, %v2382
    %v2384 = vpop.f32.mrb[0].mxu0
    %2385 = vmatprep.mubr.bf16.mxu0 0
    %2386 = vmatmul.mubr.bf16.gmra.mrb[0].mxu0 %v2228
    %v2387 = vpop.f32.mrb[0].mxu0
    %v2388 = vadd.f32 %v2040, %v2387
    %v2389 = vpop.f32.mrb[0].mxu0
    %v2390 = vpop.f32.mrb[0].mxu0
    %v2391 = vadd.f32 %v2040, %v2390
    %v2392 = vpop.f32.mrb[0].mxu0
    %2393 = vmatprep.mubr.bf16.mxu0 0
    %2394 = vmatmul.mubr.bf16.gmra.mrb[0].mxu0 %v2231
    %v2395 = vpop.f32.mrb[0].mxu0
    %v2396 = vadd.f32 %v2040, %v2395
    %v2397 = vpop.f32.mrb[0].mxu0
    %v2398 = vpop.f32.mrb[0].mxu0
    %v2399 = vadd.f32 %v2040, %v2398
    %v2400 = vpop.f32.mrb[0].mxu0
    %2401 = vmatprep.mubr.bf16.mxu0 0
    %2402 = vmatmul.mubr.bf16.gmra.mrb[0].mxu0 %v2234
    %v2403 = vpop.f32.mrb[0].mxu0
    %v2404 = vadd.f32 %v2040, %v2403
    %v2405 = vpop.f32.mrb[0].mxu0
    %v2406 = vpop.f32.mrb[0].mxu0
    %v2407 = vadd.f32 %v2040, %v2406
    %v2408 = vpop.f32.mrb[0].mxu0
    %2409 = vmatprep.mubr.bf16.mxu0 0
    %2410 = vmatmul.mubr.bf16.gmra.mrb[0].mxu0 %v2237
    %v2411 = vpop.f32.mrb[0].mxu0
    %v2412 = vadd.f32 %v2040, %v2411
    %v2413 = vpop.f32.mrb[0].mxu0
    %v2414 = vpop.f32.mrb[0].mxu0
    %v2415 = vadd.f32 %v2040, %v2414
    %v2416 = vpop.f32.mrb[0].mxu0
    %2417 = vmatprep.mubr.bf16.mxu0 0
    %2418 = vmatmul.mubr.bf16.gmra.mrb[0].mxu0 %v2240
    %v2419 = vpop.f32.mrb[0].mxu0
    %v2420 = vadd.f32 %v2040, %v2419
    %v2421 = vpop.f32.mrb[0].mxu0
    %v2422 = vpop.f32.mrb[0].mxu0
    %v2423 = vadd.f32 %v2040, %v2422
    %v2424 = vpop.f32.mrb[0].mxu0
    %2425 = vmatprep.mubr.bf16.mxu0 0
    %2426 = vmatmul.mubr.bf16.gmra.mrb[0].mxu0 %v2243
    %v2427 = vpop.f32.mrb[0].mxu0
    %v2428 = vadd.f32 %v2040, %v2427
    %v2429 = vpop.f32.mrb[0].mxu0
    %v2430 = vpop.f32.mrb[0].mxu0
    %v2431 = vadd.f32 %v2040, %v2430
    %v2432 = vpop.f32.mrb[0].mxu0
    %2433 = vmatprep.mubr.bf16.mxu0 0
    %2434 = vmatmul.mubr.bf16.gmra.mrb[0].mxu0 %v2246
    %v2435 = vpop.f32.mrb[0].mxu0
    %v2436 = vadd.f32 %v2040, %v2435
    %v2437 = vpop.f32.mrb[0].mxu0
    %v2438 = vpop.f32.mrb[0].mxu0
    %v2439 = vadd.f32 %v2040, %v2438
    %v2440 = vpop.f32.mrb[0].mxu0
    %2441 = vmatprep.mubr.bf16.mxu0 0
    %2442 = vmatmul.mubr.bf16.gmra.mrb[0].mxu0 %v2249
    %v2443 = vpop.f32.mrb[0].mxu0
    %v2444 = vadd.f32 %v2040, %v2443
    %v2445 = vpop.f32.mrb[0].mxu0
    %v2446 = vpop.f32.mrb[0].mxu0
    %v2447 = vadd.f32 %v2040, %v2446
    %v2448 = vpop.f32.mrb[0].mxu0
    %2449 = vmatprep.mubr.bf16.mxu0 0
    %2450 = vmatmul.mubr.bf16.gmra.mrb[0].mxu0 %v2252
    %v2451 = vpop.f32.mrb[0].mxu0
    %v2452 = vadd.f32 %v2040, %v2451
    %v2453 = vpop.f32.mrb[0].mxu0
    %v2454 = vpop.f32.mrb[0].mxu0
    %v2455 = vadd.f32 %v2040, %v2454
    %v2456 = vpop.f32.mrb[0].mxu0
    %2457 = vmatprep.mubr.bf16.mxu0 0
    %2458 = vmatmul.mubr.bf16.gmra.mrb[0].mxu0 %v2255
    %v2459 = vpop.f32.mrb[0].mxu0
    %v2460 = vadd.f32 %v2040, %v2459
    %v2461 = vpop.f32.mrb[0].mxu0
    %v2462 = vpop.f32.mrb[0].mxu0
    %v2463 = vadd.f32 %v2040, %v2462
    %v2464 = vpop.f32.mrb[0].mxu0
    %2465 = vmatprep.mubr.bf16.mxu0 0
    %2466 = vmatmul.mubr.bf16.gmra.mrb[0].mxu0 %v2258
    %v2467 = vpop.f32.mrb[0].mxu0
    %v2468 = vadd.f32 %v2040, %v2467
    %v2469 = vpop.f32.mrb[0].mxu0
    %v2470 = vpop.f32.mrb[0].mxu0
    %v2471 = vadd.f32 %v2040, %v2470
    %v2472 = vpop.f32.mrb[0].mxu0
    %2473 = vmatprep.mubr.bf16.mxu0 0
    %2474 = vmatmul.mubr.bf16.gmra.mrb[0].mxu0 %v2261
    %v2475 = vpop.f32.mrb[0].mxu0
    %v2476 = vadd.f32 %v2040, %v2475
    %v2477 = vpop.f32.mrb[0].mxu0
    %v2478 = vpop.f32.mrb[0].mxu0
    %v2479 = vadd.f32 %v2040, %v2478
    %v2480 = vpop.f32.mrb[0].mxu0
    %2481 = vmatprep.mubr.bf16.mxu0 0
    %2482 = vmatmul.mubr.bf16.gmra.mrb[0].mxu0 %v2264
    %v2483 = vpop.f32.mrb[0].mxu0
    %v2484 = vadd.f32 %v2040, %v2483
    %v2485 = vpop.f32.mrb[0].mxu0
    %v2486 = vpop.f32.mrb[0].mxu0
    %v2487 = vadd.f32 %v2040, %v2486
    %v2488 = vpop.f32.mrb[0].mxu0
    %2489 = vmatprep.mubr.bf16.mxu0 0
    %2490 = vmatmul.mubr.bf16.gmra.mrb[0].mxu0 %v2267
    %v2491 = vpop.f32.mrb[0].mxu0
    %v2492 = vadd.f32 %v2040, %v2491
    %v2493 = vpop.f32.mrb[0].mxu0
    %v2494 = vpop.f32.mrb[0].mxu0
    %v2495 = vadd.f32 %v2040, %v2494
    %v2496 = vpop.f32.mrb[0].mxu0
    %2497 = vmatprep.mubr.bf16.mxu0 0
    %2498 = vmatmul.mubr.bf16.gmra.mrb[0].mxu0 %v2270
    %v2499 = vpop.f32.mrb[0].mxu0
    %v2500 = vadd.f32 %v2040, %v2499
    %v2501 = vpop.f32.mrb[0].mxu0
    %v2502 = vpop.f32.mrb[0].mxu0
    %v2503 = vadd.f32 %v2040, %v2502
    %v2504 = vpop.f32.mrb[0].mxu0
    %2505 = vmatprep.mubr.bf16.mxu0 0
    %2506 = vmatmul.mubr.bf16.gmra.mrb[0].mxu0 %v2273
    %v2507 = vpop.f32.mrb[0].mxu0
    %v2508 = vadd.f32 %v2040, %v2507
    %v2509 = vpop.f32.mrb[0].mxu0
    %v2510 = vpop.f32.mrb[0].mxu0
    %v2511 = vadd.f32 %v2040, %v2510
    %v2512 = vpop.f32.mrb[0].mxu0
    %2513 = vmatprep.mubr.bf16.mxu0 0
    %2514 = vmatmul.mubr.bf16.gmra.mrb[0].mxu0 %v2276
    %v2515 = vpop.f32.mrb[0].mxu0
    %v2516 = vadd.f32 %v2040, %v2515
    %v2517 = vpop.f32.mrb[0].mxu0
    %v2518 = vpop.f32.mrb[0].mxu0
    %v2519 = vadd.f32 %v2040, %v2518
    %v2520 = vpop.f32.mrb[0].mxu0
    %2521 = vmatprep.mubr.bf16.mxu0 0
    %2522 = vmatmul.mubr.bf16.gmra.mrb[0].mxu0 %v2279
    %v2523 = vpop.f32.mrb[0].mxu0
    %v2524 = vadd.f32 %v2040, %v2523
    %v2525 = vpop.f32.mrb[0].mxu0
    %v2526 = vpop.f32.mrb[0].mxu0
    %v2527 = vadd.f32 %v2040, %v2526
    %v2528 = vpop.f32.mrb[0].mxu0
    %2529 = vmatprep.mubr.bf16.mxu0 0
    %2530 = vmatmul.mubr.bf16.gmra.mrb[0].mxu0 %v2282
    %v2531 = vpop.f32.mrb[0].mxu0
    %v2532 = vadd.f32 %v2040, %v2531
    %v2533 = vpop.f32.mrb[0].mxu0
    %v2534 = vpop.f32.mrb[0].mxu0
    %v2535 = vadd.f32 %v2040, %v2534
    %v2536 = vpop.f32.mrb[0].mxu0
    %2537 = vmatprep.mubr.bf16.mxu0 0
    %2538 = vmatmul.mubr.bf16.gmra.mrb[0].mxu0 %v2285
    %v2539 = vpop.f32.mrb[0].mxu0
    %v2540 = vadd.f32 %v2040, %v2539
    %v2541 = vpop.f32.mrb[0].mxu0
    %v2542 = vpop.f32.mrb[0].mxu0
    %v2543 = vadd.f32 %v2040, %v2542
    %v2544 = vpop.f32.mrb[0].mxu0
    %2545 = vmatprep.mubr.bf16.mxu0 0
    %2546 = vmatmul.mubr.bf16.gmra.mrb[0].mxu0 %v2288
    %v2547 = vpop.f32.mrb[0].mxu0
    %v2548 = vadd.f32 %v2040, %v2547
    %v2549 = vpop.f32.mrb[0].mxu0
    %v2550 = vpop.f32.mrb[0].mxu0
    %v2551 = vadd.f32 %v2040, %v2550
    %v2552 = vpop.f32.mrb[0].mxu0
    %2553 = vmatprep.mubr.bf16.mxu0 0
    %2554 = vmatmul.mubr.bf16.gmra.mrb[0].mxu0 %v2291
    %v2555 = vpop.f32.mrb[0].mxu0
    %v2556 = vadd.f32 %v2040, %v2555
    %v2557 = vpop.f32.mrb[0].mxu0
    %v2558 = vpop.f32.mrb[0].mxu0
    %v2559 = vadd.f32 %v2040, %v2558
    %v2560 = vpop.f32.mrb[0].mxu0
    %2561 = vmatprep.mubr.bf16.mxu0 0
    %2562 = vmatmul.mubr.bf16.gmra.mrb[0].mxu0 %v2294
    %v2563 = vpop.f32.mrb[0].mxu0
    %v2564 = vadd.f32 %v2040, %v2563
    %v2565 = vpop.f32.mrb[0].mxu0
    %v2566 = vpop.f32.mrb[0].mxu0
    %v2567 = vadd.f32 %v2040, %v2566
    %v2568 = vpop.f32.mrb[0].mxu0
    %2569 = vmatprep.mubr.bf16.mxu0 0
    %2570 = vmatmul.mubr.bf16.gmra.mrb[0].mxu0 %v2297
    %v2571 = vpop.f32.mrb[0].mxu0
    %v2572 = vadd.f32 %v2040, %v2571
    %v2573 = vpop.f32.mrb[0].mxu0
    %v2574 = vpop.f32.mrb[0].mxu0
    %v2575 = vadd.f32 %v2040, %v2574
    %v2576 = vpop.f32.mrb[0].mxu0
    %2577 = vmatprep.mubr.bf16.mxu0 0
    %2578 = vmatmul.mubr.bf16.gmra.mrb[0].mxu0 %v2300
    %v2579 = vpop.f32.mrb[0].mxu0
    %v2580 = vadd.f32 %v2040, %v2579
    %v2581 = vpop.f32.mrb[0].mxu0
    %v2582 = vpop.f32.mrb[0].mxu0
    %v2583 = vadd.f32 %v2040, %v2582
    %v2584 = vpop.f32.mrb[0].mxu0
    %2585 = vmatprep.mubr.bf16.mxu0 0
    %2586 = vmatmul.mubr.bf16.gmra.mrb[0].mxu0 %v2303
    %v2587 = vpop.f32.mrb[0].mxu0
    %v2588 = vadd.f32 %v2040, %v2587
    %v2589 = vpop.f32.mrb[0].mxu0
    %v2590 = vpop.f32.mrb[0].mxu0
    %v2591 = vadd.f32 %v2040, %v2590
    %v2592 = vpop.f32.mrb[0].mxu0
    %2593 = vdwg.mxu0
    %v2594 = vadd.f32 %v1715, %v2340
    %v2595 = vadd.f32 %v1718, %v2343
    %v2596 = vadd.f32 %v1723, %v2348
    %v2597 = vadd.f32 %v1726, %v2351
    %v2598 = vadd.f32 %v1731, %v2356
    %v2599 = vadd.f32 %v1734, %v2359
    %v2600 = vadd.f32 %v1739, %v2364
    %v2601 = vadd.f32 %v1742, %v2367
    %v2602 = vadd.f32 %v1747, %v2372
    %v2603 = vadd.f32 %v1750, %v2375
    %v2604 = vadd.f32 %v1755, %v2380
    %v2605 = vadd.f32 %v1758, %v2383
    %v2606 = vadd.f32 %v1763, %v2388
    %v2607 = vadd.f32 %v1766, %v2391
    %v2608 = vadd.f32 %v1771, %v2396
    %v2609 = vadd.f32 %v1774, %v2399
    %v2610 = vadd.f32 %v1779, %v2404
    %v2611 = vadd.f32 %v1782, %v2407
    %v2612 = vadd.f32 %v1787, %v2412
    %v2613 = vadd.f32 %v1790, %v2415
    %v2614 = vadd.f32 %v1795, %v2420
    %v2615 = vadd.f32 %v1798, %v2423
    %v2616 = vadd.f32 %v1803, %v2428
    %v2617 = vadd.f32 %v1806, %v2431
    %v2618 = vadd.f32 %v1811, %v2436
    %v2619 = vadd.f32 %v1814, %v2439
    %v2620 = vadd.f32 %v1819, %v2444
    %v2621 = vadd.f32 %v1822, %v2447
    %v2622 = vadd.f32 %v1827, %v2452
    %v2623 = vadd.f32 %v1830, %v2455
    %v2624 = vadd.f32 %v1835, %v2460
    %v2625 = vadd.f32 %v1838, %v2463
    %v2626 = vadd.f32 %v1843, %v2468
    %v2627 = vadd.f32 %v1846, %v2471
    %v2628 = vadd.f32 %v1851, %v2476
    %v2629 = vadd.f32 %v1854, %v2479
    %v2630 = vadd.f32 %v1859, %v2484
    %v2631 = vadd.f32 %v1862, %v2487
    %v2632 = vadd.f32 %v1867, %v2492
    %v2633 = vadd.f32 %v1870, %v2495
    %v2634 = vadd.f32 %v1875, %v2500
    %v2635 = vadd.f32 %v1878, %v2503
    %v2636 = vadd.f32 %v1883, %v2508
    %v2637 = vadd.f32 %v1886, %v2511
    %v2638 = vadd.f32 %v1891, %v2516
    %v2639 = vadd.f32 %v1894, %v2519
    %v2640 = vadd.f32 %v1899, %v2524
    %v2641 = vadd.f32 %v1902, %v2527
    %v2642 = vadd.f32 %v1907, %v2532
    %v2643 = vadd.f32 %v1910, %v2535
    %v2644 = vadd.f32 %v1915, %v2540
    %v2645 = vadd.f32 %v1918, %v2543
    %v2646 = vadd.f32 %v1923, %v2548
    %v2647 = vadd.f32 %v1926, %v2551
    %v2648 = vadd.f32 %v1931, %v2556
    %v2649 = vadd.f32 %v1934, %v2559
    %v2650 = vadd.f32 %v1939, %v2564
    %v2651 = vadd.f32 %v1942, %v2567
    %v2652 = vadd.f32 %v1947, %v2572
    %v2653 = vadd.f32 %v1950, %v2575
    %v2654 = vadd.f32 %v1955, %v2580
    %v2655 = vadd.f32 %v1958, %v2583
    %v2656 = vadd.f32 %v1963, %v2588
    %v2657 = vadd.f32 %v1966, %v2591
    %v2658 = vmax.f32 %v2594, 0.0
    %v2659 = vmax.f32 %v2595, 0.0
    %v2660 = vmax.f32 %v2596, 0.0
    %v2661 = vmax.f32 %v2597, 0.0
    %v2662 = vmax.f32 %v2598, 0.0
    %v2663 = vmax.f32 %v2599, 0.0
    %v2664 = vmax.f32 %v2600, 0.0
    %v2665 = vmax.f32 %v2601, 0.0
    %v2666 = vmax.f32 %v2602, 0.0
    %v2667 = vmax.f32 %v2603, 0.0
    %v2668 = vmax.f32 %v2604, 0.0
    %v2669 = vmax.f32 %v2605, 0.0
    %v2670 = vmax.f32 %v2606, 0.0
    %v2671 = vmax.f32 %v2607, 0.0
    %v2672 = vmax.f32 %v2608, 0.0
    %v2673 = vmax.f32 %v2609, 0.0
    %v2674 = vmax.f32 %v2610, 0.0
    %v2675 = vmax.f32 %v2611, 0.0
    %v2676 = vmax.f32 %v2612, 0.0
    %v2677 = vmax.f32 %v2613, 0.0
    %v2678 = vmax.f32 %v2614, 0.0
    %v2679 = vmax.f32 %v2615, 0.0
    %v2680 = vmax.f32 %v2616, 0.0
    %v2681 = vmax.f32 %v2617, 0.0
    %v2682 = vmax.f32 %v2618, 0.0
    %v2683 = vmax.f32 %v2619, 0.0
    %v2684 = vmax.f32 %v2620, 0.0
    %v2685 = vmax.f32 %v2621, 0.0
    %v2686 = vmax.f32 %v2622, 0.0
    %v2687 = vmax.f32 %v2623, 0.0
    %v2688 = vmax.f32 %v2624, 0.0
    %v2689 = vmax.f32 %v2625, 0.0
    %v2690 = vmax.f32 %v2626, 0.0
    %v2691 = vmax.f32 %v2627, 0.0
    %v2692 = vmax.f32 %v2628, 0.0
    %v2693 = vmax.f32 %v2629, 0.0
    %v2694 = vmax.f32 %v2630, 0.0
    %v2695 = vmax.f32 %v2631, 0.0
    %v2696 = vmax.f32 %v2632, 0.0
    %v2697 = vmax.f32 %v2633, 0.0
    %v2698 = vmax.f32 %v2634, 0.0
    %v2699 = vmax.f32 %v2635, 0.0
    %v2700 = vmax.f32 %v2636, 0.0
    %v2701 = vmax.f32 %v2637, 0.0
    %v2702 = vmax.f32 %v2638, 0.0
    %v2703 = vmax.f32 %v2639, 0.0
    %v2704 = vmax.f32 %v2640, 0.0
    %v2705 = vmax.f32 %v2641, 0.0
    %v2706 = vmax.f32 %v2642, 0.0
    %v2707 = vmax.f32 %v2643, 0.0
    %v2708 = vmax.f32 %v2644, 0.0
    %v2709 = vmax.f32 %v2645, 0.0
    %v2710 = vmax.f32 %v2646, 0.0
    %v2711 = vmax.f32 %v2647, 0.0
    %v2712 = vmax.f32 %v2648, 0.0
    %v2713 = vmax.f32 %v2649, 0.0
    %v2714 = vmax.f32 %v2650, 0.0
    %v2715 = vmax.f32 %v2651, 0.0
    %v2716 = vmax.f32 %v2652, 0.0
    %v2717 = vmax.f32 %v2653, 0.0
    %v2718 = vmax.f32 %v2654, 0.0
    %v2719 = vmax.f32 %v2655, 0.0
    %v2720 = vmax.f32 %v2656, 0.0
    %v2721 = vmax.f32 %v2657, 0.0
    %2722 = vst [vmem:[#allocation2] sm:$0xff] %v2658
    %2723 = vst [vmem:[#allocation2 + $0x8] sm:$0xff] %v2659
    %2724 = vst [vmem:[#allocation2 + $0x10] sm:$0xff] %v2660
    %2725 = vst [vmem:[#allocation2 + $0x18] sm:$0xff] %v2661
    %2726 = vst [vmem:[#allocation2 + $0x20] sm:$0xff] %v2662
    %2727 = vst [vmem:[#allocation2 + $0x28] sm:$0xff] %v2663
    %2728 = vst [vmem:[#allocation2 + $0x30] sm:$0xff] %v2664
    %2729 = vst [vmem:[#allocation2 + $0x38] sm:$0xff] %v2665
    %2730 = vst [vmem:[#allocation2 + $0x40] sm:$0xff] %v2666
    %2731 = vst [vmem:[#allocation2 + $0x48] sm:$0xff] %v2667
    %2732 = vst [vmem:[#allocation2 + $0x50] sm:$0xff] %v2668
    %2733 = vst [vmem:[#allocation2 + $0x58] sm:$0xff] %v2669
    %2734 = vst [vmem:[#allocation2 + $0x60] sm:$0xff] %v2670
    %2735 = vst [vmem:[#allocation2 + $0x68] sm:$0xff] %v2671
    %2736 = vst [vmem:[#allocation2 + $0x70] sm:$0xff] %v2672
    %2737 = vst [vmem:[#allocation2 + $0x78] sm:$0xff] %v2673
    %2738 = vst [vmem:[#allocation2 + $0x80] sm:$0xff] %v2674
    %2739 = vst [vmem:[#allocation2 + $0x88] sm:$0xff] %v2675
    %2740 = vst [vmem:[#allocation2 + $0x90] sm:$0xff] %v2676
    %2741 = vst [vmem:[#allocation2 + $0x98] sm:$0xff] %v2677
    %2742 = vst [vmem:[#allocation2 + $0xa0] sm:$0xff] %v2678
    %2743 = vst [vmem:[#allocation2 + $0xa8] sm:$0xff] %v2679
    %2744 = vst [vmem:[#allocation2 + $0xb0] sm:$0xff] %v2680
    %2745 = vst [vmem:[#allocation2 + $0xb8] sm:$0xff] %v2681
    %2746 = vst [vmem:[#allocation2 + $0xc0] sm:$0xff] %v2682
    %2747 = vst [vmem:[#allocation2 + $0xc8] sm:$0xff] %v2683
    %2748 = vst [vmem:[#allocation2 + $0xd0] sm:$0xff] %v2684
    %2749 = vst [vmem:[#allocation2 + $0xd8] sm:$0xff] %v2685
    %2750 = vst [vmem:[#allocation2 + $0xe0] sm:$0xff] %v2686
    %2751 = vst [vmem:[#allocation2 + $0xe8] sm:$0xff] %v2687
    %2752 = vst [vmem:[#allocation2 + $0xf0] sm:$0xff] %v2688
    %2753 = vst [vmem:[#allocation2 + $0xf8] sm:$0xff] %v2689
    %2754 = vst [vmem:[#allocation2 + $0x100] sm:$0xff] %v2690
    %2755 = vst [vmem:[#allocation2 + $0x108] sm:$0xff] %v2691
    %2756 = vst [vmem:[#allocation2 + $0x110] sm:$0xff] %v2692
    %2757 = vst [vmem:[#allocation2 + $0x118] sm:$0xff] %v2693
    %2758 = vst [vmem:[#allocation2 + $0x120] sm:$0xff] %v2694
    %2759 = vst [vmem:[#allocation2 + $0x128] sm:$0xff] %v2695
    %2760 = vst [vmem:[#allocation2 + $0x130] sm:$0xff] %v2696
    %2761 = vst [vmem:[#allocation2 + $0x138] sm:$0xff] %v2697
    %2762 = vst [vmem:[#allocation2 + $0x140] sm:$0xff] %v2698
    %2763 = vst [vmem:[#allocation2 + $0x148] sm:$0xff] %v2699
    %2764 = vst [vmem:[#allocation2 + $0x150] sm:$0xff] %v2700
    %2765 = vst [vmem:[#allocation2 + $0x158] sm:$0xff] %v2701
    %2766 = vst [vmem:[#allocation2 + $0x160] sm:$0xff] %v2702
    %2767 = vst [vmem:[#allocation2 + $0x168] sm:$0xff] %v2703
    %2768 = vst [vmem:[#allocation2 + $0x170] sm:$0xff] %v2704
    %2769 = vst [vmem:[#allocation2 + $0x178] sm:$0xff] %v2705
    %2770 = vst [vmem:[#allocation2 + $0x180] sm:$0xff] %v2706
    %2771 = vst [vmem:[#allocation2 + $0x188] sm:$0xff] %v2707
    %2772 = vst [vmem:[#allocation2 + $0x190] sm:$0xff] %v2708
    %2773 = vst [vmem:[#allocation2 + $0x198] sm:$0xff] %v2709
    %2774 = vst [vmem:[#allocation2 + $0x1a0] sm:$0xff] %v2710
    %2775 = vst [vmem:[#allocation2 + $0x1a8] sm:$0xff] %v2711
    %2776 = vst [vmem:[#allocation2 + $0x1b0] sm:$0xff] %v2712
    %2777 = vst [vmem:[#allocation2 + $0x1b8] sm:$0xff] %v2713
    %2778 = vst [vmem:[#allocation2 + $0x1c0] sm:$0xff] %v2714
    %2779 = vst [vmem:[#allocation2 + $0x1c8] sm:$0xff] %v2715
    %2780 = vst [vmem:[#allocation2 + $0x1d0] sm:$0xff] %v2716
    %2781 = vst [vmem:[#allocation2 + $0x1d8] sm:$0xff] %v2717
    %2782 = vst [vmem:[#allocation2 + $0x1e0] sm:$0xff] %v2718
    %2783 = vst [vmem:[#allocation2 + $0x1e8] sm:$0xff] %v2719
    %2784 = vst [vmem:[#allocation2 + $0x1f0] sm:$0xff] %v2720
    %2785 = vst [vmem:[#allocation2 + $0x1f8] sm:$0xff] %v2721
    // Predicated region
    $region34: #{_lambda_.3} parent=1 // pred_check
      _
    $region35: #{_lambda_.3} parent=1 // pred_check_branch
      %2787 = sbr.rel (0) target = $region37
    $region36: #{_lambda_.3} parent=1 // pred_region
      %s2789 = ssub.s32 8192, 8192
      %2790 = vsyncadd [#allocation3], %s2789
      %s2791 = sshll.u32 [#allocation2], 4
      %s2792 = int_to_ptr.vmem [resolvable:$true] %s2791
      %2797 = dma.vmem_to_hbm [thread:$0]  %s2792, 8192, %s8, [#allocation3], 128, 128, 8
    $region37: #{_lambda_.3} parent=1 // pred_fallthru
      _
    // Predicated region
    $region38: #{_lambda_.3} parent=1 // pred_check
      _
    $region39: #{_lambda_.3} parent=1 // pred_check_branch
      %2799 = sbr.rel (0) target = $region41
    $region40: #{_lambda_.3} parent=1 // pred_region
      %2800 = dma.done [#allocation3], 8192
    $region41: #{_lambda_.3} parent=1 // pred_fallthru
      _
    %2801 = vsyncpa [#allocation3], 1

</llo_original>
